<compile_context>
chip_gen: v7x
topology: tpu7x:2x2x1
jax: 0.10.0
libtpu: 0.0.40
codegen_flags: <defaults>
</compile_context>

<pallas_src>
import math

import numpy as np
import jax
import jax.numpy as jnp
from jax import lax
from jax.experimental import pallas as pl
from jax.experimental.pallas import tpu as pltpu

# ops.leaky_relu in ProGAN-style codebases uses negative slope 0.2.
LEAKY_SLOPE = 0.2


def _make_block_kernel(L, G, Wp, Cin, Cout):
    """Fused residual-block kernel for one image (static sizes).

    L  : flattened padded-grid positions per image = (H+2) * (W+2)
    G  : guard rows around the staged activation (>= Wp + 1, 16-aligned)
    Wp : padded width (W + 2) -> flat-row stride of the padded grid
    """
    # Flat-row shift of tap (dy, dx) of a 3x3 window, dy/dx in {0, 1, 2}.
    shifts = [(dy - 1) * Wp + (dx - 1) for dy in range(3) for dx in range(3)]

    def kernel(xcol_ref, m_ref, w01_ref, b01_ref, w2_ref, b2_ref,
               out_ref, apad_ref):
        # ---- fused conv1 + skip conv: single MXU matmul, contraction 9*Cin.
        y01 = jnp.dot(xcol_ref[...], w01_ref[...],
                      preferred_element_type=jnp.float32) + b01_ref[...]
        y1 = y01[:, :Cout]        # conv path (pre-activation)
        y0 = y01[:, Cout:]        # skip path

        # Leaky ReLU; the interior mask zeroes the padded-border ring so it
        # acts as the 'same' zero padding for the second conv (required!).
        a = jnp.where(y1 >= 0, y1, LEAKY_SLOPE * y1) * m_ref[...]
        a = a.astype(jnp.bfloat16)

        # Stage the padded activation; zero ONLY the guard rows (cheap),
        # the interior border rows are already zeroed by the mask above.
        apad_ref[pl.ds(0, G), :] = jnp.zeros((G, Cout), jnp.bfloat16)
        apad_ref[pl.ds(G + L, G), :] = jnp.zeros((G, Cout), jnp.bfloat16)
        apad_ref[pl.ds(G, L), :] = a

        # ---- down_conv (main path); residual add folded into the accumulator.
        acc = y0 + b2_ref[...]
        for k, s in enumerate(shifts):
            tap = apad_ref[pl.ds(G + s, L), :]              # (L, Cout) bf16
            wk = w2_ref[pl.ds(k * Cout, Cout), :]           # (Cout, Cout) bf16
            acc = acc + jnp.dot(tap, wk, preferred_element_type=jnp.float32)

        # Border-ring rows hold garbage but are sliced away by the wrapper,
        # so no output mask is needed.
        out_ref[...] = acc

    return kernel


@jax.jit
def scaled_block_forward(x, params):
    """x: (N, Cin, H, W) float32 -> (N, Cout, H, W) float32."""
    N, Cin, H, W = x.shape
    Cout = params["w_conv"].shape[-1]
    Hp, Wp = H + 2, W + 2
    L = Hp * Wp                          # flattened padded grid per image
    G = -(-(Wp + 1) // 16) * 16          # guard rows, 16-aligned (bf16 tile)

    # Equalized learning-rate scales: sqrt(2 / (kh*kw*in_channels)).
    s_conv = math.sqrt(2.0 / (9 * Cin))
    s_down = math.sqrt(2.0 / (9 * Cout))
    s_skip = math.sqrt(2.0 / (9 * Cin))

    # ---- layout plumbing (stays in the jitted wrapper / XLA) ----
    # NCHW -> NHWC, pad spatially by 2 (ring 1 for the padded output grid +
    # ring 1 for the 3x3 taps) and build an im2col slab over the Hp x Wp grid
    # with taps stacked in (dy, dx, cin) order to match the weight reshape.
    x_nhwc = jnp.transpose(x, (0, 2, 3, 1)).astype(jnp.float32)
    x_pad2 = jnp.pad(x_nhwc, ((0, 0), (2, 2), (2, 2), (0, 0)))
    taps = [x_pad2[:, dy:dy + Hp, dx:dx + Wp, :]
            for dy in range(3) for dx in range(3)]
    xcol = jnp.concatenate(taps, axis=-1).reshape(N, L, 9 * Cin)
    xcol = xcol.astype(jnp.bfloat16)

    # Interior mask over the flattened padded grid (fetched once: constant
    # index_map, so it is not a per-image HBM stream).
    hh = jnp.arange(Hp)
    ww = jnp.arange(Wp)
    m2d = ((hh[:, None] >= 1) & (hh[:, None] <= Hp - 2)
           & (ww[None, :] >= 1) & (ww[None, :] <= Wp - 2)).astype(jnp.float32)
    mask = m2d.reshape(1, L, 1)

    # Weights: fold the equalized-LR scale in, fuse conv1 + skip along the
    # output-channel axis, cast MXU operands to bf16.
    w1 = (params["w_conv"] * s_conv).reshape(9 * Cin, Cout)
    w0 = (params["w_down0"] * s_skip).reshape(9 * Cin, Cout)
    w01 = jnp.concatenate([w1, w0], axis=-1).astype(jnp.bfloat16)   # (9Cin,2Cout)
    b01 = jnp.concatenate([params["b_conv"], params["b_down0"]])
    b01 = b01.reshape(1, 2 * Cout).astype(jnp.float32)
    w2 = (params["w_down"] * s_down).reshape(9 * Cout, Cout).astype(jnp.bfloat16)
    b2 = params["b_down"].reshape(1, Cout).astype(jnp.float32)

    kernel = _make_block_kernel(L, G, Wp, Cin, Cout)

    out_flat = pl.pallas_call(
        kernel,
        out_shape=jax.ShapeDtypeStruct((N, L, Cout), jnp.float32),
        grid=(N,),
        in_specs=[
            pl.BlockSpec((None, L, 9 * Cin), lambda n: (n, 0, 0)),  # per-image
            pl.BlockSpec((None, L, 1), lambda n: (0, 0, 0)),        # mask (resident)
            pl.BlockSpec((9 * Cin, 2 * Cout), lambda n: (0, 0)),    # fused w (resident)
            pl.BlockSpec((1, 2 * Cout), lambda n: (0, 0)),
            pl.BlockSpec((9 * Cout, Cout), lambda n: (0, 0)),
            pl.BlockSpec((1, Cout), lambda n: (0, 0)),
        ],
        out_specs=pl.BlockSpec((None, L, Cout), lambda n: (n, 0, 0)),
        scratch_shapes=[pltpu.VMEM((L + 2 * G, Cout), jnp.bfloat16)],
        compiler_params=pltpu.CompilerParams(
            dimension_semantics=("parallel",),     # v7x: 2 TCs split the batch
            vmem_limit_bytes=32 * 1024 * 1024,     # fits v5e/v6e/v7x budgets
        ),
    )(xcol, mask, w01, b01, w2, b2)

    out = out_flat.reshape(N, Hp, Wp, Cout)[:, 1:-1, 1:-1, :]
    return jnp.transpose(out, (0, 3, 1, 2))


# ---------------------------------------------------------------------------
# Pure-JAX reference (mirrors the PyTorch forward for the default config).
# ---------------------------------------------------------------------------
def _ref_scaled_conv(x, w_hwio, b, scale):
    y = lax.conv_general_dilated(
        x, w_hwio, window_strides=(1, 1), padding="SAME",
        dimension_numbers=("NCHW", "HWIO", "NCHW"))
    return y * scale + b.reshape(1, -1, 1, 1)


def _reference_forward(x, params):
    Cin = x.shape[1]
    Cout = params["w_conv"].shape[-1]
    s_conv = math.sqrt(2.0 / (9 * Cin))
    s_down = math.sqrt(2.0 / (9 * Cout))
    s_skip = math.sqrt(2.0 / (9 * Cin))
    y = _ref_scaled_conv(x, params["w_conv"], params["b_conv"], s_conv)
    a = jnp.where(y >= 0, y, LEAKY_SLOPE * y)
    # strides=(1,1) => Upsample(scale_factor=1, 'nearest') is the identity.
    y2 = _ref_scaled_conv(a, params["w_down"], params["b_down"], s_down)
    y0 = _ref_scaled_conv(x, params["w_down0"], params["b_down0"], s_skip)
    return y0 + y2


if __name__ == "__main__":
    key = jax.random.PRNGKey(0)
    kx, k1, k2, k3, kb1, kb2, kb3 = jax.random.split(key, 7)

    N, Cin, Cout, H, W = 2, 4, 8, 16, 16
    x = jax.random.normal(kx, (N, Cin, H, W), dtype=jnp.float32)
    params = {
        "w_conv":  jax.random.normal(k1, (3, 3, Cin, Cout), jnp.float32),
        "b_conv":  0.1 * jax.random.normal(kb1, (Cout,), jnp.float32),
        "w_down":  jax.random.normal(k2, (3, 3, Cout, Cout), jnp.float32),
        "b_down":  0.1 * jax.random.normal(kb2, (Cout,), jnp.float32),
        "w_down0": jax.random.normal(k3, (3, 3, Cin, Cout), jnp.float32),
        "b_down0": 0.1 * jax.random.normal(kb3, (Cout,), jnp.float32),
    }

    out = jax.block_until_ready(scaled_block_forward(x, params))
    ref = jax.block_until_ready(_reference_forward(x, params))

    assert out.shape == (N, Cout, H, W), out.shape
    np.testing.assert_allclose(np.asarray(out), np.asarray(ref),
                               rtol=5e-2, atol=5e-2)

    # TODO(synk): nearest-neighbor Upsample for strides != (1,1) (pooling='avg'
    # with spatial rescaling) is not implemented; the module's default
    # strides=(1,1) make those layers the identity.
    # TODO(synk): for very large Cin * spatial (where the per-image im2col slab
    # would not fit VMEM) a row-block grid with a 1-row halo would be needed.
    print("KERNEL_OK")
</pallas_src>

<mosaic_0001>
module attributes {stable_mosaic.version = 11 : i64} {
  func.func @kernel(%arg0: i32, %arg1: memref<1x324x36xbf16, #tpu.memory_space<vmem>>, %arg2: memref<1x324x1xf32, #tpu.memory_space<vmem>>, %arg3: memref<36x16xbf16, #tpu.memory_space<vmem>>, %arg4: memref<1x16xf32, #tpu.memory_space<vmem>>, %arg5: memref<72x8xbf16, #tpu.memory_space<vmem>>, %arg6: memref<1x8xf32, #tpu.memory_space<vmem>>, %arg7: memref<1x324x8xf32, #tpu.memory_space<vmem>>, %arg8: memref<388x8xbf16, #tpu.memory_space<vmem>>) attributes {dimension_semantics = [#tpu.dimension_semantics<parallel>], iteration_bounds = array<i64: 2>, scalar_prefetch = 0 : i64, scratch_operands = 1 : i64, tpu.core_type = #tpu.core_type<tc>, window_params = [{transform_indices = @transform_0, window_bounds = array<i64: 1, 324, 36>}, {pipeline_mode = #tpu.pipeline_mode<synchronous>, transform_indices = @transform_1, window_bounds = array<i64: 1, 324, 1>}, {pipeline_mode = #tpu.pipeline_mode<synchronous>, transform_indices = @transform_2, window_bounds = array<i64: 36, 16>}, {pipeline_mode = #tpu.pipeline_mode<synchronous>, transform_indices = @transform_3, window_bounds = array<i64: 1, 16>}, {pipeline_mode = #tpu.pipeline_mode<synchronous>, transform_indices = @transform_4, window_bounds = array<i64: 72, 8>}, {pipeline_mode = #tpu.pipeline_mode<synchronous>, transform_indices = @transform_5, window_bounds = array<i64: 1, 8>}, {transform_indices = @transform_6, window_bounds = array<i64: 1, 324, 8>}]} {
    %c0 = arith.constant 0 : index
    %c0_0 = arith.constant 0 : index
    %c0_1 = arith.constant 0 : index
    %0 = vector.load %arg1[%c0, %c0_0, %c0_1] : memref<1x324x36xbf16, #tpu.memory_space<vmem>>, vector<1x324x36xbf16>
    %1 = vector.shape_cast %0 : vector<1x324x36xbf16> to vector<324x36xbf16>
    %c0_2 = arith.constant 0 : index
    %c0_3 = arith.constant 0 : index
    %2 = vector.load %arg3[%c0_2, %c0_3] : memref<36x16xbf16, #tpu.memory_space<vmem>>, vector<36x16xbf16>
    %cst = arith.constant dense<0.000000e+00> : vector<324x16xf32>
    %3 = tpu.matmul %1, %2, %cst {dimension_numbers = #tpu.dot_dimension_numbers<[1], [0], [0], [1], [0, 0, 1, 1], [], []>} : vector<324x36xbf16>, vector<36x16xbf16>, vector<324x16xf32> -> vector<324x16xf32>
    %c0_4 = arith.constant 0 : index
    %c0_5 = arith.constant 0 : index
    %4 = vector.load %arg4[%c0_4, %c0_5] : memref<1x16xf32, #tpu.memory_space<vmem>>, vector<1x16xf32>
    %5 = vector.broadcast %4 : vector<1x16xf32> to vector<324x16xf32>
    %6 = arith.addf %3, %5 : vector<324x16xf32>
    %7 = vector.extract_strided_slice %6 {offsets = [0, 0], sizes = [324, 8], strides = [1, 1]} : vector<324x16xf32> to vector<324x8xf32>
    %8 = vector.extract_strided_slice %6 {offsets = [0, 8], sizes = [324, 8], strides = [1, 1]} : vector<324x16xf32> to vector<324x8xf32>
    %cst_6 = arith.constant 0.000000e+00 : f32
    %9 = vector.broadcast %cst_6 : f32 to vector<324x8xf32>
    %10 = arith.cmpf oge, %7, %9 : vector<324x8xf32>
    %cst_7 = arith.constant 2.000000e-01 : f32
    %11 = vector.broadcast %cst_7 : f32 to vector<324x8xf32>
    %12 = arith.mulf %11, %7 : vector<324x8xf32>
    %13 = arith.select %10, %7, %12 : vector<324x8xi1>, vector<324x8xf32>
    %c0_8 = arith.constant 0 : index
    %c0_9 = arith.constant 0 : index
    %c0_10 = arith.constant 0 : index
    %14 = vector.load %arg2[%c0_8, %c0_9, %c0_10] : memref<1x324x1xf32, #tpu.memory_space<vmem>>, vector<1x324x1xf32>
    %15 = vector.shape_cast %14 : vector<1x324x1xf32> to vector<324x1xf32>
    %16 = vector.broadcast %15 : vector<324x1xf32> to vector<324x8xf32>
    %17 = arith.mulf %13, %16 : vector<324x8xf32>
    %18 = arith.truncf %17 : vector<324x8xf32> to vector<324x8xbf16>
    %cst_11 = arith.constant 0.000000e+00 : bf16
    %19 = vector.broadcast %cst_11 : bf16 to vector<32x8xbf16>
    %c0_12 = arith.constant 0 : index
    %c0_13 = arith.constant 0 : index
    %20 = vector.load %arg8[%c0_12, %c0_13] : memref<388x8xbf16, #tpu.memory_space<vmem>>, vector<32x8xbf16>
    tpu.vector_store %arg8[%c0_12, %c0_13], %19 {strides = array<i32>} : memref<388x8xbf16, #tpu.memory_space<vmem>>, vector<32x8xbf16>,
    %cst_14 = arith.constant 0.000000e+00 : bf16
    %21 = vector.broadcast %cst_14 : bf16 to vector<32x8xbf16>
    %c356 = arith.constant 356 : index
    %c0_15 = arith.constant 0 : index
    %22 = vector.load %arg8[%c356, %c0_15] : memref<388x8xbf16, #tpu.memory_space<vmem>>, vector<32x8xbf16>
    tpu.vector_store %arg8[%c356, %c0_15], %21 {strides = array<i32>} : memref<388x8xbf16, #tpu.memory_space<vmem>>, vector<32x8xbf16>,
    %c32 = arith.constant 32 : index
    %c0_16 = arith.constant 0 : index
    %23 = vector.load %arg8[%c32, %c0_16] : memref<388x8xbf16, #tpu.memory_space<vmem>>, vector<324x8xbf16>
    tpu.vector_store %arg8[%c32, %c0_16], %18 {strides = array<i32>} : memref<388x8xbf16, #tpu.memory_space<vmem>>, vector<324x8xbf16>,
    %c0_17 = arith.constant 0 : index
    %c0_18 = arith.constant 0 : index
    %24 = vector.load %arg6[%c0_17, %c0_18] : memref<1x8xf32, #tpu.memory_space<vmem>>, vector<1x8xf32>
    %25 = vector.broadcast %24 : vector<1x8xf32> to vector<324x8xf32>
    %26 = arith.addf %8, %25 : vector<324x8xf32>
    %c13 = arith.constant 13 : index
    %c0_19 = arith.constant 0 : index
    %27 = vector.load %arg8[%c13, %c0_19] : memref<388x8xbf16, #tpu.memory_space<vmem>>, vector<324x8xbf16>
    %c0_20 = arith.constant 0 : index
    %c0_21 = arith.constant 0 : index
    %28 = vector.load %arg5[%c0_20, %c0_21] : memref<72x8xbf16, #tpu.memory_space<vmem>>, vector<8x8xbf16>
    %cst_22 = arith.constant dense<0.000000e+00> : vector<324x8xf32>
    %29 = tpu.matmul %27, %28, %cst_22 {dimension_numbers = #tpu.dot_dimension_numbers<[1], [0], [0], [1], [0, 0, 1, 1], [], []>} : vector<324x8xbf16>, vector<8x8xbf16>, vector<324x8xf32> -> vector<324x8xf32>
    %30 = arith.addf %26, %29 : vector<324x8xf32>
    %c14 = arith.constant 14 : index
    %c0_23 = arith.constant 0 : index
    %31 = vector.load %arg8[%c14, %c0_23] : memref<388x8xbf16, #tpu.memory_space<vmem>>, vector<324x8xbf16>
    %c8 = arith.constant 8 : index
    %c0_24 = arith.constant 0 : index
    %32 = vector.load %arg5[%c8, %c0_24] : memref<72x8xbf16, #tpu.memory_space<vmem>>, vector<8x8xbf16>
    %cst_25 = arith.constant dense<0.000000e+00> : vector<324x8xf32>
    %33 = tpu.matmul %31, %32, %cst_25 {dimension_numbers = #tpu.dot_dimension_numbers<[1], [0], [0], [1], [0, 0, 1, 1], [], []>} : vector<324x8xbf16>, vector<8x8xbf16>, vector<324x8xf32> -> vector<324x8xf32>
    %34 = arith.addf %30, %33 : vector<324x8xf32>
    %c15 = arith.constant 15 : index
    %c0_26 = arith.constant 0 : index
    %35 = vector.load %arg8[%c15, %c0_26] : memref<388x8xbf16, #tpu.memory_space<vmem>>, vector<324x8xbf16>
    %c16 = arith.constant 16 : index
    %c0_27 = arith.constant 0 : index
    %36 = vector.load %arg5[%c16, %c0_27] : memref<72x8xbf16, #tpu.memory_space<vmem>>, vector<8x8xbf16>
    %cst_28 = arith.constant dense<0.000000e+00> : vector<324x8xf32>
    %37 = tpu.matmul %35, %36, %cst_28 {dimension_numbers = #tpu.dot_dimension_numbers<[1], [0], [0], [1], [0, 0, 1, 1], [], []>} : vector<324x8xbf16>, vector<8x8xbf16>, vector<324x8xf32> -> vector<324x8xf32>
    %38 = arith.addf %34, %37 : vector<324x8xf32>
    %c31 = arith.constant 31 : index
    %c0_29 = arith.constant 0 : index
    %39 = vector.load %arg8[%c31, %c0_29] : memref<388x8xbf16, #tpu.memory_space<vmem>>, vector<324x8xbf16>
    %c24 = arith.constant 24 : index
    %c0_30 = arith.constant 0 : index
    %40 = vector.load %arg5[%c24, %c0_30] : memref<72x8xbf16, #tpu.memory_space<vmem>>, vector<8x8xbf16>
    %cst_31 = arith.constant dense<0.000000e+00> : vector<324x8xf32>
    %41 = tpu.matmul %39, %40, %cst_31 {dimension_numbers = #tpu.dot_dimension_numbers<[1], [0], [0], [1], [0, 0, 1, 1], [], []>} : vector<324x8xbf16>, vector<8x8xbf16>, vector<324x8xf32> -> vector<324x8xf32>
    %42 = arith.addf %38, %41 : vector<324x8xf32>
    %c32_32 = arith.constant 32 : index
    %c0_33 = arith.constant 0 : index
    %43 = vector.load %arg8[%c32_32, %c0_33] : memref<388x8xbf16, #tpu.memory_space<vmem>>, vector<324x8xbf16>
    %c32_34 = arith.constant 32 : index
    %c0_35 = arith.constant 0 : index
    %44 = vector.load %arg5[%c32_34, %c0_35] : memref<72x8xbf16, #tpu.memory_space<vmem>>, vector<8x8xbf16>
    %cst_36 = arith.constant dense<0.000000e+00> : vector<324x8xf32>
    %45 = tpu.matmul %43, %44, %cst_36 {dimension_numbers = #tpu.dot_dimension_numbers<[1], [0], [0], [1], [0, 0, 1, 1], [], []>} : vector<324x8xbf16>, vector<8x8xbf16>, vector<324x8xf32> -> vector<324x8xf32>
    %46 = arith.addf %42, %45 : vector<324x8xf32>
    %c33 = arith.constant 33 : index
    %c0_37 = arith.constant 0 : index
    %47 = vector.load %arg8[%c33, %c0_37] : memref<388x8xbf16, #tpu.memory_space<vmem>>, vector<324x8xbf16>
    %c40 = arith.constant 40 : index
    %c0_38 = arith.constant 0 : index
    %48 = vector.load %arg5[%c40, %c0_38] : memref<72x8xbf16, #tpu.memory_space<vmem>>, vector<8x8xbf16>
    %cst_39 = arith.constant dense<0.000000e+00> : vector<324x8xf32>
    %49 = tpu.matmul %47, %48, %cst_39 {dimension_numbers = #tpu.dot_dimension_numbers<[1], [0], [0], [1], [0, 0, 1, 1], [], []>} : vector<324x8xbf16>, vector<8x8xbf16>, vector<324x8xf32> -> vector<324x8xf32>
    %50 = arith.addf %46, %49 : vector<324x8xf32>
    %c49 = arith.constant 49 : index
    %c0_40 = arith.constant 0 : index
    %51 = vector.load %arg8[%c49, %c0_40] : memref<388x8xbf16, #tpu.memory_space<vmem>>, vector<324x8xbf16>
    %c48 = arith.constant 48 : index
    %c0_41 = arith.constant 0 : index
    %52 = vector.load %arg5[%c48, %c0_41] : memref<72x8xbf16, #tpu.memory_space<vmem>>, vector<8x8xbf16>
    %cst_42 = arith.constant dense<0.000000e+00> : vector<324x8xf32>
    %53 = tpu.matmul %51, %52, %cst_42 {dimension_numbers = #tpu.dot_dimension_numbers<[1], [0], [0], [1], [0, 0, 1, 1], [], []>} : vector<324x8xbf16>, vector<8x8xbf16>, vector<324x8xf32> -> vector<324x8xf32>
    %54 = arith.addf %50, %53 : vector<324x8xf32>
    %c50 = arith.constant 50 : index
    %c0_43 = arith.constant 0 : index
    %55 = vector.load %arg8[%c50, %c0_43] : memref<388x8xbf16, #tpu.memory_space<vmem>>, vector<324x8xbf16>
    %c56 = arith.constant 56 : index
    %c0_44 = arith.constant 0 : index
    %56 = vector.load %arg5[%c56, %c0_44] : memref<72x8xbf16, #tpu.memory_space<vmem>>, vector<8x8xbf16>
    %cst_45 = arith.constant dense<0.000000e+00> : vector<324x8xf32>
    %57 = tpu.matmul %55, %56, %cst_45 {dimension_numbers = #tpu.dot_dimension_numbers<[1], [0], [0], [1], [0, 0, 1, 1], [], []>} : vector<324x8xbf16>, vector<8x8xbf16>, vector<324x8xf32> -> vector<324x8xf32>
    %58 = arith.addf %54, %57 : vector<324x8xf32>
    %c51 = arith.constant 51 : index
    %c0_46 = arith.constant 0 : index
    %59 = vector.load %arg8[%c51, %c0_46] : memref<388x8xbf16, #tpu.memory_space<vmem>>, vector<324x8xbf16>
    %c64 = arith.constant 64 : index
    %c0_47 = arith.constant 0 : index
    %60 = vector.load %arg5[%c64, %c0_47] : memref<72x8xbf16, #tpu.memory_space<vmem>>, vector<8x8xbf16>
    %cst_48 = arith.constant dense<0.000000e+00> : vector<324x8xf32>
    %61 = tpu.matmul %59, %60, %cst_48 {dimension_numbers = #tpu.dot_dimension_numbers<[1], [0], [0], [1], [0, 0, 1, 1], [], []>} : vector<324x8xbf16>, vector<8x8xbf16>, vector<324x8xf32> -> vector<324x8xf32>
    %62 = arith.addf %58, %61 : vector<324x8xf32>
    %c0_49 = arith.constant 0 : index
    %c0_50 = arith.constant 0 : index
    %c0_51 = arith.constant 0 : index
    %63 = vector.load %arg7[%c0_49, %c0_50, %c0_51] : memref<1x324x8xf32, #tpu.memory_space<vmem>>, vector<1x324x8xf32>
    %64 = vector.shape_cast %63 : vector<1x324x8xf32> to vector<324x8xf32>
    %65 = vector.shape_cast %62 : vector<324x8xf32> to vector<1x324x8xf32>
    tpu.vector_store %arg7[%c0_49, %c0_50, %c0_51], %65 {strides = array<i32>} : memref<1x324x8xf32, #tpu.memory_space<vmem>>, vector<1x324x8xf32>,
    return
  }
  func.func @transform_0(%arg0: i32) -> (i32, i32, i32) {
    %c0_i32 = arith.constant 0 : i32
    %c0_i32_0 = arith.constant 0 : i32
    %c0_i32_1 = arith.constant 0 : i32
    return %arg0, %c0_i32, %c0_i32_0 : i32, i32, i32
  }
  func.func @transform_1(%arg0: i32) -> (i32, i32, i32) {
    %c0_i32 = arith.constant 0 : i32
    %c0_i32_0 = arith.constant 0 : i32
    %c0_i32_1 = arith.constant 0 : i32
    %c0_i32_2 = arith.constant 0 : i32
    return %c0_i32, %c0_i32_0, %c0_i32_1 : i32, i32, i32
  }
  func.func @transform_2(%arg0: i32) -> (i32, i32) {
    %c0_i32 = arith.constant 0 : i32
    %c0_i32_0 = arith.constant 0 : i32
    %c0_i32_1 = arith.constant 0 : i32
    return %c0_i32, %c0_i32_0 : i32, i32
  }
  func.func @transform_3(%arg0: i32) -> (i32, i32) {
    %c0_i32 = arith.constant 0 : i32
    %c0_i32_0 = arith.constant 0 : i32
    %c0_i32_1 = arith.constant 0 : i32
    return %c0_i32, %c0_i32_0 : i32, i32
  }
  func.func @transform_4(%arg0: i32) -> (i32, i32) {
    %c0_i32 = arith.constant 0 : i32
    %c0_i32_0 = arith.constant 0 : i32
    %c0_i32_1 = arith.constant 0 : i32
    return %c0_i32, %c0_i32_0 : i32, i32
  }
  func.func @transform_5(%arg0: i32) -> (i32, i32) {
    %c0_i32 = arith.constant 0 : i32
    %c0_i32_0 = arith.constant 0 : i32
    %c0_i32_1 = arith.constant 0 : i32
    return %c0_i32, %c0_i32_0 : i32, i32
  }
  func.func @transform_6(%arg0: i32) -> (i32, i32, i32) {
    %c0_i32 = arith.constant 0 : i32
    %c0_i32_0 = arith.constant 0 : i32
    %c0_i32_1 = arith.constant 0 : i32
    return %arg0, %c0_i32, %c0_i32_0 : i32, i32, i32
  }
}

</mosaic_0001>

<llo_original>
// kernel: scaled_block_forward.1
$region0: #{scaled_block_forward.1}
  #allocation0 [shape = 'u32[]', space=smem, size = 0x4, offset = 0x4, fixed_abs, tag = 'smem constant byte address 0x4 - core index']
  #allocation1 [shape = 'u32[144,128]{1,0:T(1,128)}', space=vmem, size = 0x12000, scoped, tag = 'internal scratch']
  #allocation2 [shape = 'bf16[388,8]{1,0:T(8,128)(2,1)}', space=vmem, size = 0x18800, scoped, tag = 'scratch operand']
  %s0 = inlined_call_operand.vmem [shape: bf16[2,324,36], index: 0, kind: input, shape index: {}]
  %s1 = inlined_call_operand.vmem [shape: f32[1,324,1], index: 1, kind: input, shape index: {}]
  %s2 = inlined_call_operand.vmem [shape: bf16[36,16], index: 2, kind: input, shape index: {}]
  %s3 = inlined_call_operand.vmem [shape: f32[1,16], index: 3, kind: input, shape index: {}]
  %s4 = inlined_call_operand.vmem [shape: bf16[72,8], index: 4, kind: input, shape index: {}]
  %s5 = inlined_call_operand.vmem [shape: f32[1,8], index: 5, kind: input, shape index: {}]
  %s6 = inlined_call_operand.vmem [shape: f32[2,324,8], index: 6, kind: output, shape index: {}]
  %s7 = sld [smem:[#allocation0]]
  $region57: #{scaled_block_forward.1} parent=0
    _
  %s9 = ssub.s32 1, %s7
  %s10 = scalar_select 0, %s9, %s7
  loop: start=0, step=1, limit=4
  $region2: #{scaled_block_forward.1} parent=0 // loop_pre_header
    _
  $region3: #{scaled_block_forward.1} parent=0 // loop_header
    %s12 = sphi 0, %s16
    %p13 = scmp.ge.s32.totalorder %s12, 4
    %s22 = sphi 0, %s24
    %s25 = sphi 0, %s22
    %s26 = sphi 0, %s25
    %s42 = sphi 0, %s26
    %s46 = sphi 0, %s46
    %s48 = sphi 0, %s46
    %s49 = sphi 0, %s48
    %s63 = sphi 0, %s49
    %s67 = sphi 0, %s67
    %s69 = sphi 0, %s67
    %s70 = sphi 0, %s69
    %s84 = sphi 0, %s70
    %s88 = sphi 0, %s88
    %s90 = sphi 0, %s88
    %s91 = sphi 0, %s90
    %s105 = sphi 0, %s91
    %s109 = sphi 0, %s109
    %s111 = sphi 0, %s109
    %s112 = sphi 0, %s111
    %s126 = sphi 0, %s112
    %s130 = sphi 0, %s130
    %s132 = sphi 0, %s130
    %s133 = sphi 0, %s132
    %s147 = sphi 0, %s133
    %s153 = sphi 0, %s155
    %s156 = sphi 0, %s153
    %s157 = sphi 0, %s156
    %s173 = sphi 0, %s157
  $region4: #{scaled_block_forward.1} parent=0 // loop_header_branch
    %15 = sbr.rel (%p13) target = $region8
  $region5: #{scaled_block_forward.1} parent=0 // loop_body
    %s17 = ssub.s32 %s12, 1
    %s18 = ssub.s32 %s12, 2
    %s19 = sadd.s32 %s12, 1
    %s20 = ssub.s32 %s12, %s19
    %p21 = scmp.eq.s32.totalorder %s20, 0
    %s23 = sadd.s32 %s22, 1
    %s24 = scalar_select %p21, %s22, %s23
    %p27 = pneg %p21
    %p28 = scmp.eq.s32.totalorder %s12, 1
    %p29 = por %p27, %p28
    %p30 = scmp.ne.s32.totalorder %s22, %s25
    %p31 = scmp.eq.s32.totalorder %s12, 0
    %p32 = por %p30, %p31
    %p33 = scmp.ne.s32.totalorder %s22, %s25
    %p34 = scmp.eq.s32.totalorder %s17, 1
    %p35 = por %p33, %p34
    %p36 = scmp.ne.s32.totalorder %s25, %s26
    %p37 = scmp.eq.s32.totalorder %s17, 0
    %p38 = por %p36, %p37
    %p39 = scmp.ne.s32.totalorder %s25, %s26
    %p40 = scmp.eq.s32.totalorder %s18, 1
    %p41 = por %p39, %p40
    %p43 = scmp.ne.s32.totalorder %s26, %s42
    %p44 = scmp.eq.s32.totalorder %s18, 0
    %p45 = por %p43, %p44
    %s47 = sadd.s32 %s46, 1
    %p50 = scmp.eq.s32.totalorder %s12, 1
    %p51 = scmp.ne.s32.totalorder %s46, %s48
    %p52 = scmp.eq.s32.totalorder %s12, 0
    %p53 = por %p51, %p52
    %p54 = scmp.ne.s32.totalorder %s46, %s48
    %p55 = scmp.eq.s32.totalorder %s17, 1
    %p56 = por %p54, %p55
    %p57 = scmp.ne.s32.totalorder %s48, %s49
    %p58 = scmp.eq.s32.totalorder %s17, 0
    %p59 = por %p57, %p58
    %p60 = scmp.ne.s32.totalorder %s48, %s49
    %p61 = scmp.eq.s32.totalorder %s18, 1
    %p62 = por %p60, %p61
    %p64 = scmp.ne.s32.totalorder %s49, %s63
    %p65 = scmp.eq.s32.totalorder %s18, 0
    %p66 = por %p64, %p65
    %s68 = sadd.s32 %s67, 1
    %p71 = scmp.eq.s32.totalorder %s12, 1
    %p72 = scmp.ne.s32.totalorder %s67, %s69
    %p73 = scmp.eq.s32.totalorder %s12, 0
    %p74 = por %p72, %p73
    %p75 = scmp.ne.s32.totalorder %s67, %s69
    %p76 = scmp.eq.s32.totalorder %s17, 1
    %p77 = por %p75, %p76
    %p78 = scmp.ne.s32.totalorder %s69, %s70
    %p79 = scmp.eq.s32.totalorder %s17, 0
    %p80 = por %p78, %p79
    %p81 = scmp.ne.s32.totalorder %s69, %s70
    %p82 = scmp.eq.s32.totalorder %s18, 1
    %p83 = por %p81, %p82
    %p85 = scmp.ne.s32.totalorder %s70, %s84
    %p86 = scmp.eq.s32.totalorder %s18, 0
    %p87 = por %p85, %p86
    %s89 = sadd.s32 %s88, 1
    %p92 = scmp.eq.s32.totalorder %s12, 1
    %p93 = scmp.ne.s32.totalorder %s88, %s90
    %p94 = scmp.eq.s32.totalorder %s12, 0
    %p95 = por %p93, %p94
    %p96 = scmp.ne.s32.totalorder %s88, %s90
    %p97 = scmp.eq.s32.totalorder %s17, 1
    %p98 = por %p96, %p97
    %p99 = scmp.ne.s32.totalorder %s90, %s91
    %p100 = scmp.eq.s32.totalorder %s17, 0
    %p101 = por %p99, %p100
    %p102 = scmp.ne.s32.totalorder %s90, %s91
    %p103 = scmp.eq.s32.totalorder %s18, 1
    %p104 = por %p102, %p103
    %p106 = scmp.ne.s32.totalorder %s91, %s105
    %p107 = scmp.eq.s32.totalorder %s18, 0
    %p108 = por %p106, %p107
    %s110 = sadd.s32 %s109, 1
    %p113 = scmp.eq.s32.totalorder %s12, 1
    %p114 = scmp.ne.s32.totalorder %s109, %s111
    %p115 = scmp.eq.s32.totalorder %s12, 0
    %p116 = por %p114, %p115
    %p117 = scmp.ne.s32.totalorder %s109, %s111
    %p118 = scmp.eq.s32.totalorder %s17, 1
    %p119 = por %p117, %p118
    %p120 = scmp.ne.s32.totalorder %s111, %s112
    %p121 = scmp.eq.s32.totalorder %s17, 0
    %p122 = por %p120, %p121
    %p123 = scmp.ne.s32.totalorder %s111, %s112
    %p124 = scmp.eq.s32.totalorder %s18, 1
    %p125 = por %p123, %p124
    %p127 = scmp.ne.s32.totalorder %s112, %s126
    %p128 = scmp.eq.s32.totalorder %s18, 0
    %p129 = por %p127, %p128
    %s131 = sadd.s32 %s130, 1
    %p134 = scmp.eq.s32.totalorder %s12, 1
    %p135 = scmp.ne.s32.totalorder %s130, %s132
    %p136 = scmp.eq.s32.totalorder %s12, 0
    %p137 = por %p135, %p136
    %p138 = scmp.ne.s32.totalorder %s130, %s132
    %p139 = scmp.eq.s32.totalorder %s17, 1
    %p140 = por %p138, %p139
    %p141 = scmp.ne.s32.totalorder %s132, %s133
    %p142 = scmp.eq.s32.totalorder %s17, 0
    %p143 = por %p141, %p142
    %p144 = scmp.ne.s32.totalorder %s132, %s133
    %p145 = scmp.eq.s32.totalorder %s18, 1
    %p146 = por %p144, %p145
    %p148 = scmp.ne.s32.totalorder %s133, %s147
    %p149 = scmp.eq.s32.totalorder %s18, 0
    %p150 = por %p148, %p149
    %s151 = ssub.s32 %s12, %s19
    %p152 = scmp.eq.s32.totalorder %s151, 0
    %s154 = sadd.s32 %s153, 1
    %s155 = scalar_select %p152, %s153, %s154
    %p158 = pneg %p152
    %p159 = scmp.eq.s32.totalorder %s12, 1
    %p160 = por %p158, %p159
    %p161 = scmp.ne.s32.totalorder %s153, %s156
    %p162 = scmp.eq.s32.totalorder %s12, 0
    %p163 = por %p161, %p162
    %p164 = scmp.ne.s32.totalorder %s153, %s156
    %p165 = scmp.eq.s32.totalorder %s17, 1
    %p166 = por %p164, %p165
    %p167 = scmp.ne.s32.totalorder %s156, %s157
    %p168 = scmp.eq.s32.totalorder %s17, 0
    %p169 = por %p167, %p168
    %p170 = scmp.ne.s32.totalorder %s156, %s157
    %p171 = scmp.eq.s32.totalorder %s18, 1
    %p172 = por %p170, %p171
    %p174 = scmp.ne.s32.totalorder %s157, %s173
    %p175 = scmp.eq.s32.totalorder %s18, 0
    %p176 = por %p174, %p175
    %p177 = scmp.le.s32.totalorder 1, %s12
    %p178 = scmp.lt.s32.totalorder %s12, 3
    %p179 = pnand %p177, %p178
    %p180 = pneg %p179
    // Predicated region
    $region9: #{scaled_block_forward.1} parent=5 // pred_check
      _
    $region10: #{scaled_block_forward.1} parent=5 // pred_check_branch
      %182 = sbr.rel (%p179) target = $region12
    $region11: #{scaled_block_forward.1} parent=5 // pred_region
      %s183 = ssub.s32 %s12, 1
      // Predicated region
      $region13: #{scaled_block_forward.1} parent=11 // pred_check
        %p184 = pneg %p59
      $region14: #{scaled_block_forward.1} parent=11 // pred_check_branch
        %186 = sbr.rel (%p184) target = $region16
      $region15: #{scaled_block_forward.1} parent=11 // pred_region
        _
      $region16: #{scaled_block_forward.1} parent=11 // pred_fallthru
        _
      // Predicated region
      $region17: #{scaled_block_forward.1} parent=11 // pred_check
        %p187 = pneg %p80
      $region18: #{scaled_block_forward.1} parent=11 // pred_check_branch
        %189 = sbr.rel (%p187) target = $region20
      $region19: #{scaled_block_forward.1} parent=11 // pred_region
        _
      $region20: #{scaled_block_forward.1} parent=11 // pred_fallthru
        _
      // Predicated region
      $region21: #{scaled_block_forward.1} parent=11 // pred_check
        %p190 = pneg %p101
      $region22: #{scaled_block_forward.1} parent=11 // pred_check_branch
        %192 = sbr.rel (%p190) target = $region24
      $region23: #{scaled_block_forward.1} parent=11 // pred_region
        _
      $region24: #{scaled_block_forward.1} parent=11 // pred_fallthru
        _
      // Predicated region
      $region25: #{scaled_block_forward.1} parent=11 // pred_check
        %p193 = pneg %p122
      $region26: #{scaled_block_forward.1} parent=11 // pred_check_branch
        %195 = sbr.rel (%p193) target = $region28
      $region27: #{scaled_block_forward.1} parent=11 // pred_region
        _
      $region28: #{scaled_block_forward.1} parent=11 // pred_fallthru
        _
      // Predicated region
      $region29: #{scaled_block_forward.1} parent=11 // pred_check
        %p196 = pneg %p143
      $region30: #{scaled_block_forward.1} parent=11 // pred_check_branch
        %198 = sbr.rel (%p196) target = $region32
      $region31: #{scaled_block_forward.1} parent=11 // pred_region
        _
      $region32: #{scaled_block_forward.1} parent=11 // pred_fallthru
        _
    $region12: #{scaled_block_forward.1} parent=5 // pred_fallthru
      _
    %p199 = scmp.lt.s32.totalorder %s12, 2
    // Predicated region
    $region33: #{scaled_block_forward.1} parent=5 // pred_check
      %p200 = pneg %p199
    $region34: #{scaled_block_forward.1} parent=5 // pred_check_branch
      %202 = sbr.rel (%p200) target = $region36
    $region35: #{scaled_block_forward.1} parent=5 // pred_region
      // Predicated region
      $region37: #{scaled_block_forward.1} parent=35 // pred_check
        %p203 = pneg %p32
      $region38: #{scaled_block_forward.1} parent=35 // pred_check_branch
        %205 = sbr.rel (%p203) target = $region40
      $region39: #{scaled_block_forward.1} parent=35 // pred_region
        %p206 = scmp.lt.s32.totalorder %s12, 1
        %s207 = scalar_select %p206, %s12, 1
        %s208 = smul.addr %s207, 41
        %s209 = smul.addr %s208, 4
        %s210 = scalar_lea.vmem %s0, %s209
      $region40: #{scaled_block_forward.1} parent=35 // pred_fallthru
        _
    $region36: #{scaled_block_forward.1} parent=5 // pred_fallthru
      _
    %p211 = scmp.le.s32.totalorder 1, %s12
    %p212 = scmp.lt.s32.totalorder %s12, 3
    %p213 = pnand %p211, %p212
    %p214 = pneg %p213
    // Predicated region
    $region41: #{scaled_block_forward.1} parent=5 // pred_check
      _
    $region42: #{scaled_block_forward.1} parent=5 // pred_check_branch
      %216 = sbr.rel (%p213) target = $region44
    $region43: #{scaled_block_forward.1} parent=5 // pred_region
      %s217 = ssub.s32 %s12, 1
      %p218 = scmp.lt.s32.totalorder %s17, 1
      %s219 = scalar_select %p218, %s17, 1
      %s220 = smul.addr %s219, 41
      %s221 = smul.addr %s220, 4
      %s222 = scalar_lea.vmem %s0, %s221
      %p223 = pneg %p38
      %p224 = pneg %p35
      %p225 = pneg %p59
      %p226 = pneg %p56
      %p227 = pneg %p80
      %p228 = pneg %p77
      %p229 = pneg %p101
      %p230 = pneg %p98
      %p231 = pneg %p122
      %p232 = pneg %p119
      %p233 = pneg %p143
      %p234 = pneg %p140
      %p235 = pneg %p169
      %p236 = pneg %p166
      %p237 = scmp.lt.s32.totalorder %s17, 1
      %s238 = scalar_select %p237, %s17, 1
      %s239 = smul.addr %s238, 41
      %s240 = smul.addr %s239, 8
      %s241 = scalar_lea.vmem %s6, %s240
      %p242 = scmp.lt.s32.totalorder %s17, 1
      %s243 = scalar_select %p242, %s17, 1
      %s244 = smul.addr %s243, 41
      %s245 = smul.addr %s244, 4
      %s246 = scalar_lea.vmem %s0, %s245
      %p247 = scmp.lt.s32.totalorder %s17, 1
      %s248 = scalar_select %p247, %s17, 1
      %s249 = smul.addr %s248, 41
      %s250 = smul.addr %s249, 8
      %s251 = scalar_lea.vmem %s6, %s250
      %v253 = vld [vmem:[%s246] sm:$0xf]
      %v254 = vld [vmem:[%s246 + $0x4] sm:$0xf]
      %v255 = vld [vmem:[%s246 + $0x8] sm:$0xf]
      %v256 = vld [vmem:[%s246 + $0xc] sm:$0xf]
      %v257 = vld [vmem:[%s246 + $0x10] sm:$0xf]
      %v258 = vld [vmem:[%s246 + $0x14] sm:$0xf]
      %v259 = vld [vmem:[%s246 + $0x18] sm:$0xf]
      %v260 = vld [vmem:[%s246 + $0x1c] sm:$0xf]
      %v261 = vld [vmem:[%s246 + $0x20] sm:$0xf]
      %v262 = vld [vmem:[%s246 + $0x24] sm:$0xf]
      %v263 = vld [vmem:[%s246 + $0x28] sm:$0xf]
      %v264 = vld [vmem:[%s246 + $0x2c] sm:$0xf]
      %v265 = vld [vmem:[%s246 + $0x30] sm:$0xf]
      %v266 = vld [vmem:[%s246 + $0x34] sm:$0xf]
      %v267 = vld [vmem:[%s246 + $0x38] sm:$0xf]
      %v268 = vld [vmem:[%s246 + $0x3c] sm:$0xf]
      %v269 = vld [vmem:[%s246 + $0x40] sm:$0xf]
      %v270 = vld [vmem:[%s246 + $0x44] sm:$0xf]
      %v271 = vld [vmem:[%s246 + $0x48] sm:$0xf]
      %v272 = vld [vmem:[%s246 + $0x4c] sm:$0xf]
      %v273 = vld [vmem:[%s246 + $0x50] sm:$0xf]
      %v274 = vld [vmem:[%s246 + $0x54] sm:$0xf]
      %v275 = vld [vmem:[%s246 + $0x58] sm:$0xf]
      %v276 = vld [vmem:[%s246 + $0x5c] sm:$0xf]
      %v277 = vld [vmem:[%s246 + $0x60] sm:$0xf]
      %v278 = vld [vmem:[%s246 + $0x64] sm:$0xf]
      %v279 = vld [vmem:[%s246 + $0x68] sm:$0xf]
      %v280 = vld [vmem:[%s246 + $0x6c] sm:$0xf]
      %v281 = vld [vmem:[%s246 + $0x70] sm:$0xf]
      %v282 = vld [vmem:[%s246 + $0x74] sm:$0xf]
      %v283 = vld [vmem:[%s246 + $0x78] sm:$0xf]
      %v284 = vld [vmem:[%s246 + $0x7c] sm:$0xf]
      %v285 = vld [vmem:[%s246 + $0x80] sm:$0xf]
      %v286 = vld [vmem:[%s246 + $0x84] sm:$0xf]
      %v287 = vld [vmem:[%s246 + $0x88] sm:$0xf]
      %v288 = vld [vmem:[%s246 + $0x8c] sm:$0xf]
      %v289 = vld [vmem:[%s246 + $0x90] sm:$0xf]
      %v290 = vld [vmem:[%s246 + $0x94] sm:$0xf]
      %v291 = vld [vmem:[%s246 + $0x98] sm:$0xf]
      %v292 = vld [vmem:[%s246 + $0x9c] sm:$0xf]
      %v293 = vld [vmem:[%s246 + $0xa0] sm:$0x3]
      %v294 = vld [vmem:[%s2] sm:$0xf]
      %v295 = vld [vmem:[%s2 + $0x4] sm:$0xf]
      %v296 = vld [vmem:[%s2 + $0x8] sm:$0xf]
      %v297 = vld [vmem:[%s2 + $0xc] sm:$0xf]
      %v298 = vld [vmem:[%s2 + $0x10] sm:$0x3]
      %v299 = vld [vmem:[%s3] sm:$0x1]
      %v301 = vlaneseq
      %v302 = vshrl.u32 %v301, 7
      %v303 = vsub.s32 0, %v302
      %v304 = vrot.slane %v299, %v303
      %v347 = vunpack.c.l.b16 %v253
      %v348 = vunpack.c.l.b16 %v254
      %v349 = vunpack.c.l.b16 %v255
      %v350 = vunpack.c.l.b16 %v256
      %v351 = vunpack.c.l.b16 %v257
      %v352 = vunpack.c.l.b16 %v258
      %v353 = vunpack.c.l.b16 %v259
      %v354 = vunpack.c.l.b16 %v260
      %v355 = vunpack.c.l.b16 %v261
      %v356 = vunpack.c.l.b16 %v262
      %v357 = vunpack.c.l.b16 %v263
      %v358 = vunpack.c.l.b16 %v264
      %v359 = vunpack.c.l.b16 %v265
      %v360 = vunpack.c.l.b16 %v266
      %v361 = vunpack.c.l.b16 %v267
      %v362 = vunpack.c.l.b16 %v268
      %v363 = vunpack.c.l.b16 %v269
      %v364 = vunpack.c.l.b16 %v270
      %v365 = vunpack.c.l.b16 %v271
      %v366 = vunpack.c.l.b16 %v272
      %v367 = vunpack.c.l.b16 %v273
      %v368 = vunpack.c.l.b16 %v274
      %v369 = vunpack.c.l.b16 %v275
      %v370 = vunpack.c.l.b16 %v276
      %v371 = vunpack.c.l.b16 %v277
      %v372 = vunpack.c.l.b16 %v278
      %v373 = vunpack.c.l.b16 %v279
      %v374 = vunpack.c.l.b16 %v280
      %v375 = vunpack.c.l.b16 %v281
      %v376 = vunpack.c.l.b16 %v282
      %v377 = vunpack.c.l.b16 %v283
      %v378 = vunpack.c.l.b16 %v284
      %v379 = vunpack.c.l.b16 %v285
      %v380 = vunpack.c.l.b16 %v286
      %v381 = vunpack.c.l.b16 %v287
      %v382 = vunpack.c.l.b16 %v288
      %v383 = vunpack.c.l.b16 %v289
      %v384 = vunpack.c.l.b16 %v290
      %v385 = vunpack.c.l.b16 %v291
      %v386 = vunpack.c.l.b16 %v292
      %v387 = vunpack.c.l.b16 %v293
      %v388 = vpack.c.b16 %v348, %v347
      %v389 = vpack.c.b16 %v350, %v349
      %v390 = vpack.c.b16 %v352, %v351
      %v391 = vpack.c.b16 %v354, %v353
      %v392 = vpack.c.b16 %v356, %v355
      %v393 = vpack.c.b16 %v358, %v357
      %v394 = vpack.c.b16 %v360, %v359
      %v395 = vpack.c.b16 %v362, %v361
      %v396 = vpack.c.b16 %v364, %v363
      %v397 = vpack.c.b16 %v366, %v365
      %v398 = vpack.c.b16 %v368, %v367
      %v399 = vpack.c.b16 %v370, %v369
      %v400 = vpack.c.b16 %v372, %v371
      %v401 = vpack.c.b16 %v374, %v373
      %v402 = vpack.c.b16 %v376, %v375
      %v403 = vpack.c.b16 %v378, %v377
      %v404 = vpack.c.b16 %v380, %v379
      %v405 = vpack.c.b16 %v382, %v381
      %v406 = vpack.c.b16 %v384, %v383
      %v407 = vpack.c.b16 %v386, %v385
      %v408 = vpack.c.b16 %v387, %v387
      %v414 = vunpack.c.l.b16 %v294
      %v415 = vunpack.c.l.b16 %v295
      %v416 = vunpack.c.l.b16 %v296
      %v417 = vunpack.c.l.b16 %v297
      %v418 = vunpack.c.l.b16 %v298
      %v419 = vpack.c.b16 %v415, %v414
      %v420 = vpack.c.b16 %v417, %v416
      %v421 = vpack.c.b16 %v418, %v418
      %vm424 = vcmask 293888
      %v426 = vsel %vm424, %v388, 0
      %v429 = vsel %vm424, %v389, 0
      %v432 = vsel %vm424, %v390, 0
      %v435 = vsel %vm424, %v391, 0
      %v438 = vsel %vm424, %v392, 0
      %v441 = vsel %vm424, %v393, 0
      %v444 = vsel %vm424, %v394, 0
      %v447 = vsel %vm424, %v395, 0
      %v450 = vsel %vm424, %v396, 0
      %v453 = vsel %vm424, %v397, 0
      %v456 = vsel %vm424, %v398, 0
      %v459 = vsel %vm424, %v399, 0
      %v462 = vsel %vm424, %v400, 0
      %v465 = vsel %vm424, %v401, 0
      %v468 = vsel %vm424, %v402, 0
      %v471 = vsel %vm424, %v403, 0
      %v474 = vsel %vm424, %v404, 0
      %v477 = vsel %vm424, %v405, 0
      %v480 = vsel %vm424, %v406, 0
      %v483 = vsel %vm424, %v407, 0
      %v486 = vsel %vm424, %v408, 0
      %vm488 = vcmask 1041408
      %v490 = vsel %vm488, %v421, 0
      %492 = vmatprep.subr.bf16.mxu0 0
      %493 = vmatpush1.bf16.msra.mxu0 %v419
      %494 = vmatprep.subr.bf16.mxu0 0
      %495 = vmatpush1.bf16.msra.mxu0 %v420
      %496 = vmatprep.subr.bf16.mxu0 0
      %497 = vmatpush1.bf16.msra.mxu0 %v490
      %498 = vmatprep.subr.bf16.mxu0 0
      %499 = vmatpush1.bf16.msra.mxu0 0
      %500 = vmatprep.subr.bf16.mxu0 0
      %501 = vmatpush1.bf16.msra.mxu0 0
      %502 = vmatprep.subr.bf16.mxu0 0
      %503 = vmatpush1.bf16.msra.mxu0 0
      %504 = vmatprep.subr.bf16.mxu0 0
      %505 = vmatpush1.bf16.msra.mxu0 0
      %506 = vmatprep.subr.bf16.mxu0 0
      %507 = vmatpush1.bf16.msra.mxu0 0
      %508 = vmatprep.subr.bf16.mxu0 0
      %509 = vmatpush1.bf16.msra.mxu0 0
      %510 = vmatprep.subr.bf16.mxu0 0
      %511 = vmatpush1.bf16.msra.mxu0 0
      %512 = vmatprep.subr.bf16.mxu0 0
      %513 = vmatpush1.bf16.msra.mxu0 0
      %514 = vmatprep.subr.bf16.mxu0 0
      %515 = vmatpush1.bf16.msra.mxu0 0
      %516 = vmatprep.subr.bf16.mxu0 0
      %517 = vmatpush1.bf16.msra.mxu0 0
      %518 = vmatprep.subr.bf16.mxu0 0
      %519 = vmatpush1.bf16.msra.mxu0 0
      %520 = vmatprep.subr.bf16.mxu0 0
      %521 = vmatpush1.bf16.msra.mxu0 0
      %522 = vmatprep.subr.bf16.mxu0 0
      %523 = vmatpush1.bf16.msra.mxu0 0
      %524 = vmatprep.mubr.bf16.mxu0 0
      %525 = vmatmul.mubr.bf16.gmra.mrb[0].mxu0 %v426
      %v526 = vpop.f32.mrb[0].mxu0
      %v527 = vadd.f32 %v304, %v526
      %v528 = vpop.f32.mrb[0].mxu0
      %v529 = vpop.f32.mrb[0].mxu0
      %v530 = vadd.f32 %v304, %v529
      %v531 = vpop.f32.mrb[0].mxu0
      %532 = vmatprep.mubr.bf16.mxu0 0
      %533 = vmatmul.mubr.bf16.gmra.mrb[0].mxu0 %v429
      %v534 = vpop.f32.mrb[0].mxu0
      %v535 = vadd.f32 %v304, %v534
      %v536 = vpop.f32.mrb[0].mxu0
      %v537 = vpop.f32.mrb[0].mxu0
      %v538 = vadd.f32 %v304, %v537
      %v539 = vpop.f32.mrb[0].mxu0
      %540 = vmatprep.mubr.bf16.mxu0 0
      %541 = vmatmul.mubr.bf16.gmra.mrb[0].mxu0 %v432
      %v542 = vpop.f32.mrb[0].mxu0
      %v543 = vadd.f32 %v304, %v542
      %v544 = vpop.f32.mrb[0].mxu0
      %v545 = vpop.f32.mrb[0].mxu0
      %v546 = vadd.f32 %v304, %v545
      %v547 = vpop.f32.mrb[0].mxu0
      %548 = vmatprep.mubr.bf16.mxu0 0
      %549 = vmatmul.mubr.bf16.gmra.mrb[0].mxu0 %v435
      %v550 = vpop.f32.mrb[0].mxu0
      %v551 = vadd.f32 %v304, %v550
      %v552 = vpop.f32.mrb[0].mxu0
      %v553 = vpop.f32.mrb[0].mxu0
      %v554 = vadd.f32 %v304, %v553
      %v555 = vpop.f32.mrb[0].mxu0
      %556 = vmatprep.mubr.bf16.mxu0 0
      %557 = vmatmul.mubr.bf16.gmra.mrb[0].mxu0 %v438
      %v558 = vpop.f32.mrb[0].mxu0
      %v559 = vadd.f32 %v304, %v558
      %v560 = vpop.f32.mrb[0].mxu0
      %v561 = vpop.f32.mrb[0].mxu0
      %v562 = vadd.f32 %v304, %v561
      %v563 = vpop.f32.mrb[0].mxu0
      %564 = vmatprep.mubr.bf16.mxu0 0
      %565 = vmatmul.mubr.bf16.gmra.mrb[0].mxu0 %v441
      %v566 = vpop.f32.mrb[0].mxu0
      %v567 = vadd.f32 %v304, %v566
      %v568 = vpop.f32.mrb[0].mxu0
      %v569 = vpop.f32.mrb[0].mxu0
      %v570 = vadd.f32 %v304, %v569
      %v571 = vpop.f32.mrb[0].mxu0
      %572 = vmatprep.mubr.bf16.mxu0 0
      %573 = vmatmul.mubr.bf16.gmra.mrb[0].mxu0 %v444
      %v574 = vpop.f32.mrb[0].mxu0
      %v575 = vadd.f32 %v304, %v574
      %v576 = vpop.f32.mrb[0].mxu0
      %v577 = vpop.f32.mrb[0].mxu0
      %v578 = vadd.f32 %v304, %v577
      %v579 = vpop.f32.mrb[0].mxu0
      %580 = vmatprep.mubr.bf16.mxu0 0
      %581 = vmatmul.mubr.bf16.gmra.mrb[0].mxu0 %v447
      %v582 = vpop.f32.mrb[0].mxu0
      %v583 = vadd.f32 %v304, %v582
      %v584 = vpop.f32.mrb[0].mxu0
      %v585 = vpop.f32.mrb[0].mxu0
      %v586 = vadd.f32 %v304, %v585
      %v587 = vpop.f32.mrb[0].mxu0
      %588 = vmatprep.mubr.bf16.mxu0 0
      %589 = vmatmul.mubr.bf16.gmra.mrb[0].mxu0 %v450
      %v590 = vpop.f32.mrb[0].mxu0
      %v591 = vadd.f32 %v304, %v590
      %v592 = vpop.f32.mrb[0].mxu0
      %v593 = vpop.f32.mrb[0].mxu0
      %v594 = vadd.f32 %v304, %v593
      %v595 = vpop.f32.mrb[0].mxu0
      %596 = vmatprep.mubr.bf16.mxu0 0
      %597 = vmatmul.mubr.bf16.gmra.mrb[0].mxu0 %v453
      %v598 = vpop.f32.mrb[0].mxu0
      %v599 = vadd.f32 %v304, %v598
      %v600 = vpop.f32.mrb[0].mxu0
      %v601 = vpop.f32.mrb[0].mxu0
      %v602 = vadd.f32 %v304, %v601
      %v603 = vpop.f32.mrb[0].mxu0
      %604 = vmatprep.mubr.bf16.mxu0 0
      %605 = vmatmul.mubr.bf16.gmra.mrb[0].mxu0 %v456
      %v606 = vpop.f32.mrb[0].mxu0
      %v607 = vadd.f32 %v304, %v606
      %v608 = vpop.f32.mrb[0].mxu0
      %v609 = vpop.f32.mrb[0].mxu0
      %v610 = vadd.f32 %v304, %v609
      %v611 = vpop.f32.mrb[0].mxu0
      %612 = vmatprep.mubr.bf16.mxu0 0
      %613 = vmatmul.mubr.bf16.gmra.mrb[0].mxu0 %v459
      %v614 = vpop.f32.mrb[0].mxu0
      %v615 = vadd.f32 %v304, %v614
      %v616 = vpop.f32.mrb[0].mxu0
      %v617 = vpop.f32.mrb[0].mxu0
      %v618 = vadd.f32 %v304, %v617
      %v619 = vpop.f32.mrb[0].mxu0
      %620 = vmatprep.mubr.bf16.mxu0 0
      %621 = vmatmul.mubr.bf16.gmra.mrb[0].mxu0 %v462
      %v622 = vpop.f32.mrb[0].mxu0
      %v623 = vadd.f32 %v304, %v622
      %v624 = vpop.f32.mrb[0].mxu0
      %v625 = vpop.f32.mrb[0].mxu0
      %v626 = vadd.f32 %v304, %v625
      %v627 = vpop.f32.mrb[0].mxu0
      %628 = vmatprep.mubr.bf16.mxu0 0
      %629 = vmatmul.mubr.bf16.gmra.mrb[0].mxu0 %v465
      %v630 = vpop.f32.mrb[0].mxu0
      %v631 = vadd.f32 %v304, %v630
      %v632 = vpop.f32.mrb[0].mxu0
      %v633 = vpop.f32.mrb[0].mxu0
      %v634 = vadd.f32 %v304, %v633
      %v635 = vpop.f32.mrb[0].mxu0
      %636 = vmatprep.mubr.bf16.mxu0 0
      %637 = vmatmul.mubr.bf16.gmra.mrb[0].mxu0 %v468
      %v638 = vpop.f32.mrb[0].mxu0
      %v639 = vadd.f32 %v304, %v638
      %v640 = vpop.f32.mrb[0].mxu0
      %v641 = vpop.f32.mrb[0].mxu0
      %v642 = vadd.f32 %v304, %v641
      %v643 = vpop.f32.mrb[0].mxu0
      %644 = vmatprep.mubr.bf16.mxu0 0
      %645 = vmatmul.mubr.bf16.gmra.mrb[0].mxu0 %v471
      %v646 = vpop.f32.mrb[0].mxu0
      %v647 = vadd.f32 %v304, %v646
      %v648 = vpop.f32.mrb[0].mxu0
      %v649 = vpop.f32.mrb[0].mxu0
      %v650 = vadd.f32 %v304, %v649
      %v651 = vpop.f32.mrb[0].mxu0
      %652 = vmatprep.mubr.bf16.mxu0 0
      %653 = vmatmul.mubr.bf16.gmra.mrb[0].mxu0 %v474
      %v654 = vpop.f32.mrb[0].mxu0
      %v655 = vadd.f32 %v304, %v654
      %v656 = vpop.f32.mrb[0].mxu0
      %v657 = vpop.f32.mrb[0].mxu0
      %v658 = vadd.f32 %v304, %v657
      %v659 = vpop.f32.mrb[0].mxu0
      %660 = vmatprep.mubr.bf16.mxu0 0
      %661 = vmatmul.mubr.bf16.gmra.mrb[0].mxu0 %v477
      %v662 = vpop.f32.mrb[0].mxu0
      %v663 = vadd.f32 %v304, %v662
      %v664 = vpop.f32.mrb[0].mxu0
      %v665 = vpop.f32.mrb[0].mxu0
      %v666 = vadd.f32 %v304, %v665
      %v667 = vpop.f32.mrb[0].mxu0
      %668 = vmatprep.mubr.bf16.mxu0 0
      %669 = vmatmul.mubr.bf16.gmra.mrb[0].mxu0 %v480
      %v670 = vpop.f32.mrb[0].mxu0
      %v671 = vadd.f32 %v304, %v670
      %v672 = vpop.f32.mrb[0].mxu0
      %v673 = vpop.f32.mrb[0].mxu0
      %v674 = vadd.f32 %v304, %v673
      %v675 = vpop.f32.mrb[0].mxu0
      %676 = vmatprep.mubr.bf16.mxu0 0
      %677 = vmatmul.mubr.bf16.gmra.mrb[0].mxu0 %v483
      %v678 = vpop.f32.mrb[0].mxu0
      %v679 = vadd.f32 %v304, %v678
      %v680 = vpop.f32.mrb[0].mxu0
      %v681 = vpop.f32.mrb[0].mxu0
      %v682 = vadd.f32 %v304, %v681
      %v683 = vpop.f32.mrb[0].mxu0
      %684 = vmatprep.mubr.bf16.mxu0 0
      %685 = vmatmul.mubr.bf16.gmra.mrb[0].mxu0 %v486
      %v686 = vpop.f32.mrb[0].mxu0
      %v687 = vadd.f32 %v304, %v686
      %v688 = vpop.f32.mrb[0].mxu0
      %v689 = vpop.f32.mrb[0].mxu0
      %v690 = vpop.f32.mrb[0].mxu0
      %691 = vdwg.mxu0
      %vm692 = vcmp.ge.f32.partialorder %v527, 0.0
      %vm693 = vcmp.ge.f32.partialorder %v530, 0.0
      %vm694 = vcmp.ge.f32.partialorder %v535, 0.0
      %vm695 = vcmp.ge.f32.partialorder %v538, 0.0
      %vm696 = vcmp.ge.f32.partialorder %v543, 0.0
      %vm697 = vcmp.ge.f32.partialorder %v546, 0.0
      %vm698 = vcmp.ge.f32.partialorder %v551, 0.0
      %vm699 = vcmp.ge.f32.partialorder %v554, 0.0
      %vm700 = vcmp.ge.f32.partialorder %v559, 0.0
      %vm701 = vcmp.ge.f32.partialorder %v562, 0.0
      %vm702 = vcmp.ge.f32.partialorder %v567, 0.0
      %vm703 = vcmp.ge.f32.partialorder %v570, 0.0
      %vm704 = vcmp.ge.f32.partialorder %v575, 0.0
      %vm705 = vcmp.ge.f32.partialorder %v578, 0.0
      %vm706 = vcmp.ge.f32.partialorder %v583, 0.0
      %vm707 = vcmp.ge.f32.partialorder %v586, 0.0
      %vm708 = vcmp.ge.f32.partialorder %v591, 0.0
      %vm709 = vcmp.ge.f32.partialorder %v594, 0.0
      %vm710 = vcmp.ge.f32.partialorder %v599, 0.0
      %vm711 = vcmp.ge.f32.partialorder %v602, 0.0
      %vm712 = vcmp.ge.f32.partialorder %v607, 0.0
      %vm713 = vcmp.ge.f32.partialorder %v610, 0.0
      %vm714 = vcmp.ge.f32.partialorder %v615, 0.0
      %vm715 = vcmp.ge.f32.partialorder %v618, 0.0
      %vm716 = vcmp.ge.f32.partialorder %v623, 0.0
      %vm717 = vcmp.ge.f32.partialorder %v626, 0.0
      %vm718 = vcmp.ge.f32.partialorder %v631, 0.0
      %vm719 = vcmp.ge.f32.partialorder %v634, 0.0
      %vm720 = vcmp.ge.f32.partialorder %v639, 0.0
      %vm721 = vcmp.ge.f32.partialorder %v642, 0.0
      %vm722 = vcmp.ge.f32.partialorder %v647, 0.0
      %vm723 = vcmp.ge.f32.partialorder %v650, 0.0
      %vm724 = vcmp.ge.f32.partialorder %v655, 0.0
      %vm725 = vcmp.ge.f32.partialorder %v658, 0.0
      %vm726 = vcmp.ge.f32.partialorder %v663, 0.0
      %vm727 = vcmp.ge.f32.partialorder %v666, 0.0
      %vm728 = vcmp.ge.f32.partialorder %v671, 0.0
      %vm729 = vcmp.ge.f32.partialorder %v674, 0.0
      %vm730 = vcmp.ge.f32.partialorder %v679, 0.0
      %vm731 = vcmp.ge.f32.partialorder %v682, 0.0
      %vm732 = vcmp.ge.f32.partialorder %v687, 0.0
      %v733 = vmul.f32 %v527, 0.2
      %v734 = vmul.f32 %v530, 0.2
      %v735 = vmul.f32 %v535, 0.2
      %v736 = vmul.f32 %v538, 0.2
      %v737 = vmul.f32 %v543, 0.2
      %v738 = vmul.f32 %v546, 0.2
      %v739 = vmul.f32 %v551, 0.2
      %v740 = vmul.f32 %v554, 0.2
      %v741 = vmul.f32 %v559, 0.2
      %v742 = vmul.f32 %v562, 0.2
      %v743 = vmul.f32 %v567, 0.2
      %v744 = vmul.f32 %v570, 0.2
      %v745 = vmul.f32 %v575, 0.2
      %v746 = vmul.f32 %v578, 0.2
      %v747 = vmul.f32 %v583, 0.2
      %v748 = vmul.f32 %v586, 0.2
      %v749 = vmul.f32 %v591, 0.2
      %v750 = vmul.f32 %v594, 0.2
      %v751 = vmul.f32 %v599, 0.2
      %v752 = vmul.f32 %v602, 0.2
      %v753 = vmul.f32 %v607, 0.2
      %v754 = vmul.f32 %v610, 0.2
      %v755 = vmul.f32 %v615, 0.2
      %v756 = vmul.f32 %v618, 0.2
      %v757 = vmul.f32 %v623, 0.2
      %v758 = vmul.f32 %v626, 0.2
      %v759 = vmul.f32 %v631, 0.2
      %v760 = vmul.f32 %v634, 0.2
      %v761 = vmul.f32 %v639, 0.2
      %v762 = vmul.f32 %v642, 0.2
      %v763 = vmul.f32 %v647, 0.2
      %v764 = vmul.f32 %v650, 0.2
      %v765 = vmul.f32 %v655, 0.2
      %v766 = vmul.f32 %v658, 0.2
      %v767 = vmul.f32 %v663, 0.2
      %v768 = vmul.f32 %v666, 0.2
      %v769 = vmul.f32 %v671, 0.2
      %v770 = vmul.f32 %v674, 0.2
      %v771 = vmul.f32 %v679, 0.2
      %v772 = vmul.f32 %v682, 0.2
      %v773 = vmul.f32 %v687, 0.2
      %v774 = vsel %vm692, %v527, %v733
      %v775 = vsel %vm693, %v530, %v734
      %v776 = vsel %vm694, %v535, %v735
      %v777 = vsel %vm695, %v538, %v736
      %v778 = vsel %vm696, %v543, %v737
      %v779 = vsel %vm697, %v546, %v738
      %v780 = vsel %vm698, %v551, %v739
      %v781 = vsel %vm699, %v554, %v740
      %v782 = vsel %vm700, %v559, %v741
      %v783 = vsel %vm701, %v562, %v742
      %v784 = vsel %vm702, %v567, %v743
      %v785 = vsel %vm703, %v570, %v744
      %v786 = vsel %vm704, %v575, %v745
      %v787 = vsel %vm705, %v578, %v746
      %v788 = vsel %vm706, %v583, %v747
      %v789 = vsel %vm707, %v586, %v748
      %v790 = vsel %vm708, %v591, %v749
      %v791 = vsel %vm709, %v594, %v750
      %v792 = vsel %vm710, %v599, %v751
      %v793 = vsel %vm711, %v602, %v752
      %v794 = vsel %vm712, %v607, %v753
      %v795 = vsel %vm713, %v610, %v754
      %v796 = vsel %vm714, %v615, %v755
      %v797 = vsel %vm715, %v618, %v756
      %v798 = vsel %vm716, %v623, %v757
      %v799 = vsel %vm717, %v626, %v758
      %v800 = vsel %vm718, %v631, %v759
      %v801 = vsel %vm719, %v634, %v760
      %v802 = vsel %vm720, %v639, %v761
      %v803 = vsel %vm721, %v642, %v762
      %v804 = vsel %vm722, %v647, %v763
      %v805 = vsel %vm723, %v650, %v764
      %v806 = vsel %vm724, %v655, %v765
      %v807 = vsel %vm725, %v658, %v766
      %v808 = vsel %vm726, %v663, %v767
      %v809 = vsel %vm727, %v666, %v768
      %v810 = vsel %vm728, %v671, %v769
      %v811 = vsel %vm729, %v674, %v770
      %v812 = vsel %vm730, %v679, %v771
      %v813 = vsel %vm731, %v682, %v772
      %v814 = vsel %vm732, %v687, %v773
      %v815 = vld [vmem:[%s1] sm:$0xff]
      %v816 = vld [vmem:[%s1 + $0x8] sm:$0xff]
      %v817 = vld [vmem:[%s1 + $0x10] sm:$0xff]
      %v818 = vld [vmem:[%s1 + $0x18] sm:$0xff]
      %v819 = vld [vmem:[%s1 + $0x20] sm:$0xff]
      %v820 = vld [vmem:[%s1 + $0x28] sm:$0xff]
      %v821 = vld [vmem:[%s1 + $0x30] sm:$0xff]
      %v822 = vld [vmem:[%s1 + $0x38] sm:$0xff]
      %v823 = vld [vmem:[%s1 + $0x40] sm:$0xff]
      %v824 = vld [vmem:[%s1 + $0x48] sm:$0xff]
      %v825 = vld [vmem:[%s1 + $0x50] sm:$0xff]
      %v826 = vld [vmem:[%s1 + $0x58] sm:$0xff]
      %v827 = vld [vmem:[%s1 + $0x60] sm:$0xff]
      %v828 = vld [vmem:[%s1 + $0x68] sm:$0xff]
      %v829 = vld [vmem:[%s1 + $0x70] sm:$0xff]
      %v830 = vld [vmem:[%s1 + $0x78] sm:$0xff]
      %v831 = vld [vmem:[%s1 + $0x80] sm:$0xff]
      %v832 = vld [vmem:[%s1 + $0x88] sm:$0xff]
      %v833 = vld [vmem:[%s1 + $0x90] sm:$0xff]
      %v834 = vld [vmem:[%s1 + $0x98] sm:$0xff]
      %v835 = vld [vmem:[%s1 + $0xa0] sm:$0xff]
      %v836 = vld [vmem:[%s1 + $0xa8] sm:$0xff]
      %v837 = vld [vmem:[%s1 + $0xb0] sm:$0xff]
      %v838 = vld [vmem:[%s1 + $0xb8] sm:$0xff]
      %v839 = vld [vmem:[%s1 + $0xc0] sm:$0xff]
      %v840 = vld [vmem:[%s1 + $0xc8] sm:$0xff]
      %v841 = vld [vmem:[%s1 + $0xd0] sm:$0xff]
      %v842 = vld [vmem:[%s1 + $0xd8] sm:$0xff]
      %v843 = vld [vmem:[%s1 + $0xe0] sm:$0xff]
      %v844 = vld [vmem:[%s1 + $0xe8] sm:$0xff]
      %v845 = vld [vmem:[%s1 + $0xf0] sm:$0xff]
      %v846 = vld [vmem:[%s1 + $0xf8] sm:$0xff]
      %v847 = vld [vmem:[%s1 + $0x100] sm:$0xff]
      %v848 = vld [vmem:[%s1 + $0x108] sm:$0xff]
      %v849 = vld [vmem:[%s1 + $0x110] sm:$0xff]
      %v850 = vld [vmem:[%s1 + $0x118] sm:$0xff]
      %v851 = vld [vmem:[%s1 + $0x120] sm:$0xff]
      %v852 = vld [vmem:[%s1 + $0x128] sm:$0xff]
      %v853 = vld [vmem:[%s1 + $0x130] sm:$0xff]
      %v854 = vld [vmem:[%s1 + $0x138] sm:$0xff]
      %v855 = vld [vmem:[%s1 + $0x140] sm:$0xf]
      %857 = vset.pattern.permute.xlu0 0
      %858 = vperm.xlu0 %857, %v815
      %v859 = vpop.permute.xlu0 %858
      %862 = vset.pattern.permute.xlu0 0
      %863 = vperm.xlu0 %862, %v816
      %v864 = vpop.permute.xlu0 %863
      %867 = vset.pattern.permute.xlu0 0
      %868 = vperm.xlu0 %867, %v817
      %v869 = vpop.permute.xlu0 %868
      %872 = vset.pattern.permute.xlu0 0
      %873 = vperm.xlu0 %872, %v818
      %v874 = vpop.permute.xlu0 %873
      %877 = vset.pattern.permute.xlu0 0
      %878 = vperm.xlu0 %877, %v819
      %v879 = vpop.permute.xlu0 %878
      %882 = vset.pattern.permute.xlu0 0
      %883 = vperm.xlu0 %882, %v820
      %v884 = vpop.permute.xlu0 %883
      %887 = vset.pattern.permute.xlu0 0
      %888 = vperm.xlu0 %887, %v821
      %v889 = vpop.permute.xlu0 %888
      %892 = vset.pattern.permute.xlu0 0
      %893 = vperm.xlu0 %892, %v822
      %v894 = vpop.permute.xlu0 %893
      %897 = vset.pattern.permute.xlu0 0
      %898 = vperm.xlu0 %897, %v823
      %v899 = vpop.permute.xlu0 %898
      %902 = vset.pattern.permute.xlu0 0
      %903 = vperm.xlu0 %902, %v824
      %v904 = vpop.permute.xlu0 %903
      %907 = vset.pattern.permute.xlu0 0
      %908 = vperm.xlu0 %907, %v825
      %v909 = vpop.permute.xlu0 %908
      %912 = vset.pattern.permute.xlu0 0
      %913 = vperm.xlu0 %912, %v826
      %v914 = vpop.permute.xlu0 %913
      %917 = vset.pattern.permute.xlu0 0
      %918 = vperm.xlu0 %917, %v827
      %v919 = vpop.permute.xlu0 %918
      %922 = vset.pattern.permute.xlu0 0
      %923 = vperm.xlu0 %922, %v828
      %v924 = vpop.permute.xlu0 %923
      %927 = vset.pattern.permute.xlu0 0
      %928 = vperm.xlu0 %927, %v829
      %v929 = vpop.permute.xlu0 %928
      %932 = vset.pattern.permute.xlu0 0
      %933 = vperm.xlu0 %932, %v830
      %v934 = vpop.permute.xlu0 %933
      %937 = vset.pattern.permute.xlu0 0
      %938 = vperm.xlu0 %937, %v831
      %v939 = vpop.permute.xlu0 %938
      %942 = vset.pattern.permute.xlu0 0
      %943 = vperm.xlu0 %942, %v832
      %v944 = vpop.permute.xlu0 %943
      %947 = vset.pattern.permute.xlu0 0
      %948 = vperm.xlu0 %947, %v833
      %v949 = vpop.permute.xlu0 %948
      %952 = vset.pattern.permute.xlu0 0
      %953 = vperm.xlu0 %952, %v834
      %v954 = vpop.permute.xlu0 %953
      %957 = vset.pattern.permute.xlu0 0
      %958 = vperm.xlu0 %957, %v835
      %v959 = vpop.permute.xlu0 %958
      %962 = vset.pattern.permute.xlu0 0
      %963 = vperm.xlu0 %962, %v836
      %v964 = vpop.permute.xlu0 %963
      %967 = vset.pattern.permute.xlu0 0
      %968 = vperm.xlu0 %967, %v837
      %v969 = vpop.permute.xlu0 %968
      %972 = vset.pattern.permute.xlu0 0
      %973 = vperm.xlu0 %972, %v838
      %v974 = vpop.permute.xlu0 %973
      %977 = vset.pattern.permute.xlu0 0
      %978 = vperm.xlu0 %977, %v839
      %v979 = vpop.permute.xlu0 %978
      %982 = vset.pattern.permute.xlu0 0
      %983 = vperm.xlu0 %982, %v840
      %v984 = vpop.permute.xlu0 %983
      %987 = vset.pattern.permute.xlu0 0
      %988 = vperm.xlu0 %987, %v841
      %v989 = vpop.permute.xlu0 %988
      %992 = vset.pattern.permute.xlu0 0
      %993 = vperm.xlu0 %992, %v842
      %v994 = vpop.permute.xlu0 %993
      %997 = vset.pattern.permute.xlu0 0
      %998 = vperm.xlu0 %997, %v843
      %v999 = vpop.permute.xlu0 %998
      %1002 = vset.pattern.permute.xlu0 0
      %1003 = vperm.xlu0 %1002, %v844
      %v1004 = vpop.permute.xlu0 %1003
      %1007 = vset.pattern.permute.xlu0 0
      %1008 = vperm.xlu0 %1007, %v845
      %v1009 = vpop.permute.xlu0 %1008
      %1012 = vset.pattern.permute.xlu0 0
      %1013 = vperm.xlu0 %1012, %v846
      %v1014 = vpop.permute.xlu0 %1013
      %1017 = vset.pattern.permute.xlu0 0
      %1018 = vperm.xlu0 %1017, %v847
      %v1019 = vpop.permute.xlu0 %1018
      %1022 = vset.pattern.permute.xlu0 0
      %1023 = vperm.xlu0 %1022, %v848
      %v1024 = vpop.permute.xlu0 %1023
      %1027 = vset.pattern.permute.xlu0 0
      %1028 = vperm.xlu0 %1027, %v849
      %v1029 = vpop.permute.xlu0 %1028
      %1032 = vset.pattern.permute.xlu0 0
      %1033 = vperm.xlu0 %1032, %v850
      %v1034 = vpop.permute.xlu0 %1033
      %1037 = vset.pattern.permute.xlu0 0
      %1038 = vperm.xlu0 %1037, %v851
      %v1039 = vpop.permute.xlu0 %1038
      %1042 = vset.pattern.permute.xlu0 0
      %1043 = vperm.xlu0 %1042, %v852
      %v1044 = vpop.permute.xlu0 %1043
      %1047 = vset.pattern.permute.xlu0 0
      %1048 = vperm.xlu0 %1047, %v853
      %v1049 = vpop.permute.xlu0 %1048
      %1052 = vset.pattern.permute.xlu0 0
      %1053 = vperm.xlu0 %1052, %v854
      %v1054 = vpop.permute.xlu0 %1053
      %1057 = vset.pattern.permute.xlu0 0
      %1058 = vperm.xlu0 %1057, %v855
      %v1059 = vpop.permute.xlu0 %1058
      %v1061 = vmul.f32 %v774, %v859
      %v1062 = vmul.f32 %v775, %v864
      %v1063 = vmul.f32 %v776, %v869
      %v1064 = vmul.f32 %v777, %v874
      %v1065 = vmul.f32 %v778, %v879
      %v1066 = vmul.f32 %v779, %v884
      %v1067 = vmul.f32 %v780, %v889
      %v1068 = vmul.f32 %v781, %v894
      %v1069 = vmul.f32 %v782, %v899
      %v1070 = vmul.f32 %v783, %v904
      %v1071 = vmul.f32 %v784, %v909
      %v1072 = vmul.f32 %v785, %v914
      %v1073 = vmul.f32 %v786, %v919
      %v1074 = vmul.f32 %v787, %v924
      %v1075 = vmul.f32 %v788, %v929
      %v1076 = vmul.f32 %v789, %v934
      %v1077 = vmul.f32 %v790, %v939
      %v1078 = vmul.f32 %v791, %v944
      %v1079 = vmul.f32 %v792, %v949
      %v1080 = vmul.f32 %v793, %v954
      %v1081 = vmul.f32 %v794, %v959
      %v1082 = vmul.f32 %v795, %v964
      %v1083 = vmul.f32 %v796, %v969
      %v1084 = vmul.f32 %v797, %v974
      %v1085 = vmul.f32 %v798, %v979
      %v1086 = vmul.f32 %v799, %v984
      %v1087 = vmul.f32 %v800, %v989
      %v1088 = vmul.f32 %v801, %v994
      %v1089 = vmul.f32 %v802, %v999
      %v1090 = vmul.f32 %v803, %v1004
      %v1091 = vmul.f32 %v804, %v1009
      %v1092 = vmul.f32 %v805, %v1014
      %v1093 = vmul.f32 %v806, %v1019
      %v1094 = vmul.f32 %v807, %v1024
      %v1095 = vmul.f32 %v808, %v1029
      %v1096 = vmul.f32 %v809, %v1034
      %v1097 = vmul.f32 %v810, %v1039
      %v1098 = vmul.f32 %v811, %v1044
      %v1099 = vmul.f32 %v812, %v1049
      %v1100 = vmul.f32 %v813, %v1054
      %v1101 = vmul.f32 %v814, %v1059
      %v1102 = vpack.c.bf16 %v1062, %v1061
      %v1103 = vpack.c.bf16 %v1064, %v1063
      %v1104 = vpack.c.bf16 %v1066, %v1065
      %v1105 = vpack.c.bf16 %v1068, %v1067
      %v1106 = vpack.c.bf16 %v1070, %v1069
      %v1107 = vpack.c.bf16 %v1072, %v1071
      %v1108 = vpack.c.bf16 %v1074, %v1073
      %v1109 = vpack.c.bf16 %v1076, %v1075
      %v1110 = vpack.c.bf16 %v1078, %v1077
      %v1111 = vpack.c.bf16 %v1080, %v1079
      %v1112 = vpack.c.bf16 %v1082, %v1081
      %v1113 = vpack.c.bf16 %v1084, %v1083
      %v1114 = vpack.c.bf16 %v1086, %v1085
      %v1115 = vpack.c.bf16 %v1088, %v1087
      %v1116 = vpack.c.bf16 %v1090, %v1089
      %v1117 = vpack.c.bf16 %v1092, %v1091
      %v1118 = vpack.c.bf16 %v1094, %v1093
      %v1119 = vpack.c.bf16 %v1096, %v1095
      %v1120 = vpack.c.bf16 %v1098, %v1097
      %v1121 = vpack.c.bf16 %v1100, %v1099
      %v1122 = vpack.c.bf16 %v1101, %v1101
      %vm1123 = vcmask 60416
      %1124 = vst.msk [vmem:[#allocation2] sm:$0xf] %vm1123, 0
      %1125 = vst.msk [vmem:[#allocation2 + $0x4] sm:$0xf] %vm1123, 0
      %1126 = vst.msk [vmem:[#allocation2 + $0x8] sm:$0xf] %vm1123, 0
      %1127 = vst.msk [vmem:[#allocation2 + $0xc] sm:$0xf] %vm1123, 0
      %vm1128 = vcmask 60418
      %1129 = vst.msk [vmem:[#allocation2 + $0xb0] sm:$0xc] %vm1128, 0
      %1130 = vst.msk [vmem:[#allocation2 + $0xb4] sm:$0xf] %vm1123, 0
      %1131 = vst.msk [vmem:[#allocation2 + $0xb8] sm:$0xf] %vm1123, 0
      %1132 = vst.msk [vmem:[#allocation2 + $0xbc] sm:$0xf] %vm1123, 0
      %vm1133 = vcmask 58368
      %1134 = vst.msk [vmem:[#allocation2 + $0xc0] sm:$0x3] %vm1133, 0
      %v1156 = vunpack.c.l.b16 %v1102
      %v1157 = vunpack.c.h.b16 %v1102
      %v1158 = vunpack.c.l.b16 %v1103
      %v1159 = vunpack.c.h.b16 %v1103
      %v1160 = vunpack.c.l.b16 %v1104
      %v1161 = vunpack.c.h.b16 %v1104
      %v1162 = vunpack.c.l.b16 %v1105
      %v1163 = vunpack.c.h.b16 %v1105
      %v1164 = vunpack.c.l.b16 %v1106
      %v1165 = vunpack.c.h.b16 %v1106
      %v1166 = vunpack.c.l.b16 %v1107
      %v1167 = vunpack.c.h.b16 %v1107
      %v1168 = vunpack.c.l.b16 %v1108
      %v1169 = vunpack.c.h.b16 %v1108
      %v1170 = vunpack.c.l.b16 %v1109
      %v1171 = vunpack.c.h.b16 %v1109
      %v1172 = vunpack.c.l.b16 %v1110
      %v1173 = vunpack.c.h.b16 %v1110
      %v1174 = vunpack.c.l.b16 %v1111
      %v1175 = vunpack.c.h.b16 %v1111
      %v1176 = vunpack.c.l.b16 %v1112
      %v1177 = vunpack.c.h.b16 %v1112
      %v1178 = vunpack.c.l.b16 %v1113
      %v1179 = vunpack.c.h.b16 %v1113
      %v1180 = vunpack.c.l.b16 %v1114
      %v1181 = vunpack.c.h.b16 %v1114
      %v1182 = vunpack.c.l.b16 %v1115
      %v1183 = vunpack.c.h.b16 %v1115
      %v1184 = vunpack.c.l.b16 %v1116
      %v1185 = vunpack.c.h.b16 %v1116
      %v1186 = vunpack.c.l.b16 %v1117
      %v1187 = vunpack.c.h.b16 %v1117
      %v1188 = vunpack.c.l.b16 %v1118
      %v1189 = vunpack.c.h.b16 %v1118
      %v1190 = vunpack.c.l.b16 %v1119
      %v1191 = vunpack.c.h.b16 %v1119
      %v1192 = vunpack.c.l.b16 %v1120
      %v1193 = vunpack.c.h.b16 %v1120
      %v1194 = vunpack.c.l.b16 %v1121
      %v1195 = vunpack.c.h.b16 %v1121
      %v1196 = vunpack.c.l.b16 %v1122
      %v1197 = vpack.c.b16 %v1156, %v1156
      %v1198 = vpack.c.b16 %v1157, %v1157
      %v1199 = vpack.c.b16 %v1158, %v1158
      %v1200 = vpack.c.b16 %v1159, %v1159
      %v1201 = vpack.c.b16 %v1160, %v1160
      %v1202 = vpack.c.b16 %v1161, %v1161
      %v1203 = vpack.c.b16 %v1162, %v1162
      %v1204 = vpack.c.b16 %v1163, %v1163
      %v1205 = vpack.c.b16 %v1164, %v1164
      %v1206 = vpack.c.b16 %v1165, %v1165
      %v1207 = vpack.c.b16 %v1166, %v1166
      %v1208 = vpack.c.b16 %v1167, %v1167
      %v1209 = vpack.c.b16 %v1168, %v1168
      %v1210 = vpack.c.b16 %v1169, %v1169
      %v1211 = vpack.c.b16 %v1170, %v1170
      %v1212 = vpack.c.b16 %v1171, %v1171
      %v1213 = vpack.c.b16 %v1172, %v1172
      %v1214 = vpack.c.b16 %v1173, %v1173
      %v1215 = vpack.c.b16 %v1174, %v1174
      %v1216 = vpack.c.b16 %v1175, %v1175
      %v1217 = vpack.c.b16 %v1176, %v1176
      %v1218 = vpack.c.b16 %v1177, %v1177
      %v1219 = vpack.c.b16 %v1178, %v1178
      %v1220 = vpack.c.b16 %v1179, %v1179
      %v1221 = vpack.c.b16 %v1180, %v1180
      %v1222 = vpack.c.b16 %v1181, %v1181
      %v1223 = vpack.c.b16 %v1182, %v1182
      %v1224 = vpack.c.b16 %v1183, %v1183
      %v1225 = vpack.c.b16 %v1184, %v1184
      %v1226 = vpack.c.b16 %v1185, %v1185
      %v1227 = vpack.c.b16 %v1186, %v1186
      %v1228 = vpack.c.b16 %v1187, %v1187
      %v1229 = vpack.c.b16 %v1188, %v1188
      %v1230 = vpack.c.b16 %v1189, %v1189
      %v1231 = vpack.c.b16 %v1190, %v1190
      %v1232 = vpack.c.b16 %v1191, %v1191
      %v1233 = vpack.c.b16 %v1192, %v1192
      %v1234 = vpack.c.b16 %v1193, %v1193
      %v1235 = vpack.c.b16 %v1194, %v1194
      %v1236 = vpack.c.b16 %v1195, %v1195
      %v1237 = vpack.c.b16 %v1196, %v1196
      %1279 = vst.msk [vmem:[#allocation2 + $0x10] sm:$0xf] %vm1123, %v1197
      %1280 = vst.msk [vmem:[#allocation2 + $0x14] sm:$0xf] %vm1123, %v1198
      %1281 = vst.msk [vmem:[#allocation2 + $0x18] sm:$0xf] %vm1123, %v1199
      %1282 = vst.msk [vmem:[#allocation2 + $0x1c] sm:$0xf] %vm1123, %v1200
      %1283 = vst.msk [vmem:[#allocation2 + $0x20] sm:$0xf] %vm1123, %v1201
      %1284 = vst.msk [vmem:[#allocation2 + $0x24] sm:$0xf] %vm1123, %v1202
      %1285 = vst.msk [vmem:[#allocation2 + $0x28] sm:$0xf] %vm1123, %v1203
      %1286 = vst.msk [vmem:[#allocation2 + $0x2c] sm:$0xf] %vm1123, %v1204
      %1287 = vst.msk [vmem:[#allocation2 + $0x30] sm:$0xf] %vm1123, %v1205
      %1288 = vst.msk [vmem:[#allocation2 + $0x34] sm:$0xf] %vm1123, %v1206
      %1289 = vst.msk [vmem:[#allocation2 + $0x38] sm:$0xf] %vm1123, %v1207
      %1290 = vst.msk [vmem:[#allocation2 + $0x3c] sm:$0xf] %vm1123, %v1208
      %1291 = vst.msk [vmem:[#allocation2 + $0x40] sm:$0xf] %vm1123, %v1209
      %1292 = vst.msk [vmem:[#allocation2 + $0x44] sm:$0xf] %vm1123, %v1210
      %1293 = vst.msk [vmem:[#allocation2 + $0x48] sm:$0xf] %vm1123, %v1211
      %1294 = vst.msk [vmem:[#allocation2 + $0x4c] sm:$0xf] %vm1123, %v1212
      %1295 = vst.msk [vmem:[#allocation2 + $0x50] sm:$0xf] %vm1123, %v1213
      %1296 = vst.msk [vmem:[#allocation2 + $0x54] sm:$0xf] %vm1123, %v1214
      %1297 = vst.msk [vmem:[#allocation2 + $0x58] sm:$0xf] %vm1123, %v1215
      %1298 = vst.msk [vmem:[#allocation2 + $0x5c] sm:$0xf] %vm1123, %v1216
      %1299 = vst.msk [vmem:[#allocation2 + $0x60] sm:$0xf] %vm1123, %v1217
      %1300 = vst.msk [vmem:[#allocation2 + $0x64] sm:$0xf] %vm1123, %v1218
      %1301 = vst.msk [vmem:[#allocation2 + $0x68] sm:$0xf] %vm1123, %v1219
      %1302 = vst.msk [vmem:[#allocation2 + $0x6c] sm:$0xf] %vm1123, %v1220
      %1303 = vst.msk [vmem:[#allocation2 + $0x70] sm:$0xf] %vm1123, %v1221
      %1304 = vst.msk [vmem:[#allocation2 + $0x74] sm:$0xf] %vm1123, %v1222
      %1305 = vst.msk [vmem:[#allocation2 + $0x78] sm:$0xf] %vm1123, %v1223
      %1306 = vst.msk [vmem:[#allocation2 + $0x7c] sm:$0xf] %vm1123, %v1224
      %1307 = vst.msk [vmem:[#allocation2 + $0x80] sm:$0xf] %vm1123, %v1225
      %1308 = vst.msk [vmem:[#allocation2 + $0x84] sm:$0xf] %vm1123, %v1226
      %1309 = vst.msk [vmem:[#allocation2 + $0x88] sm:$0xf] %vm1123, %v1227
      %1310 = vst.msk [vmem:[#allocation2 + $0x8c] sm:$0xf] %vm1123, %v1228
      %1311 = vst.msk [vmem:[#allocation2 + $0x90] sm:$0xf] %vm1123, %v1229
      %1312 = vst.msk [vmem:[#allocation2 + $0x94] sm:$0xf] %vm1123, %v1230
      %1313 = vst.msk [vmem:[#allocation2 + $0x98] sm:$0xf] %vm1123, %v1231
      %1314 = vst.msk [vmem:[#allocation2 + $0x9c] sm:$0xf] %vm1123, %v1232
      %1315 = vst.msk [vmem:[#allocation2 + $0xa0] sm:$0xf] %vm1123, %v1233
      %1316 = vst.msk [vmem:[#allocation2 + $0xa4] sm:$0xf] %vm1123, %v1234
      %1317 = vst.msk [vmem:[#allocation2 + $0xa8] sm:$0xf] %vm1123, %v1235
      %1318 = vst.msk [vmem:[#allocation2 + $0xac] sm:$0xf] %vm1123, %v1236
      %1319 = vst.msk [vmem:[#allocation2 + $0xb0] sm:$0x3] %vm1133, %v1237
      %v1320 = vld [vmem:[%s5] sm:$0x1]
      %v1322 = vlaneseq
      %v1323 = vshrl.u32 %v1322, 7
      %v1324 = vsub.s32 0, %v1323
      %v1325 = vrot.slane %v1320, %v1324
      %1326 = vrot.lane.b32.xlu0 %v1325, 8
      %v1327 = vpop.permute.xlu0 %1326
      %v1329 = vadd.f32 %v527, %v1327
      %v1330 = vadd.f32 %v530, %v1327
      %v1331 = vadd.f32 %v535, %v1327
      %v1332 = vadd.f32 %v538, %v1327
      %v1333 = vadd.f32 %v543, %v1327
      %v1334 = vadd.f32 %v546, %v1327
      %v1335 = vadd.f32 %v551, %v1327
      %v1336 = vadd.f32 %v554, %v1327
      %v1337 = vadd.f32 %v559, %v1327
      %v1338 = vadd.f32 %v562, %v1327
      %v1339 = vadd.f32 %v567, %v1327
      %v1340 = vadd.f32 %v570, %v1327
      %v1341 = vadd.f32 %v575, %v1327
      %v1342 = vadd.f32 %v578, %v1327
      %v1343 = vadd.f32 %v583, %v1327
      %v1344 = vadd.f32 %v586, %v1327
      %v1345 = vadd.f32 %v591, %v1327
      %v1346 = vadd.f32 %v594, %v1327
      %v1347 = vadd.f32 %v599, %v1327
      %v1348 = vadd.f32 %v602, %v1327
      %v1349 = vadd.f32 %v607, %v1327
      %v1350 = vadd.f32 %v610, %v1327
      %v1351 = vadd.f32 %v615, %v1327
      %v1352 = vadd.f32 %v618, %v1327
      %v1353 = vadd.f32 %v623, %v1327
      %v1354 = vadd.f32 %v626, %v1327
      %v1355 = vadd.f32 %v631, %v1327
      %v1356 = vadd.f32 %v634, %v1327
      %v1357 = vadd.f32 %v639, %v1327
      %v1358 = vadd.f32 %v642, %v1327
      %v1359 = vadd.f32 %v647, %v1327
      %v1360 = vadd.f32 %v650, %v1327
      %v1361 = vadd.f32 %v655, %v1327
      %v1362 = vadd.f32 %v658, %v1327
      %v1363 = vadd.f32 %v663, %v1327
      %v1364 = vadd.f32 %v666, %v1327
      %v1365 = vadd.f32 %v671, %v1327
      %v1366 = vadd.f32 %v674, %v1327
      %v1367 = vadd.f32 %v679, %v1327
      %v1368 = vadd.f32 %v682, %v1327
      %v1369 = vadd.f32 %v687, %v1327
      %v1370 = vld [vmem:[#allocation2 + $0x4] sm:$0xc]
      %v1371 = vld [vmem:[#allocation2 + $0x8] sm:$0xf]
      %v1372 = vld [vmem:[#allocation2 + $0xc] sm:$0xf]
      %v1373 = vld [vmem:[#allocation2 + $0x10] sm:$0xf]
      %v1374 = vld [vmem:[#allocation2 + $0x14] sm:$0xf]
      %v1375 = vld [vmem:[#allocation2 + $0x18] sm:$0xf]
      %v1376 = vld [vmem:[#allocation2 + $0x1c] sm:$0xf]
      %v1377 = vld [vmem:[#allocation2 + $0x20] sm:$0xf]
      %v1378 = vld [vmem:[#allocation2 + $0x24] sm:$0xf]
      %v1379 = vld [vmem:[#allocation2 + $0x28] sm:$0xf]
      %v1380 = vld [vmem:[#allocation2 + $0x2c] sm:$0xf]
      %v1381 = vld [vmem:[#allocation2 + $0x30] sm:$0xf]
      %v1382 = vld [vmem:[#allocation2 + $0x34] sm:$0xf]
      %v1383 = vld [vmem:[#allocation2 + $0x38] sm:$0xf]
      %v1384 = vld [vmem:[#allocation2 + $0x3c] sm:$0xf]
      %v1385 = vld [vmem:[#allocation2 + $0x40] sm:$0xf]
      %v1386 = vld [vmem:[#allocation2 + $0x44] sm:$0xf]
      %v1387 = vld [vmem:[#allocation2 + $0x48] sm:$0xf]
      %v1388 = vld [vmem:[#allocation2 + $0x4c] sm:$0xf]
      %v1389 = vld [vmem:[#allocation2 + $0x50] sm:$0xf]
      %v1390 = vld [vmem:[#allocation2 + $0x54] sm:$0xf]
      %v1391 = vld [vmem:[#allocation2 + $0x58] sm:$0xf]
      %v1392 = vld [vmem:[#allocation2 + $0x5c] sm:$0xf]
      %v1393 = vld [vmem:[#allocation2 + $0x60] sm:$0xf]
      %v1394 = vld [vmem:[#allocation2 + $0x64] sm:$0xf]
      %v1395 = vld [vmem:[#allocation2 + $0x68] sm:$0xf]
      %v1396 = vld [vmem:[#allocation2 + $0x6c] sm:$0xf]
      %v1397 = vld [vmem:[#allocation2 + $0x70] sm:$0xf]
      %v1398 = vld [vmem:[#allocation2 + $0x74] sm:$0xf]
      %v1399 = vld [vmem:[#allocation2 + $0x78] sm:$0xf]
      %v1400 = vld [vmem:[#allocation2 + $0x7c] sm:$0xf]
      %v1401 = vld [vmem:[#allocation2 + $0x80] sm:$0xf]
      %v1402 = vld [vmem:[#allocation2 + $0x84] sm:$0xf]
      %v1403 = vld [vmem:[#allocation2 + $0x88] sm:$0xf]
      %v1404 = vld [vmem:[#allocation2 + $0x8c] sm:$0xf]
      %v1405 = vld [vmem:[#allocation2 + $0x90] sm:$0xf]
      %v1406 = vld [vmem:[#allocation2 + $0x94] sm:$0xf]
      %v1407 = vld [vmem:[#allocation2 + $0x98] sm:$0xf]
      %v1408 = vld [vmem:[#allocation2 + $0x9c] sm:$0xf]
      %v1409 = vld [vmem:[#allocation2 + $0xa0] sm:$0xf]
      %v1410 = vld [vmem:[#allocation2 + $0xa4] sm:$0xf]
      %v1411 = vld [vmem:[#allocation2 + $0xa8] sm:$0x1]
      %v1412 = vld [vmem:[%s4] sm:$0xf]
      %v1455 = vunpack.c.l.b16 %v1370
      %v1456 = vunpack.c.l.b16 %v1371
      %v1457 = vunpack.c.l.b16 %v1372
      %v1458 = vunpack.c.l.b16 %v1373
      %v1459 = vunpack.c.l.b16 %v1374
      %v1460 = vunpack.c.l.b16 %v1375
      %v1461 = vunpack.c.l.b16 %v1376
      %v1462 = vunpack.c.l.b16 %v1377
      %v1463 = vunpack.c.l.b16 %v1378
      %v1464 = vunpack.c.l.b16 %v1379
      %v1465 = vunpack.c.l.b16 %v1380
      %v1466 = vunpack.c.l.b16 %v1381
      %v1467 = vunpack.c.l.b16 %v1382
      %v1468 = vunpack.c.l.b16 %v1383
      %v1469 = vunpack.c.l.b16 %v1384
      %v1470 = vunpack.c.l.b16 %v1385
      %v1471 = vunpack.c.l.b16 %v1386
      %v1472 = vunpack.c.l.b16 %v1387
      %v1473 = vunpack.c.l.b16 %v1388
      %v1474 = vunpack.c.l.b16 %v1389
      %v1475 = vunpack.c.l.b16 %v1390
      %v1476 = vunpack.c.l.b16 %v1391
      %v1477 = vunpack.c.l.b16 %v1392
      %v1478 = vunpack.c.l.b16 %v1393
      %v1479 = vunpack.c.l.b16 %v1394
      %v1480 = vunpack.c.l.b16 %v1395
      %v1481 = vunpack.c.l.b16 %v1396
      %v1482 = vunpack.c.l.b16 %v1397
      %v1483 = vunpack.c.l.b16 %v1398
      %v1484 = vunpack.c.l.b16 %v1399
      %v1485 = vunpack.c.l.b16 %v1400
      %v1486 = vunpack.c.l.b16 %v1401
      %v1487 = vunpack.c.l.b16 %v1402
      %v1488 = vunpack.c.l.b16 %v1403
      %v1489 = vunpack.c.l.b16 %v1404
      %v1490 = vunpack.c.l.b16 %v1405
      %v1491 = vunpack.c.l.b16 %v1406
      %v1492 = vunpack.c.l.b16 %v1407
      %v1493 = vunpack.c.l.b16 %v1408
      %v1494 = vunpack.c.l.b16 %v1409
      %v1495 = vunpack.c.l.b16 %v1410
      %v1496 = vunpack.c.l.b16 %v1411
      %v1497 = vpack.c.b16 %v1456, %v1455
      %v1498 = vpack.c.b16 %v1458, %v1457
      %v1499 = vpack.c.b16 %v1460, %v1459
      %v1500 = vpack.c.b16 %v1462, %v1461
      %v1501 = vpack.c.b16 %v1464, %v1463
      %v1502 = vpack.c.b16 %v1466, %v1465
      %v1503 = vpack.c.b16 %v1468, %v1467
      %v1504 = vpack.c.b16 %v1470, %v1469
      %v1505 = vpack.c.b16 %v1472, %v1471
      %v1506 = vpack.c.b16 %v1474, %v1473
      %v1507 = vpack.c.b16 %v1476, %v1475
      %v1508 = vpack.c.b16 %v1478, %v1477
      %v1509 = vpack.c.b16 %v1480, %v1479
      %v1510 = vpack.c.b16 %v1482, %v1481
      %v1511 = vpack.c.b16 %v1484, %v1483
      %v1512 = vpack.c.b16 %v1486, %v1485
      %v1513 = vpack.c.b16 %v1488, %v1487
      %v1514 = vpack.c.b16 %v1490, %v1489
      %v1515 = vpack.c.b16 %v1492, %v1491
      %v1516 = vpack.c.b16 %v1494, %v1493
      %v1517 = vpack.c.b16 %v1496, %v1495
      %vm1518 = vsmask.f32 5376
      %v1520 = vshrl.u32 %v1497, 16
      %v1522 = vrot.slane %v1520, 2
      %v1523 = vshll.u32 %v1497, 16
      %v1525 = vrot.slane %v1523, 3
      %v1526 = vor.u32 %v1522, %v1525
      %v1528 = vshrl.u32 %v1498, 16
      %v1530 = vrot.slane %v1528, 2
      %v1531 = vshll.u32 %v1498, 16
      %v1533 = vrot.slane %v1531, 3
      %v1534 = vor.u32 %v1530, %v1533
      %v1535 = vsel %vm1518, %v1526, %v1534
      %v1537 = vshrl.u32 %v1499, 16
      %v1539 = vrot.slane %v1537, 2
      %v1540 = vshll.u32 %v1499, 16
      %v1542 = vrot.slane %v1540, 3
      %v1543 = vor.u32 %v1539, %v1542
      %v1544 = vsel %vm1518, %v1534, %v1543
      %v1546 = vshrl.u32 %v1500, 16
      %v1548 = vrot.slane %v1546, 2
      %v1549 = vshll.u32 %v1500, 16
      %v1551 = vrot.slane %v1549, 3
      %v1552 = vor.u32 %v1548, %v1551
      %v1553 = vsel %vm1518, %v1543, %v1552
      %v1555 = vshrl.u32 %v1501, 16
      %v1557 = vrot.slane %v1555, 2
      %v1558 = vshll.u32 %v1501, 16
      %v1560 = vrot.slane %v1558, 3
      %v1561 = vor.u32 %v1557, %v1560
      %v1562 = vsel %vm1518, %v1552, %v1561
      %v1564 = vshrl.u32 %v1502, 16
      %v1566 = vrot.slane %v1564, 2
      %v1567 = vshll.u32 %v1502, 16
      %v1569 = vrot.slane %v1567, 3
      %v1570 = vor.u32 %v1566, %v1569
      %v1571 = vsel %vm1518, %v1561, %v1570
      %v1573 = vshrl.u32 %v1503, 16
      %v1575 = vrot.slane %v1573, 2
      %v1576 = vshll.u32 %v1503, 16
      %v1578 = vrot.slane %v1576, 3
      %v1579 = vor.u32 %v1575, %v1578
      %v1580 = vsel %vm1518, %v1570, %v1579
      %v1582 = vshrl.u32 %v1504, 16
      %v1584 = vrot.slane %v1582, 2
      %v1585 = vshll.u32 %v1504, 16
      %v1587 = vrot.slane %v1585, 3
      %v1588 = vor.u32 %v1584, %v1587
      %v1589 = vsel %vm1518, %v1579, %v1588
      %v1591 = vshrl.u32 %v1505, 16
      %v1593 = vrot.slane %v1591, 2
      %v1594 = vshll.u32 %v1505, 16
      %v1596 = vrot.slane %v1594, 3
      %v1597 = vor.u32 %v1593, %v1596
      %v1598 = vsel %vm1518, %v1588, %v1597
      %v1600 = vshrl.u32 %v1506, 16
      %v1602 = vrot.slane %v1600, 2
      %v1603 = vshll.u32 %v1506, 16
      %v1605 = vrot.slane %v1603, 3
      %v1606 = vor.u32 %v1602, %v1605
      %v1607 = vsel %vm1518, %v1597, %v1606
      %v1609 = vshrl.u32 %v1507, 16
      %v1611 = vrot.slane %v1609, 2
      %v1612 = vshll.u32 %v1507, 16
      %v1614 = vrot.slane %v1612, 3
      %v1615 = vor.u32 %v1611, %v1614
      %v1616 = vsel %vm1518, %v1606, %v1615
      %v1618 = vshrl.u32 %v1508, 16
      %v1620 = vrot.slane %v1618, 2
      %v1621 = vshll.u32 %v1508, 16
      %v1623 = vrot.slane %v1621, 3
      %v1624 = vor.u32 %v1620, %v1623
      %v1625 = vsel %vm1518, %v1615, %v1624
      %v1627 = vshrl.u32 %v1509, 16
      %v1629 = vrot.slane %v1627, 2
      %v1630 = vshll.u32 %v1509, 16
      %v1632 = vrot.slane %v1630, 3
      %v1633 = vor.u32 %v1629, %v1632
      %v1634 = vsel %vm1518, %v1624, %v1633
      %v1636 = vshrl.u32 %v1510, 16
      %v1638 = vrot.slane %v1636, 2
      %v1639 = vshll.u32 %v1510, 16
      %v1641 = vrot.slane %v1639, 3
      %v1642 = vor.u32 %v1638, %v1641
      %v1643 = vsel %vm1518, %v1633, %v1642
      %v1645 = vshrl.u32 %v1511, 16
      %v1647 = vrot.slane %v1645, 2
      %v1648 = vshll.u32 %v1511, 16
      %v1650 = vrot.slane %v1648, 3
      %v1651 = vor.u32 %v1647, %v1650
      %v1652 = vsel %vm1518, %v1642, %v1651
      %v1654 = vshrl.u32 %v1512, 16
      %v1656 = vrot.slane %v1654, 2
      %v1657 = vshll.u32 %v1512, 16
      %v1659 = vrot.slane %v1657, 3
      %v1660 = vor.u32 %v1656, %v1659
      %v1661 = vsel %vm1518, %v1651, %v1660
      %v1663 = vshrl.u32 %v1513, 16
      %v1665 = vrot.slane %v1663, 2
      %v1666 = vshll.u32 %v1513, 16
      %v1668 = vrot.slane %v1666, 3
      %v1669 = vor.u32 %v1665, %v1668
      %v1670 = vsel %vm1518, %v1660, %v1669
      %v1672 = vshrl.u32 %v1514, 16
      %v1674 = vrot.slane %v1672, 2
      %v1675 = vshll.u32 %v1514, 16
      %v1677 = vrot.slane %v1675, 3
      %v1678 = vor.u32 %v1674, %v1677
      %v1679 = vsel %vm1518, %v1669, %v1678
      %v1681 = vshrl.u32 %v1515, 16
      %v1683 = vrot.slane %v1681, 2
      %v1684 = vshll.u32 %v1515, 16
      %v1686 = vrot.slane %v1684, 3
      %v1687 = vor.u32 %v1683, %v1686
      %v1688 = vsel %vm1518, %v1678, %v1687
      %v1690 = vshrl.u32 %v1516, 16
      %v1692 = vrot.slane %v1690, 2
      %v1693 = vshll.u32 %v1516, 16
      %v1695 = vrot.slane %v1693, 3
      %v1696 = vor.u32 %v1692, %v1695
      %v1697 = vsel %vm1518, %v1687, %v1696
      %v1699 = vshrl.u32 %v1517, 16
      %v1701 = vrot.slane %v1699, 2
      %v1702 = vshll.u32 %v1517, 16
      %v1704 = vrot.slane %v1702, 3
      %v1705 = vor.u32 %v1701, %v1704
      %v1706 = vsel %vm1518, %v1696, %v1705
      %vm1707 = vcmask 64512
      %v1709 = vsel %vm1707, %v1535, 0
      %v1712 = vsel %vm1707, %v1544, 0
      %v1715 = vsel %vm1707, %v1553, 0
      %v1718 = vsel %vm1707, %v1562, 0
      %v1721 = vsel %vm1707, %v1571, 0
      %v1724 = vsel %vm1707, %v1580, 0
      %v1727 = vsel %vm1707, %v1589, 0
      %v1730 = vsel %vm1707, %v1598, 0
      %v1733 = vsel %vm1707, %v1607, 0
      %v1736 = vsel %vm1707, %v1616, 0
      %v1739 = vsel %vm1707, %v1625, 0
      %v1742 = vsel %vm1707, %v1634, 0
      %v1745 = vsel %vm1707, %v1643, 0
      %v1748 = vsel %vm1707, %v1652, 0
      %v1751 = vsel %vm1707, %v1661, 0
      %v1754 = vsel %vm1707, %v1670, 0
      %v1757 = vsel %vm1707, %v1679, 0
      %v1760 = vsel %vm1707, %v1688, 0
      %v1763 = vsel %vm1707, %v1697, 0
      %v1766 = vsel %vm1707, %v1706, 0
      %v1769 = vsel %vm1707, %v1705, 0
      %vm1771 = vcmask 1043456
      %v1773 = vsel %vm1771, %v1412, 0
      %1775 = vmatprep.subr.bf16.mxu0 0
      %1776 = vmatpush1.bf16.msra.mxu0 %v1773
      %1777 = vmatprep.subr.bf16.mxu0 0
      %1778 = vmatpush1.bf16.msra.mxu0 0
      %1779 = vmatprep.subr.bf16.mxu0 0
      %1780 = vmatpush1.bf16.msra.mxu0 0
      %1781 = vmatprep.subr.bf16.mxu0 0
      %1782 = vmatpush1.bf16.msra.mxu0 0
      %1783 = vmatprep.subr.bf16.mxu0 0
      %1784 = vmatpush1.bf16.msra.mxu0 0
      %1785 = vmatprep.subr.bf16.mxu0 0
      %1786 = vmatpush1.bf16.msra.mxu0 0
      %1787 = vmatprep.subr.bf16.mxu0 0
      %1788 = vmatpush1.bf16.msra.mxu0 0
      %1789 = vmatprep.subr.bf16.mxu0 0
      %1790 = vmatpush1.bf16.msra.mxu0 0
      %1791 = vmatprep.subr.bf16.mxu0 0
      %1792 = vmatpush1.bf16.msra.mxu0 0
      %1793 = vmatprep.subr.bf16.mxu0 0
      %1794 = vmatpush1.bf16.msra.mxu0 0
      %1795 = vmatprep.subr.bf16.mxu0 0
      %1796 = vmatpush1.bf16.msra.mxu0 0
      %1797 = vmatprep.subr.bf16.mxu0 0
      %1798 = vmatpush1.bf16.msra.mxu0 0
      %1799 = vmatprep.subr.bf16.mxu0 0
      %1800 = vmatpush1.bf16.msra.mxu0 0
      %1801 = vmatprep.subr.bf16.mxu0 0
      %1802 = vmatpush1.bf16.msra.mxu0 0
      %1803 = vmatprep.subr.bf16.mxu0 0
      %1804 = vmatpush1.bf16.msra.mxu0 0
      %1805 = vmatprep.subr.bf16.mxu0 0
      %1806 = vmatpush1.bf16.msra.mxu0 0
      %1807 = vmatprep.mubr.bf16.mxu0 0
      %1808 = vmatmul.mubr.bf16.gmra.mrb[0].mxu0 %v1709
      %v1809 = vpop.f32.mrb[0].mxu0
      %v1810 = vadd.f32 0.0, %v1809
      %v1811 = vpop.f32.mrb[0].mxu0
      %v1812 = vpop.f32.mrb[0].mxu0
      %v1813 = vadd.f32 0.0, %v1812
      %v1814 = vpop.f32.mrb[0].mxu0
      %1815 = vmatprep.mubr.bf16.mxu0 0
      %1816 = vmatmul.mubr.bf16.gmra.mrb[0].mxu0 %v1712
      %v1817 = vpop.f32.mrb[0].mxu0
      %v1818 = vadd.f32 0.0, %v1817
      %v1819 = vpop.f32.mrb[0].mxu0
      %v1820 = vpop.f32.mrb[0].mxu0
      %v1821 = vadd.f32 0.0, %v1820
      %v1822 = vpop.f32.mrb[0].mxu0
      %1823 = vmatprep.mubr.bf16.mxu0 0
      %1824 = vmatmul.mubr.bf16.gmra.mrb[0].mxu0 %v1715
      %v1825 = vpop.f32.mrb[0].mxu0
      %v1826 = vadd.f32 0.0, %v1825
      %v1827 = vpop.f32.mrb[0].mxu0
      %v1828 = vpop.f32.mrb[0].mxu0
      %v1829 = vadd.f32 0.0, %v1828
      %v1830 = vpop.f32.mrb[0].mxu0
      %1831 = vmatprep.mubr.bf16.mxu0 0
      %1832 = vmatmul.mubr.bf16.gmra.mrb[0].mxu0 %v1718
      %v1833 = vpop.f32.mrb[0].mxu0
      %v1834 = vadd.f32 0.0, %v1833
      %v1835 = vpop.f32.mrb[0].mxu0
      %v1836 = vpop.f32.mrb[0].mxu0
      %v1837 = vadd.f32 0.0, %v1836
      %v1838 = vpop.f32.mrb[0].mxu0
      %1839 = vmatprep.mubr.bf16.mxu0 0
      %1840 = vmatmul.mubr.bf16.gmra.mrb[0].mxu0 %v1721
      %v1841 = vpop.f32.mrb[0].mxu0
      %v1842 = vadd.f32 0.0, %v1841
      %v1843 = vpop.f32.mrb[0].mxu0
      %v1844 = vpop.f32.mrb[0].mxu0
      %v1845 = vadd.f32 0.0, %v1844
      %v1846 = vpop.f32.mrb[0].mxu0
      %1847 = vmatprep.mubr.bf16.mxu0 0
      %1848 = vmatmul.mubr.bf16.gmra.mrb[0].mxu0 %v1724
      %v1849 = vpop.f32.mrb[0].mxu0
      %v1850 = vadd.f32 0.0, %v1849
      %v1851 = vpop.f32.mrb[0].mxu0
      %v1852 = vpop.f32.mrb[0].mxu0
      %v1853 = vadd.f32 0.0, %v1852
      %v1854 = vpop.f32.mrb[0].mxu0
      %1855 = vmatprep.mubr.bf16.mxu0 0
      %1856 = vmatmul.mubr.bf16.gmra.mrb[0].mxu0 %v1727
      %v1857 = vpop.f32.mrb[0].mxu0
      %v1858 = vadd.f32 0.0, %v1857
      %v1859 = vpop.f32.mrb[0].mxu0
      %v1860 = vpop.f32.mrb[0].mxu0
      %v1861 = vadd.f32 0.0, %v1860
      %v1862 = vpop.f32.mrb[0].mxu0
      %1863 = vmatprep.mubr.bf16.mxu0 0
      %1864 = vmatmul.mubr.bf16.gmra.mrb[0].mxu0 %v1730
      %v1865 = vpop.f32.mrb[0].mxu0
      %v1866 = vadd.f32 0.0, %v1865
      %v1867 = vpop.f32.mrb[0].mxu0
      %v1868 = vpop.f32.mrb[0].mxu0
      %v1869 = vadd.f32 0.0, %v1868
      %v1870 = vpop.f32.mrb[0].mxu0
      %1871 = vmatprep.mubr.bf16.mxu0 0
      %1872 = vmatmul.mubr.bf16.gmra.mrb[0].mxu0 %v1733
      %v1873 = vpop.f32.mrb[0].mxu0
      %v1874 = vadd.f32 0.0, %v1873
      %v1875 = vpop.f32.mrb[0].mxu0
      %v1876 = vpop.f32.mrb[0].mxu0
      %v1877 = vadd.f32 0.0, %v1876
      %v1878 = vpop.f32.mrb[0].mxu0
      %1879 = vmatprep.mubr.bf16.mxu0 0
      %1880 = vmatmul.mubr.bf16.gmra.mrb[0].mxu0 %v1736
      %v1881 = vpop.f32.mrb[0].mxu0
      %v1882 = vadd.f32 0.0, %v1881
      %v1883 = vpop.f32.mrb[0].mxu0
      %v1884 = vpop.f32.mrb[0].mxu0
      %v1885 = vadd.f32 0.0, %v1884
      %v1886 = vpop.f32.mrb[0].mxu0
      %1887 = vmatprep.mubr.bf16.mxu0 0
      %1888 = vmatmul.mubr.bf16.gmra.mrb[0].mxu0 %v1739
      %v1889 = vpop.f32.mrb[0].mxu0
      %v1890 = vadd.f32 0.0, %v1889
      %v1891 = vpop.f32.mrb[0].mxu0
      %v1892 = vpop.f32.mrb[0].mxu0
      %v1893 = vadd.f32 0.0, %v1892
      %v1894 = vpop.f32.mrb[0].mxu0
      %1895 = vmatprep.mubr.bf16.mxu0 0
      %1896 = vmatmul.mubr.bf16.gmra.mrb[0].mxu0 %v1742
      %v1897 = vpop.f32.mrb[0].mxu0
      %v1898 = vadd.f32 0.0, %v1897
      %v1899 = vpop.f32.mrb[0].mxu0
      %v1900 = vpop.f32.mrb[0].mxu0
      %v1901 = vadd.f32 0.0, %v1900
      %v1902 = vpop.f32.mrb[0].mxu0
      %1903 = vmatprep.mubr.bf16.mxu0 0
      %1904 = vmatmul.mubr.bf16.gmra.mrb[0].mxu0 %v1745
      %v1905 = vpop.f32.mrb[0].mxu0
      %v1906 = vadd.f32 0.0, %v1905
      %v1907 = vpop.f32.mrb[0].mxu0
      %v1908 = vpop.f32.mrb[0].mxu0
      %v1909 = vadd.f32 0.0, %v1908
      %v1910 = vpop.f32.mrb[0].mxu0
      %1911 = vmatprep.mubr.bf16.mxu0 0
      %1912 = vmatmul.mubr.bf16.gmra.mrb[0].mxu0 %v1748
      %v1913 = vpop.f32.mrb[0].mxu0
      %v1914 = vadd.f32 0.0, %v1913
      %v1915 = vpop.f32.mrb[0].mxu0
      %v1916 = vpop.f32.mrb[0].mxu0
      %v1917 = vadd.f32 0.0, %v1916
      %v1918 = vpop.f32.mrb[0].mxu0
      %1919 = vmatprep.mubr.bf16.mxu0 0
      %1920 = vmatmul.mubr.bf16.gmra.mrb[0].mxu0 %v1751
      %v1921 = vpop.f32.mrb[0].mxu0
      %v1922 = vadd.f32 0.0, %v1921
      %v1923 = vpop.f32.mrb[0].mxu0
      %v1924 = vpop.f32.mrb[0].mxu0
      %v1925 = vadd.f32 0.0, %v1924
      %v1926 = vpop.f32.mrb[0].mxu0
      %1927 = vmatprep.mubr.bf16.mxu0 0
      %1928 = vmatmul.mubr.bf16.gmra.mrb[0].mxu0 %v1754
      %v1929 = vpop.f32.mrb[0].mxu0
      %v1930 = vadd.f32 0.0, %v1929
      %v1931 = vpop.f32.mrb[0].mxu0
      %v1932 = vpop.f32.mrb[0].mxu0
      %v1933 = vadd.f32 0.0, %v1932
      %v1934 = vpop.f32.mrb[0].mxu0
      %1935 = vmatprep.mubr.bf16.mxu0 0
      %1936 = vmatmul.mubr.bf16.gmra.mrb[0].mxu0 %v1757
      %v1937 = vpop.f32.mrb[0].mxu0
      %v1938 = vadd.f32 0.0, %v1937
      %v1939 = vpop.f32.mrb[0].mxu0
      %v1940 = vpop.f32.mrb[0].mxu0
      %v1941 = vadd.f32 0.0, %v1940
      %v1942 = vpop.f32.mrb[0].mxu0
      %1943 = vmatprep.mubr.bf16.mxu0 0
      %1944 = vmatmul.mubr.bf16.gmra.mrb[0].mxu0 %v1760
      %v1945 = vpop.f32.mrb[0].mxu0
      %v1946 = vadd.f32 0.0, %v1945
      %v1947 = vpop.f32.mrb[0].mxu0
      %v1948 = vpop.f32.mrb[0].mxu0
      %v1949 = vadd.f32 0.0, %v1948
      %v1950 = vpop.f32.mrb[0].mxu0
      %1951 = vmatprep.mubr.bf16.mxu0 0
      %1952 = vmatmul.mubr.bf16.gmra.mrb[0].mxu0 %v1763
      %v1953 = vpop.f32.mrb[0].mxu0
      %v1954 = vadd.f32 0.0, %v1953
      %v1955 = vpop.f32.mrb[0].mxu0
      %v1956 = vpop.f32.mrb[0].mxu0
      %v1957 = vadd.f32 0.0, %v1956
      %v1958 = vpop.f32.mrb[0].mxu0
      %1959 = vmatprep.mubr.bf16.mxu0 0
      %1960 = vmatmul.mubr.bf16.gmra.mrb[0].mxu0 %v1766
      %v1961 = vpop.f32.mrb[0].mxu0
      %v1962 = vadd.f32 0.0, %v1961
      %v1963 = vpop.f32.mrb[0].mxu0
      %v1964 = vpop.f32.mrb[0].mxu0
      %v1965 = vadd.f32 0.0, %v1964
      %v1966 = vpop.f32.mrb[0].mxu0
      %1967 = vmatprep.mubr.bf16.mxu0 0
      %1968 = vmatmul.mubr.bf16.gmra.mrb[0].mxu0 %v1769
      %v1969 = vpop.f32.mrb[0].mxu0
      %v1970 = vadd.f32 0.0, %v1969
      %v1971 = vpop.f32.mrb[0].mxu0
      %v1972 = vpop.f32.mrb[0].mxu0
      %v1973 = vpop.f32.mrb[0].mxu0
      %1974 = vdwg.mxu0
      %2016 = vrot.lane.b32.xlu0 %v1810, 8
      %v2017 = vpop.permute.xlu0 %2016
      %2018 = vrot.lane.b32.xlu0 %v1813, 8
      %v2019 = vpop.permute.xlu0 %2018
      %2020 = vrot.lane.b32.xlu0 %v1818, 8
      %v2021 = vpop.permute.xlu0 %2020
      %2022 = vrot.lane.b32.xlu0 %v1821, 8
      %v2023 = vpop.permute.xlu0 %2022
      %2024 = vrot.lane.b32.xlu0 %v1826, 8
      %v2025 = vpop.permute.xlu0 %2024
      %2026 = vrot.lane.b32.xlu0 %v1829, 8
      %v2027 = vpop.permute.xlu0 %2026
      %2028 = vrot.lane.b32.xlu0 %v1834, 8
      %v2029 = vpop.permute.xlu0 %2028
      %2030 = vrot.lane.b32.xlu0 %v1837, 8
      %v2031 = vpop.permute.xlu0 %2030
      %2032 = vrot.lane.b32.xlu0 %v1842, 8
      %v2033 = vpop.permute.xlu0 %2032
      %2034 = vrot.lane.b32.xlu0 %v1845, 8
      %v2035 = vpop.permute.xlu0 %2034
      %2036 = vrot.lane.b32.xlu0 %v1850, 8
      %v2037 = vpop.permute.xlu0 %2036
      %2038 = vrot.lane.b32.xlu0 %v1853, 8
      %v2039 = vpop.permute.xlu0 %2038
      %2040 = vrot.lane.b32.xlu0 %v1858, 8
      %v2041 = vpop.permute.xlu0 %2040
      %2042 = vrot.lane.b32.xlu0 %v1861, 8
      %v2043 = vpop.permute.xlu0 %2042
      %2044 = vrot.lane.b32.xlu0 %v1866, 8
      %v2045 = vpop.permute.xlu0 %2044
      %2046 = vrot.lane.b32.xlu0 %v1869, 8
      %v2047 = vpop.permute.xlu0 %2046
      %2048 = vrot.lane.b32.xlu0 %v1874, 8
      %v2049 = vpop.permute.xlu0 %2048
      %2050 = vrot.lane.b32.xlu0 %v1877, 8
      %v2051 = vpop.permute.xlu0 %2050
      %2052 = vrot.lane.b32.xlu0 %v1882, 8
      %v2053 = vpop.permute.xlu0 %2052
      %2054 = vrot.lane.b32.xlu0 %v1885, 8
      %v2055 = vpop.permute.xlu0 %2054
      %2056 = vrot.lane.b32.xlu0 %v1890, 8
      %v2057 = vpop.permute.xlu0 %2056
      %2058 = vrot.lane.b32.xlu0 %v1893, 8
      %v2059 = vpop.permute.xlu0 %2058
      %2060 = vrot.lane.b32.xlu0 %v1898, 8
      %v2061 = vpop.permute.xlu0 %2060
      %2062 = vrot.lane.b32.xlu0 %v1901, 8
      %v2063 = vpop.permute.xlu0 %2062
      %2064 = vrot.lane.b32.xlu0 %v1906, 8
      %v2065 = vpop.permute.xlu0 %2064
      %2066 = vrot.lane.b32.xlu0 %v1909, 8
      %v2067 = vpop.permute.xlu0 %2066
      %2068 = vrot.lane.b32.xlu0 %v1914, 8
      %v2069 = vpop.permute.xlu0 %2068
      %2070 = vrot.lane.b32.xlu0 %v1917, 8
      %v2071 = vpop.permute.xlu0 %2070
      %2072 = vrot.lane.b32.xlu0 %v1922, 8
      %v2073 = vpop.permute.xlu0 %2072
      %2074 = vrot.lane.b32.xlu0 %v1925, 8
      %v2075 = vpop.permute.xlu0 %2074
      %2076 = vrot.lane.b32.xlu0 %v1930, 8
      %v2077 = vpop.permute.xlu0 %2076
      %2078 = vrot.lane.b32.xlu0 %v1933, 8
      %v2079 = vpop.permute.xlu0 %2078
      %2080 = vrot.lane.b32.xlu0 %v1938, 8
      %v2081 = vpop.permute.xlu0 %2080
      %2082 = vrot.lane.b32.xlu0 %v1941, 8
      %v2083 = vpop.permute.xlu0 %2082
      %2084 = vrot.lane.b32.xlu0 %v1946, 8
      %v2085 = vpop.permute.xlu0 %2084
      %2086 = vrot.lane.b32.xlu0 %v1949, 8
      %v2087 = vpop.permute.xlu0 %2086
      %2088 = vrot.lane.b32.xlu0 %v1954, 8
      %v2089 = vpop.permute.xlu0 %2088
      %2090 = vrot.lane.b32.xlu0 %v1957, 8
      %v2091 = vpop.permute.xlu0 %2090
      %2092 = vrot.lane.b32.xlu0 %v1962, 8
      %v2093 = vpop.permute.xlu0 %2092
      %2094 = vrot.lane.b32.xlu0 %v1965, 8
      %v2095 = vpop.permute.xlu0 %2094
      %2096 = vrot.lane.b32.xlu0 %v1970, 8
      %v2097 = vpop.permute.xlu0 %2096
      %v2139 = vadd.f32 %v1329, %v2017
      %v2140 = vadd.f32 %v1330, %v2019
      %v2141 = vadd.f32 %v1331, %v2021
      %v2142 = vadd.f32 %v1332, %v2023
      %v2143 = vadd.f32 %v1333, %v2025
      %v2144 = vadd.f32 %v1334, %v2027
      %v2145 = vadd.f32 %v1335, %v2029
      %v2146 = vadd.f32 %v1336, %v2031
      %v2147 = vadd.f32 %v1337, %v2033
      %v2148 = vadd.f32 %v1338, %v2035
      %v2149 = vadd.f32 %v1339, %v2037
      %v2150 = vadd.f32 %v1340, %v2039
      %v2151 = vadd.f32 %v1341, %v2041
      %v2152 = vadd.f32 %v1342, %v2043
      %v2153 = vadd.f32 %v1343, %v2045
      %v2154 = vadd.f32 %v1344, %v2047
      %v2155 = vadd.f32 %v1345, %v2049
      %v2156 = vadd.f32 %v1346, %v2051
      %v2157 = vadd.f32 %v1347, %v2053
      %v2158 = vadd.f32 %v1348, %v2055
      %v2159 = vadd.f32 %v1349, %v2057
      %v2160 = vadd.f32 %v1350, %v2059
      %v2161 = vadd.f32 %v1351, %v2061
      %v2162 = vadd.f32 %v1352, %v2063
      %v2163 = vadd.f32 %v1353, %v2065
      %v2164 = vadd.f32 %v1354, %v2067
      %v2165 = vadd.f32 %v1355, %v2069
      %v2166 = vadd.f32 %v1356, %v2071
      %v2167 = vadd.f32 %v1357, %v2073
      %v2168 = vadd.f32 %v1358, %v2075
      %v2169 = vadd.f32 %v1359, %v2077
      %v2170 = vadd.f32 %v1360, %v2079
      %v2171 = vadd.f32 %v1361, %v2081
      %v2172 = vadd.f32 %v1362, %v2083
      %v2173 = vadd.f32 %v1363, %v2085
      %v2174 = vadd.f32 %v1364, %v2087
      %v2175 = vadd.f32 %v1365, %v2089
      %v2176 = vadd.f32 %v1366, %v2091
      %v2177 = vadd.f32 %v1367, %v2093
      %v2178 = vadd.f32 %v1368, %v2095
      %v2179 = vadd.f32 %v1369, %v2097
      %v2180 = vld [vmem:[#allocation2 + $0x4] sm:$0x8]
      %v2181 = vld [vmem:[%s4 + $0x4] sm:$0xf]
      %v2183 = vunpack.c.l.b16 %v2180
      %v2184 = vpack.c.b16 %v1456, %v2183
      %vm2185 = vcmask 1044480
      %v2186 = vrot.slane %v2184, 3
      %v2187 = vrot.slane %v1498, 3
      %v2188 = vsel %vm2185, %v2186, %v2187
      %v2189 = vrot.slane %v1499, 3
      %v2190 = vsel %vm2185, %v2187, %v2189
      %v2191 = vrot.slane %v1500, 3
      %v2192 = vsel %vm2185, %v2189, %v2191
      %v2193 = vrot.slane %v1501, 3
      %v2194 = vsel %vm2185, %v2191, %v2193
      %v2195 = vrot.slane %v1502, 3
      %v2196 = vsel %vm2185, %v2193, %v2195
      %v2197 = vrot.slane %v1503, 3
      %v2198 = vsel %vm2185, %v2195, %v2197
      %v2199 = vrot.slane %v1504, 3
      %v2200 = vsel %vm2185, %v2197, %v2199
      %v2201 = vrot.slane %v1505, 3
      %v2202 = vsel %vm2185, %v2199, %v2201
      %v2203 = vrot.slane %v1506, 3
      %v2204 = vsel %vm2185, %v2201, %v2203
      %v2205 = vrot.slane %v1507, 3
      %v2206 = vsel %vm2185, %v2203, %v2205
      %v2207 = vrot.slane %v1508, 3
      %v2208 = vsel %vm2185, %v2205, %v2207
      %v2209 = vrot.slane %v1509, 3
      %v2210 = vsel %vm2185, %v2207, %v2209
      %v2211 = vrot.slane %v1510, 3
      %v2212 = vsel %vm2185, %v2209, %v2211
      %v2213 = vrot.slane %v1511, 3
      %v2214 = vsel %vm2185, %v2211, %v2213
      %v2215 = vrot.slane %v1512, 3
      %v2216 = vsel %vm2185, %v2213, %v2215
      %v2217 = vrot.slane %v1513, 3
      %v2218 = vsel %vm2185, %v2215, %v2217
      %v2219 = vrot.slane %v1514, 3
      %v2220 = vsel %vm2185, %v2217, %v2219
      %v2221 = vrot.slane %v1515, 3
      %v2222 = vsel %vm2185, %v2219, %v2221
      %v2223 = vrot.slane %v1516, 3
      %v2224 = vsel %vm2185, %v2221, %v2223
      %v2225 = vrot.slane %v1517, 3
      %v2226 = vsel %vm2185, %v2223, %v2225
      %v2228 = vsel %vm1707, %v2188, 0
      %v2231 = vsel %vm1707, %v2190, 0
      %v2234 = vsel %vm1707, %v2192, 0
      %v2237 = vsel %vm1707, %v2194, 0
      %v2240 = vsel %vm1707, %v2196, 0
      %v2243 = vsel %vm1707, %v2198, 0
      %v2246 = vsel %vm1707, %v2200, 0
      %v2249 = vsel %vm1707, %v2202, 0
      %v2252 = vsel %vm1707, %v2204, 0
      %v2255 = vsel %vm1707, %v2206, 0
      %v2258 = vsel %vm1707, %v2208, 0
      %v2261 = vsel %vm1707, %v2210, 0
      %v2264 = vsel %vm1707, %v2212, 0
      %v2267 = vsel %vm1707, %v2214, 0
      %v2270 = vsel %vm1707, %v2216, 0
      %v2273 = vsel %vm1707, %v2218, 0
      %v2276 = vsel %vm1707, %v2220, 0
      %v2279 = vsel %vm1707, %v2222, 0
      %v2282 = vsel %vm1707, %v2224, 0
      %v2285 = vsel %vm1707, %v2226, 0
      %v2288 = vsel %vm1707, %v2225, 0
      %v2291 = vsel %vm1771, %v2181, 0
      %2293 = vmatprep.subr.bf16.mxu0 0
      %2294 = vmatpush1.bf16.msra.mxu0 %v2291
      %2295 = vmatprep.subr.bf16.mxu0 0
      %2296 = vmatpush1.bf16.msra.mxu0 0
      %2297 = vmatprep.subr.bf16.mxu0 0
      %2298 = vmatpush1.bf16.msra.mxu0 0
      %2299 = vmatprep.subr.bf16.mxu0 0
      %2300 = vmatpush1.bf16.msra.mxu0 0
      %2301 = vmatprep.subr.bf16.mxu0 0
      %2302 = vmatpush1.bf16.msra.mxu0 0
      %2303 = vmatprep.subr.bf16.mxu0 0
      %2304 = vmatpush1.bf16.msra.mxu0 0
      %2305 = vmatprep.subr.bf16.mxu0 0
      %2306 = vmatpush1.bf16.msra.mxu0 0
      %2307 = vmatprep.subr.bf16.mxu0 0
      %2308 = vmatpush1.bf16.msra.mxu0 0
      %2309 = vmatprep.subr.bf16.mxu0 0
      %2310 = vmatpush1.bf16.msra.mxu0 0
      %2311 = vmatprep.subr.bf16.mxu0 0
      %2312 = vmatpush1.bf16.msra.mxu0 0
      %2313 = vmatprep.subr.bf16.mxu0 0
      %2314 = vmatpush1.bf16.msra.mxu0 0
      %2315 = vmatprep.subr.bf16.mxu0 0
      %2316 = vmatpush1.bf16.msra.mxu0 0
      %2317 = vmatprep.subr.bf16.mxu0 0
      %2318 = vmatpush1.bf16.msra.mxu0 0
      %2319 = vmatprep.subr.bf16.mxu0 0
      %2320 = vmatpush1.bf16.msra.mxu0 0
      %2321 = vmatprep.subr.bf16.mxu0 0
      %2322 = vmatpush1.bf16.msra.mxu0 0
      %2323 = vmatprep.subr.bf16.mxu0 0
      %2324 = vmatpush1.bf16.msra.mxu0 0
      %2325 = vmatprep.mubr.bf16.mxu0 0
      %2326 = vmatmul.mubr.bf16.gmra.mrb[0].mxu0 %v2228
      %v2327 = vpop.f32.mrb[0].mxu0
      %v2328 = vadd.f32 0.0, %v2327
      %v2329 = vpop.f32.mrb[0].mxu0
      %v2330 = vpop.f32.mrb[0].mxu0
      %v2331 = vadd.f32 0.0, %v2330
      %v2332 = vpop.f32.mrb[0].mxu0
      %2333 = vmatprep.mubr.bf16.mxu0 0
      %2334 = vmatmul.mubr.bf16.gmra.mrb[0].mxu0 %v2231
      %v2335 = vpop.f32.mrb[0].mxu0
      %v2336 = vadd.f32 0.0, %v2335
      %v2337 = vpop.f32.mrb[0].mxu0
      %v2338 = vpop.f32.mrb[0].mxu0
      %v2339 = vadd.f32 0.0, %v2338
      %v2340 = vpop.f32.mrb[0].mxu0
      %2341 = vmatprep.mubr.bf16.mxu0 0
      %2342 = vmatmul.mubr.bf16.gmra.mrb[0].mxu0 %v2234
      %v2343 = vpop.f32.mrb[0].mxu0
      %v2344 = vadd.f32 0.0, %v2343
      %v2345 = vpop.f32.mrb[0].mxu0
      %v2346 = vpop.f32.mrb[0].mxu0
      %v2347 = vadd.f32 0.0, %v2346
      %v2348 = vpop.f32.mrb[0].mxu0
      %2349 = vmatprep.mubr.bf16.mxu0 0
      %2350 = vmatmul.mubr.bf16.gmra.mrb[0].mxu0 %v2237
      %v2351 = vpop.f32.mrb[0].mxu0
      %v2352 = vadd.f32 0.0, %v2351
      %v2353 = vpop.f32.mrb[0].mxu0
      %v2354 = vpop.f32.mrb[0].mxu0
      %v2355 = vadd.f32 0.0, %v2354
      %v2356 = vpop.f32.mrb[0].mxu0
      %2357 = vmatprep.mubr.bf16.mxu0 0
      %2358 = vmatmul.mubr.bf16.gmra.mrb[0].mxu0 %v2240
      %v2359 = vpop.f32.mrb[0].mxu0
      %v2360 = vadd.f32 0.0, %v2359
      %v2361 = vpop.f32.mrb[0].mxu0
      %v2362 = vpop.f32.mrb[0].mxu0
      %v2363 = vadd.f32 0.0, %v2362
      %v2364 = vpop.f32.mrb[0].mxu0
      %2365 = vmatprep.mubr.bf16.mxu0 0
      %2366 = vmatmul.mubr.bf16.gmra.mrb[0].mxu0 %v2243
      %v2367 = vpop.f32.mrb[0].mxu0
      %v2368 = vadd.f32 0.0, %v2367
      %v2369 = vpop.f32.mrb[0].mxu0
      %v2370 = vpop.f32.mrb[0].mxu0
      %v2371 = vadd.f32 0.0, %v2370
      %v2372 = vpop.f32.mrb[0].mxu0
      %2373 = vmatprep.mubr.bf16.mxu0 0
      %2374 = vmatmul.mubr.bf16.gmra.mrb[0].mxu0 %v2246
      %v2375 = vpop.f32.mrb[0].mxu0
      %v2376 = vadd.f32 0.0, %v2375
      %v2377 = vpop.f32.mrb[0].mxu0
      %v2378 = vpop.f32.mrb[0].mxu0
      %v2379 = vadd.f32 0.0, %v2378
      %v2380 = vpop.f32.mrb[0].mxu0
      %2381 = vmatprep.mubr.bf16.mxu0 0
      %2382 = vmatmul.mubr.bf16.gmra.mrb[0].mxu0 %v2249
      %v2383 = vpop.f32.mrb[0].mxu0
      %v2384 = vadd.f32 0.0, %v2383
      %v2385 = vpop.f32.mrb[0].mxu0
      %v2386 = vpop.f32.mrb[0].mxu0
      %v2387 = vadd.f32 0.0, %v2386
      %v2388 = vpop.f32.mrb[0].mxu0
      %2389 = vmatprep.mubr.bf16.mxu0 0
      %2390 = vmatmul.mubr.bf16.gmra.mrb[0].mxu0 %v2252
      %v2391 = vpop.f32.mrb[0].mxu0
      %v2392 = vadd.f32 0.0, %v2391
      %v2393 = vpop.f32.mrb[0].mxu0
      %v2394 = vpop.f32.mrb[0].mxu0
      %v2395 = vadd.f32 0.0, %v2394
      %v2396 = vpop.f32.mrb[0].mxu0
      %2397 = vmatprep.mubr.bf16.mxu0 0
      %2398 = vmatmul.mubr.bf16.gmra.mrb[0].mxu0 %v2255
      %v2399 = vpop.f32.mrb[0].mxu0
      %v2400 = vadd.f32 0.0, %v2399
      %v2401 = vpop.f32.mrb[0].mxu0
      %v2402 = vpop.f32.mrb[0].mxu0
      %v2403 = vadd.f32 0.0, %v2402
      %v2404 = vpop.f32.mrb[0].mxu0
      %2405 = vmatprep.mubr.bf16.mxu0 0
      %2406 = vmatmul.mubr.bf16.gmra.mrb[0].mxu0 %v2258
      %v2407 = vpop.f32.mrb[0].mxu0
      %v2408 = vadd.f32 0.0, %v2407
      %v2409 = vpop.f32.mrb[0].mxu0
      %v2410 = vpop.f32.mrb[0].mxu0
      %v2411 = vadd.f32 0.0, %v2410
      %v2412 = vpop.f32.mrb[0].mxu0
      %2413 = vmatprep.mubr.bf16.mxu0 0
      %2414 = vmatmul.mubr.bf16.gmra.mrb[0].mxu0 %v2261
      %v2415 = vpop.f32.mrb[0].mxu0
      %v2416 = vadd.f32 0.0, %v2415
      %v2417 = vpop.f32.mrb[0].mxu0
      %v2418 = vpop.f32.mrb[0].mxu0
      %v2419 = vadd.f32 0.0, %v2418
      %v2420 = vpop.f32.mrb[0].mxu0
      %2421 = vmatprep.mubr.bf16.mxu0 0
      %2422 = vmatmul.mubr.bf16.gmra.mrb[0].mxu0 %v2264
      %v2423 = vpop.f32.mrb[0].mxu0
      %v2424 = vadd.f32 0.0, %v2423
      %v2425 = vpop.f32.mrb[0].mxu0
      %v2426 = vpop.f32.mrb[0].mxu0
      %v2427 = vadd.f32 0.0, %v2426
      %v2428 = vpop.f32.mrb[0].mxu0
      %2429 = vmatprep.mubr.bf16.mxu0 0
      %2430 = vmatmul.mubr.bf16.gmra.mrb[0].mxu0 %v2267
      %v2431 = vpop.f32.mrb[0].mxu0
      %v2432 = vadd.f32 0.0, %v2431
      %v2433 = vpop.f32.mrb[0].mxu0
      %v2434 = vpop.f32.mrb[0].mxu0
      %v2435 = vadd.f32 0.0, %v2434
      %v2436 = vpop.f32.mrb[0].mxu0
      %2437 = vmatprep.mubr.bf16.mxu0 0
      %2438 = vmatmul.mubr.bf16.gmra.mrb[0].mxu0 %v2270
      %v2439 = vpop.f32.mrb[0].mxu0
      %v2440 = vadd.f32 0.0, %v2439
      %v2441 = vpop.f32.mrb[0].mxu0
      %v2442 = vpop.f32.mrb[0].mxu0
      %v2443 = vadd.f32 0.0, %v2442
      %v2444 = vpop.f32.mrb[0].mxu0
      %2445 = vmatprep.mubr.bf16.mxu0 0
      %2446 = vmatmul.mubr.bf16.gmra.mrb[0].mxu0 %v2273
      %v2447 = vpop.f32.mrb[0].mxu0
      %v2448 = vadd.f32 0.0, %v2447
      %v2449 = vpop.f32.mrb[0].mxu0
      %v2450 = vpop.f32.mrb[0].mxu0
      %v2451 = vadd.f32 0.0, %v2450
      %v2452 = vpop.f32.mrb[0].mxu0
      %2453 = vmatprep.mubr.bf16.mxu0 0
      %2454 = vmatmul.mubr.bf16.gmra.mrb[0].mxu0 %v2276
      %v2455 = vpop.f32.mrb[0].mxu0
      %v2456 = vadd.f32 0.0, %v2455
      %v2457 = vpop.f32.mrb[0].mxu0
      %v2458 = vpop.f32.mrb[0].mxu0
      %v2459 = vadd.f32 0.0, %v2458
      %v2460 = vpop.f32.mrb[0].mxu0
      %2461 = vmatprep.mubr.bf16.mxu0 0
      %2462 = vmatmul.mubr.bf16.gmra.mrb[0].mxu0 %v2279
      %v2463 = vpop.f32.mrb[0].mxu0
      %v2464 = vadd.f32 0.0, %v2463
      %v2465 = vpop.f32.mrb[0].mxu0
      %v2466 = vpop.f32.mrb[0].mxu0
      %v2467 = vadd.f32 0.0, %v2466
      %v2468 = vpop.f32.mrb[0].mxu0
      %2469 = vmatprep.mubr.bf16.mxu0 0
      %2470 = vmatmul.mubr.bf16.gmra.mrb[0].mxu0 %v2282
      %v2471 = vpop.f32.mrb[0].mxu0
      %v2472 = vadd.f32 0.0, %v2471
      %v2473 = vpop.f32.mrb[0].mxu0
      %v2474 = vpop.f32.mrb[0].mxu0
      %v2475 = vadd.f32 0.0, %v2474
      %v2476 = vpop.f32.mrb[0].mxu0
      %2477 = vmatprep.mubr.bf16.mxu0 0
      %2478 = vmatmul.mubr.bf16.gmra.mrb[0].mxu0 %v2285
      %v2479 = vpop.f32.mrb[0].mxu0
      %v2480 = vadd.f32 0.0, %v2479
      %v2481 = vpop.f32.mrb[0].mxu0
      %v2482 = vpop.f32.mrb[0].mxu0
      %v2483 = vadd.f32 0.0, %v2482
      %v2484 = vpop.f32.mrb[0].mxu0
      %2485 = vmatprep.mubr.bf16.mxu0 0
      %2486 = vmatmul.mubr.bf16.gmra.mrb[0].mxu0 %v2288
      %v2487 = vpop.f32.mrb[0].mxu0
      %v2488 = vadd.f32 0.0, %v2487
      %v2489 = vpop.f32.mrb[0].mxu0
      %v2490 = vpop.f32.mrb[0].mxu0
      %v2491 = vpop.f32.mrb[0].mxu0
      %2492 = vdwg.mxu0
      %2534 = vrot.lane.b32.xlu0 %v2328, 8
      %v2535 = vpop.permute.xlu0 %2534
      %2536 = vrot.lane.b32.xlu0 %v2331, 8
      %v2537 = vpop.permute.xlu0 %2536
      %2538 = vrot.lane.b32.xlu0 %v2336, 8
      %v2539 = vpop.permute.xlu0 %2538
      %2540 = vrot.lane.b32.xlu0 %v2339, 8
      %v2541 = vpop.permute.xlu0 %2540
      %2542 = vrot.lane.b32.xlu0 %v2344, 8
      %v2543 = vpop.permute.xlu0 %2542
      %2544 = vrot.lane.b32.xlu0 %v2347, 8
      %v2545 = vpop.permute.xlu0 %2544
      %2546 = vrot.lane.b32.xlu0 %v2352, 8
      %v2547 = vpop.permute.xlu0 %2546
      %2548 = vrot.lane.b32.xlu0 %v2355, 8
      %v2549 = vpop.permute.xlu0 %2548
      %2550 = vrot.lane.b32.xlu0 %v2360, 8
      %v2551 = vpop.permute.xlu0 %2550
      %2552 = vrot.lane.b32.xlu0 %v2363, 8
      %v2553 = vpop.permute.xlu0 %2552
      %2554 = vrot.lane.b32.xlu0 %v2368, 8
      %v2555 = vpop.permute.xlu0 %2554
      %2556 = vrot.lane.b32.xlu0 %v2371, 8
      %v2557 = vpop.permute.xlu0 %2556
      %2558 = vrot.lane.b32.xlu0 %v2376, 8
      %v2559 = vpop.permute.xlu0 %2558
      %2560 = vrot.lane.b32.xlu0 %v2379, 8
      %v2561 = vpop.permute.xlu0 %2560
      %2562 = vrot.lane.b32.xlu0 %v2384, 8
      %v2563 = vpop.permute.xlu0 %2562
      %2564 = vrot.lane.b32.xlu0 %v2387, 8
      %v2565 = vpop.permute.xlu0 %2564
      %2566 = vrot.lane.b32.xlu0 %v2392, 8
      %v2567 = vpop.permute.xlu0 %2566
      %2568 = vrot.lane.b32.xlu0 %v2395, 8
      %v2569 = vpop.permute.xlu0 %2568
      %2570 = vrot.lane.b32.xlu0 %v2400, 8
      %v2571 = vpop.permute.xlu0 %2570
      %2572 = vrot.lane.b32.xlu0 %v2403, 8
      %v2573 = vpop.permute.xlu0 %2572
      %2574 = vrot.lane.b32.xlu0 %v2408, 8
      %v2575 = vpop.permute.xlu0 %2574
      %2576 = vrot.lane.b32.xlu0 %v2411, 8
      %v2577 = vpop.permute.xlu0 %2576
      %2578 = vrot.lane.b32.xlu0 %v2416, 8
      %v2579 = vpop.permute.xlu0 %2578
      %2580 = vrot.lane.b32.xlu0 %v2419, 8
      %v2581 = vpop.permute.xlu0 %2580
      %2582 = vrot.lane.b32.xlu0 %v2424, 8
      %v2583 = vpop.permute.xlu0 %2582
      %2584 = vrot.lane.b32.xlu0 %v2427, 8
      %v2585 = vpop.permute.xlu0 %2584
      %2586 = vrot.lane.b32.xlu0 %v2432, 8
      %v2587 = vpop.permute.xlu0 %2586
      %2588 = vrot.lane.b32.xlu0 %v2435, 8
      %v2589 = vpop.permute.xlu0 %2588
      %2590 = vrot.lane.b32.xlu0 %v2440, 8
      %v2591 = vpop.permute.xlu0 %2590
      %2592 = vrot.lane.b32.xlu0 %v2443, 8
      %v2593 = vpop.permute.xlu0 %2592
      %2594 = vrot.lane.b32.xlu0 %v2448, 8
      %v2595 = vpop.permute.xlu0 %2594
      %2596 = vrot.lane.b32.xlu0 %v2451, 8
      %v2597 = vpop.permute.xlu0 %2596
      %2598 = vrot.lane.b32.xlu0 %v2456, 8
      %v2599 = vpop.permute.xlu0 %2598
      %2600 = vrot.lane.b32.xlu0 %v2459, 8
      %v2601 = vpop.permute.xlu0 %2600
      %2602 = vrot.lane.b32.xlu0 %v2464, 8
      %v2603 = vpop.permute.xlu0 %2602
      %2604 = vrot.lane.b32.xlu0 %v2467, 8
      %v2605 = vpop.permute.xlu0 %2604
      %2606 = vrot.lane.b32.xlu0 %v2472, 8
      %v2607 = vpop.permute.xlu0 %2606
      %2608 = vrot.lane.b32.xlu0 %v2475, 8
      %v2609 = vpop.permute.xlu0 %2608
      %2610 = vrot.lane.b32.xlu0 %v2480, 8
      %v2611 = vpop.permute.xlu0 %2610
      %2612 = vrot.lane.b32.xlu0 %v2483, 8
      %v2613 = vpop.permute.xlu0 %2612
      %2614 = vrot.lane.b32.xlu0 %v2488, 8
      %v2615 = vpop.permute.xlu0 %2614
      %v2657 = vadd.f32 %v2139, %v2535
      %v2658 = vadd.f32 %v2140, %v2537
      %v2659 = vadd.f32 %v2141, %v2539
      %v2660 = vadd.f32 %v2142, %v2541
      %v2661 = vadd.f32 %v2143, %v2543
      %v2662 = vadd.f32 %v2144, %v2545
      %v2663 = vadd.f32 %v2145, %v2547
      %v2664 = vadd.f32 %v2146, %v2549
      %v2665 = vadd.f32 %v2147, %v2551
      %v2666 = vadd.f32 %v2148, %v2553
      %v2667 = vadd.f32 %v2149, %v2555
      %v2668 = vadd.f32 %v2150, %v2557
      %v2669 = vadd.f32 %v2151, %v2559
      %v2670 = vadd.f32 %v2152, %v2561
      %v2671 = vadd.f32 %v2153, %v2563
      %v2672 = vadd.f32 %v2154, %v2565
      %v2673 = vadd.f32 %v2155, %v2567
      %v2674 = vadd.f32 %v2156, %v2569
      %v2675 = vadd.f32 %v2157, %v2571
      %v2676 = vadd.f32 %v2158, %v2573
      %v2677 = vadd.f32 %v2159, %v2575
      %v2678 = vadd.f32 %v2160, %v2577
      %v2679 = vadd.f32 %v2161, %v2579
      %v2680 = vadd.f32 %v2162, %v2581
      %v2681 = vadd.f32 %v2163, %v2583
      %v2682 = vadd.f32 %v2164, %v2585
      %v2683 = vadd.f32 %v2165, %v2587
      %v2684 = vadd.f32 %v2166, %v2589
      %v2685 = vadd.f32 %v2167, %v2591
      %v2686 = vadd.f32 %v2168, %v2593
      %v2687 = vadd.f32 %v2169, %v2595
      %v2688 = vadd.f32 %v2170, %v2597
      %v2689 = vadd.f32 %v2171, %v2599
      %v2690 = vadd.f32 %v2172, %v2601
      %v2691 = vadd.f32 %v2173, %v2603
      %v2692 = vadd.f32 %v2174, %v2605
      %v2693 = vadd.f32 %v2175, %v2607
      %v2694 = vadd.f32 %v2176, %v2609
      %v2695 = vadd.f32 %v2177, %v2611
      %v2696 = vadd.f32 %v2178, %v2613
      %v2697 = vadd.f32 %v2179, %v2615
      %v2698 = vld [vmem:[#allocation2 + $0xa8] sm:$0x3]
      %v2699 = vld [vmem:[%s4 + $0x8] sm:$0xf]
      %v2701 = vunpack.c.l.b16 %v2698
      %v2702 = vpack.c.b16 %v2701, %v1495
      %vm2703 = vsmask.f32 4352
      %v2705 = vshrl.u32 %v2184, 16
      %v2707 = vrot.slane %v2705, 3
      %v2708 = vshll.u32 %v2184, 16
      %v2710 = vrot.slane %v2708, 4
      %v2711 = vor.u32 %v2707, %v2710
      %v2712 = vrot.slane %v1528, 3
      %v2713 = vrot.slane %v1531, 4
      %v2714 = vor.u32 %v2712, %v2713
      %v2715 = vsel %vm2703, %v2711, %v2714
      %v2716 = vrot.slane %v1537, 3
      %v2717 = vrot.slane %v1540, 4
      %v2718 = vor.u32 %v2716, %v2717
      %v2719 = vsel %vm2703, %v2714, %v2718
      %v2720 = vrot.slane %v1546, 3
      %v2721 = vrot.slane %v1549, 4
      %v2722 = vor.u32 %v2720, %v2721
      %v2723 = vsel %vm2703, %v2718, %v2722
      %v2724 = vrot.slane %v1555, 3
      %v2725 = vrot.slane %v1558, 4
      %v2726 = vor.u32 %v2724, %v2725
      %v2727 = vsel %vm2703, %v2722, %v2726
      %v2728 = vrot.slane %v1564, 3
      %v2729 = vrot.slane %v1567, 4
      %v2730 = vor.u32 %v2728, %v2729
      %v2731 = vsel %vm2703, %v2726, %v2730
      %v2732 = vrot.slane %v1573, 3
      %v2733 = vrot.slane %v1576, 4
      %v2734 = vor.u32 %v2732, %v2733
      %v2735 = vsel %vm2703, %v2730, %v2734
      %v2736 = vrot.slane %v1582, 3
      %v2737 = vrot.slane %v1585, 4
      %v2738 = vor.u32 %v2736, %v2737
      %v2739 = vsel %vm2703, %v2734, %v2738
      %v2740 = vrot.slane %v1591, 3
      %v2741 = vrot.slane %v1594, 4
      %v2742 = vor.u32 %v2740, %v2741
      %v2743 = vsel %vm2703, %v2738, %v2742
      %v2744 = vrot.slane %v1600, 3
      %v2745 = vrot.slane %v1603, 4
      %v2746 = vor.u32 %v2744, %v2745
      %v2747 = vsel %vm2703, %v2742, %v2746
      %v2748 = vrot.slane %v1609, 3
      %v2749 = vrot.slane %v1612, 4
      %v2750 = vor.u32 %v2748, %v2749
      %v2751 = vsel %vm2703, %v2746, %v2750
      %v2752 = vrot.slane %v1618, 3
      %v2753 = vrot.slane %v1621, 4
      %v2754 = vor.u32 %v2752, %v2753
      %v2755 = vsel %vm2703, %v2750, %v2754
      %v2756 = vrot.slane %v1627, 3
      %v2757 = vrot.slane %v1630, 4
      %v2758 = vor.u32 %v2756, %v2757
      %v2759 = vsel %vm2703, %v2754, %v2758
      %v2760 = vrot.slane %v1636, 3
      %v2761 = vrot.slane %v1639, 4
      %v2762 = vor.u32 %v2760, %v2761
      %v2763 = vsel %vm2703, %v2758, %v2762
      %v2764 = vrot.slane %v1645, 3
      %v2765 = vrot.slane %v1648, 4
      %v2766 = vor.u32 %v2764, %v2765
      %v2767 = vsel %vm2703, %v2762, %v2766
      %v2768 = vrot.slane %v1654, 3
      %v2769 = vrot.slane %v1657, 4
      %v2770 = vor.u32 %v2768, %v2769
      %v2771 = vsel %vm2703, %v2766, %v2770
      %v2772 = vrot.slane %v1663, 3
      %v2773 = vrot.slane %v1666, 4
      %v2774 = vor.u32 %v2772, %v2773
      %v2775 = vsel %vm2703, %v2770, %v2774
      %v2776 = vrot.slane %v1672, 3
      %v2777 = vrot.slane %v1675, 4
      %v2778 = vor.u32 %v2776, %v2777
      %v2779 = vsel %vm2703, %v2774, %v2778
      %v2780 = vrot.slane %v1681, 3
      %v2781 = vrot.slane %v1684, 4
      %v2782 = vor.u32 %v2780, %v2781
      %v2783 = vsel %vm2703, %v2778, %v2782
      %v2784 = vrot.slane %v1690, 3
      %v2785 = vrot.slane %v1693, 4
      %v2786 = vor.u32 %v2784, %v2785
      %v2787 = vsel %vm2703, %v2782, %v2786
      %v2789 = vshrl.u32 %v2702, 16
      %v2791 = vrot.slane %v2789, 3
      %v2792 = vshll.u32 %v2702, 16
      %v2794 = vrot.slane %v2792, 4
      %v2795 = vor.u32 %v2791, %v2794
      %v2796 = vsel %vm2703, %v2786, %v2795
      %v2798 = vsel %vm1707, %v2715, 0
      %v2801 = vsel %vm1707, %v2719, 0
      %v2804 = vsel %vm1707, %v2723, 0
      %v2807 = vsel %vm1707, %v2727, 0
      %v2810 = vsel %vm1707, %v2731, 0
      %v2813 = vsel %vm1707, %v2735, 0
      %v2816 = vsel %vm1707, %v2739, 0
      %v2819 = vsel %vm1707, %v2743, 0
      %v2822 = vsel %vm1707, %v2747, 0
      %v2825 = vsel %vm1707, %v2751, 0
      %v2828 = vsel %vm1707, %v2755, 0
      %v2831 = vsel %vm1707, %v2759, 0
      %v2834 = vsel %vm1707, %v2763, 0
      %v2837 = vsel %vm1707, %v2767, 0
      %v2840 = vsel %vm1707, %v2771, 0
      %v2843 = vsel %vm1707, %v2775, 0
      %v2846 = vsel %vm1707, %v2779, 0
      %v2849 = vsel %vm1707, %v2783, 0
      %v2852 = vsel %vm1707, %v2787, 0
      %v2855 = vsel %vm1707, %v2796, 0
      %v2858 = vsel %vm1707, %v2795, 0
      %v2861 = vsel %vm1771, %v2699, 0
      %2863 = vmatprep.subr.bf16.mxu0 0
      %2864 = vmatpush1.bf16.msra.mxu0 %v2861
      %2865 = vmatprep.subr.bf16.mxu0 0
      %2866 = vmatpush1.bf16.msra.mxu0 0
      %2867 = vmatprep.subr.bf16.mxu0 0
      %2868 = vmatpush1.bf16.msra.mxu0 0
      %2869 = vmatprep.subr.bf16.mxu0 0
      %2870 = vmatpush1.bf16.msra.mxu0 0
      %2871 = vmatprep.subr.bf16.mxu0 0
      %2872 = vmatpush1.bf16.msra.mxu0 0
      %2873 = vmatprep.subr.bf16.mxu0 0
      %2874 = vmatpush1.bf16.msra.mxu0 0
      %2875 = vmatprep.subr.bf16.mxu0 0
      %2876 = vmatpush1.bf16.msra.mxu0 0
      %2877 = vmatprep.subr.bf16.mxu0 0
      %2878 = vmatpush1.bf16.msra.mxu0 0
      %2879 = vmatprep.subr.bf16.mxu0 0
      %2880 = vmatpush1.bf16.msra.mxu0 0
      %2881 = vmatprep.subr.bf16.mxu0 0
      %2882 = vmatpush1.bf16.msra.mxu0 0
      %2883 = vmatprep.subr.bf16.mxu0 0
      %2884 = vmatpush1.bf16.msra.mxu0 0
      %2885 = vmatprep.subr.bf16.mxu0 0
      %2886 = vmatpush1.bf16.msra.mxu0 0
      %2887 = vmatprep.subr.bf16.mxu0 0
      %2888 = vmatpush1.bf16.msra.mxu0 0
      %2889 = vmatprep.subr.bf16.mxu0 0
      %2890 = vmatpush1.bf16.msra.mxu0 0
      %2891 = vmatprep.subr.bf16.mxu0 0
      %2892 = vmatpush1.bf16.msra.mxu0 0
      %2893 = vmatprep.subr.bf16.mxu0 0
      %2894 = vmatpush1.bf16.msra.mxu0 0
      %2895 = vmatprep.mubr.bf16.mxu0 0
      %2896 = vmatmul.mubr.bf16.gmra.mrb[0].mxu0 %v2798
      %v2897 = vpop.f32.mrb[0].mxu0
      %v2898 = vadd.f32 0.0, %v2897
      %v2899 = vpop.f32.mrb[0].mxu0
      %v2900 = vpop.f32.mrb[0].mxu0
      %v2901 = vadd.f32 0.0, %v2900
      %v2902 = vpop.f32.mrb[0].mxu0
      %2903 = vmatprep.mubr.bf16.mxu0 0
      %2904 = vmatmul.mubr.bf16.gmra.mrb[0].mxu0 %v2801
      %v2905 = vpop.f32.mrb[0].mxu0
      %v2906 = vadd.f32 0.0, %v2905
      %v2907 = vpop.f32.mrb[0].mxu0
      %v2908 = vpop.f32.mrb[0].mxu0
      %v2909 = vadd.f32 0.0, %v2908
      %v2910 = vpop.f32.mrb[0].mxu0
      %2911 = vmatprep.mubr.bf16.mxu0 0
      %2912 = vmatmul.mubr.bf16.gmra.mrb[0].mxu0 %v2804
      %v2913 = vpop.f32.mrb[0].mxu0
      %v2914 = vadd.f32 0.0, %v2913
      %v2915 = vpop.f32.mrb[0].mxu0
      %v2916 = vpop.f32.mrb[0].mxu0
      %v2917 = vadd.f32 0.0, %v2916
      %v2918 = vpop.f32.mrb[0].mxu0
      %2919 = vmatprep.mubr.bf16.mxu0 0
      %2920 = vmatmul.mubr.bf16.gmra.mrb[0].mxu0 %v2807
      %v2921 = vpop.f32.mrb[0].mxu0
      %v2922 = vadd.f32 0.0, %v2921
      %v2923 = vpop.f32.mrb[0].mxu0
      %v2924 = vpop.f32.mrb[0].mxu0
      %v2925 = vadd.f32 0.0, %v2924
      %v2926 = vpop.f32.mrb[0].mxu0
      %2927 = vmatprep.mubr.bf16.mxu0 0
      %2928 = vmatmul.mubr.bf16.gmra.mrb[0].mxu0 %v2810
      %v2929 = vpop.f32.mrb[0].mxu0
      %v2930 = vadd.f32 0.0, %v2929
      %v2931 = vpop.f32.mrb[0].mxu0
      %v2932 = vpop.f32.mrb[0].mxu0
      %v2933 = vadd.f32 0.0, %v2932
      %v2934 = vpop.f32.mrb[0].mxu0
      %2935 = vmatprep.mubr.bf16.mxu0 0
      %2936 = vmatmul.mubr.bf16.gmra.mrb[0].mxu0 %v2813
      %v2937 = vpop.f32.mrb[0].mxu0
      %v2938 = vadd.f32 0.0, %v2937
      %v2939 = vpop.f32.mrb[0].mxu0
      %v2940 = vpop.f32.mrb[0].mxu0
      %v2941 = vadd.f32 0.0, %v2940
      %v2942 = vpop.f32.mrb[0].mxu0
      %2943 = vmatprep.mubr.bf16.mxu0 0
      %2944 = vmatmul.mubr.bf16.gmra.mrb[0].mxu0 %v2816
      %v2945 = vpop.f32.mrb[0].mxu0
      %v2946 = vadd.f32 0.0, %v2945
      %v2947 = vpop.f32.mrb[0].mxu0
      %v2948 = vpop.f32.mrb[0].mxu0
      %v2949 = vadd.f32 0.0, %v2948
      %v2950 = vpop.f32.mrb[0].mxu0
      %2951 = vmatprep.mubr.bf16.mxu0 0
      %2952 = vmatmul.mubr.bf16.gmra.mrb[0].mxu0 %v2819
      %v2953 = vpop.f32.mrb[0].mxu0
      %v2954 = vadd.f32 0.0, %v2953
      %v2955 = vpop.f32.mrb[0].mxu0
      %v2956 = vpop.f32.mrb[0].mxu0
      %v2957 = vadd.f32 0.0, %v2956
      %v2958 = vpop.f32.mrb[0].mxu0
      %2959 = vmatprep.mubr.bf16.mxu0 0
      %2960 = vmatmul.mubr.bf16.gmra.mrb[0].mxu0 %v2822
      %v2961 = vpop.f32.mrb[0].mxu0
      %v2962 = vadd.f32 0.0, %v2961
      %v2963 = vpop.f32.mrb[0].mxu0
      %v2964 = vpop.f32.mrb[0].mxu0
      %v2965 = vadd.f32 0.0, %v2964
      %v2966 = vpop.f32.mrb[0].mxu0
      %2967 = vmatprep.mubr.bf16.mxu0 0
      %2968 = vmatmul.mubr.bf16.gmra.mrb[0].mxu0 %v2825
      %v2969 = vpop.f32.mrb[0].mxu0
      %v2970 = vadd.f32 0.0, %v2969
      %v2971 = vpop.f32.mrb[0].mxu0
      %v2972 = vpop.f32.mrb[0].mxu0
      %v2973 = vadd.f32 0.0, %v2972
      %v2974 = vpop.f32.mrb[0].mxu0
      %2975 = vmatprep.mubr.bf16.mxu0 0
      %2976 = vmatmul.mubr.bf16.gmra.mrb[0].mxu0 %v2828
      %v2977 = vpop.f32.mrb[0].mxu0
      %v2978 = vadd.f32 0.0, %v2977
      %v2979 = vpop.f32.mrb[0].mxu0
      %v2980 = vpop.f32.mrb[0].mxu0
      %v2981 = vadd.f32 0.0, %v2980
      %v2982 = vpop.f32.mrb[0].mxu0
      %2983 = vmatprep.mubr.bf16.mxu0 0
      %2984 = vmatmul.mubr.bf16.gmra.mrb[0].mxu0 %v2831
      %v2985 = vpop.f32.mrb[0].mxu0
      %v2986 = vadd.f32 0.0, %v2985
      %v2987 = vpop.f32.mrb[0].mxu0
      %v2988 = vpop.f32.mrb[0].mxu0
      %v2989 = vadd.f32 0.0, %v2988
      %v2990 = vpop.f32.mrb[0].mxu0
      %2991 = vmatprep.mubr.bf16.mxu0 0
      %2992 = vmatmul.mubr.bf16.gmra.mrb[0].mxu0 %v2834
      %v2993 = vpop.f32.mrb[0].mxu0
      %v2994 = vadd.f32 0.0, %v2993
      %v2995 = vpop.f32.mrb[0].mxu0
      %v2996 = vpop.f32.mrb[0].mxu0
      %v2997 = vadd.f32 0.0, %v2996
      %v2998 = vpop.f32.mrb[0].mxu0
      %2999 = vmatprep.mubr.bf16.mxu0 0
      %3000 = vmatmul.mubr.bf16.gmra.mrb[0].mxu0 %v2837
      %v3001 = vpop.f32.mrb[0].mxu0
      %v3002 = vadd.f32 0.0, %v3001
      %v3003 = vpop.f32.mrb[0].mxu0
      %v3004 = vpop.f32.mrb[0].mxu0
      %v3005 = vadd.f32 0.0, %v3004
      %v3006 = vpop.f32.mrb[0].mxu0
      %3007 = vmatprep.mubr.bf16.mxu0 0
      %3008 = vmatmul.mubr.bf16.gmra.mrb[0].mxu0 %v2840
      %v3009 = vpop.f32.mrb[0].mxu0
      %v3010 = vadd.f32 0.0, %v3009
      %v3011 = vpop.f32.mrb[0].mxu0
      %v3012 = vpop.f32.mrb[0].mxu0
      %v3013 = vadd.f32 0.0, %v3012
      %v3014 = vpop.f32.mrb[0].mxu0
      %3015 = vmatprep.mubr.bf16.mxu0 0
      %3016 = vmatmul.mubr.bf16.gmra.mrb[0].mxu0 %v2843
      %v3017 = vpop.f32.mrb[0].mxu0
      %v3018 = vadd.f32 0.0, %v3017
      %v3019 = vpop.f32.mrb[0].mxu0
      %v3020 = vpop.f32.mrb[0].mxu0
      %v3021 = vadd.f32 0.0, %v3020
      %v3022 = vpop.f32.mrb[0].mxu0
      %3023 = vmatprep.mubr.bf16.mxu0 0
      %3024 = vmatmul.mubr.bf16.gmra.mrb[0].mxu0 %v2846
      %v3025 = vpop.f32.mrb[0].mxu0
      %v3026 = vadd.f32 0.0, %v3025
      %v3027 = vpop.f32.mrb[0].mxu0
      %v3028 = vpop.f32.mrb[0].mxu0
      %v3029 = vadd.f32 0.0, %v3028
      %v3030 = vpop.f32.mrb[0].mxu0
      %3031 = vmatprep.mubr.bf16.mxu0 0
      %3032 = vmatmul.mubr.bf16.gmra.mrb[0].mxu0 %v2849
      %v3033 = vpop.f32.mrb[0].mxu0
      %v3034 = vadd.f32 0.0, %v3033
      %v3035 = vpop.f32.mrb[0].mxu0
      %v3036 = vpop.f32.mrb[0].mxu0
      %v3037 = vadd.f32 0.0, %v3036
      %v3038 = vpop.f32.mrb[0].mxu0
      %3039 = vmatprep.mubr.bf16.mxu0 0
      %3040 = vmatmul.mubr.bf16.gmra.mrb[0].mxu0 %v2852
      %v3041 = vpop.f32.mrb[0].mxu0
      %v3042 = vadd.f32 0.0, %v3041
      %v3043 = vpop.f32.mrb[0].mxu0
      %v3044 = vpop.f32.mrb[0].mxu0
      %v3045 = vadd.f32 0.0, %v3044
      %v3046 = vpop.f32.mrb[0].mxu0
      %3047 = vmatprep.mubr.bf16.mxu0 0
      %3048 = vmatmul.mubr.bf16.gmra.mrb[0].mxu0 %v2855
      %v3049 = vpop.f32.mrb[0].mxu0
      %v3050 = vadd.f32 0.0, %v3049
      %v3051 = vpop.f32.mrb[0].mxu0
      %v3052 = vpop.f32.mrb[0].mxu0
      %v3053 = vadd.f32 0.0, %v3052
      %v3054 = vpop.f32.mrb[0].mxu0
      %3055 = vmatprep.mubr.bf16.mxu0 0
      %3056 = vmatmul.mubr.bf16.gmra.mrb[0].mxu0 %v2858
      %v3057 = vpop.f32.mrb[0].mxu0
      %v3058 = vadd.f32 0.0, %v3057
      %v3059 = vpop.f32.mrb[0].mxu0
      %v3060 = vpop.f32.mrb[0].mxu0
      %v3061 = vpop.f32.mrb[0].mxu0
      %3062 = vdwg.mxu0
      %3104 = vrot.lane.b32.xlu0 %v2898, 8
      %v3105 = vpop.permute.xlu0 %3104
      %3106 = vrot.lane.b32.xlu0 %v2901, 8
      %v3107 = vpop.permute.xlu0 %3106
      %3108 = vrot.lane.b32.xlu0 %v2906, 8
      %v3109 = vpop.permute.xlu0 %3108
      %3110 = vrot.lane.b32.xlu0 %v2909, 8
      %v3111 = vpop.permute.xlu0 %3110
      %3112 = vrot.lane.b32.xlu0 %v2914, 8
      %v3113 = vpop.permute.xlu0 %3112
      %3114 = vrot.lane.b32.xlu0 %v2917, 8
      %v3115 = vpop.permute.xlu0 %3114
      %3116 = vrot.lane.b32.xlu0 %v2922, 8
      %v3117 = vpop.permute.xlu0 %3116
      %3118 = vrot.lane.b32.xlu0 %v2925, 8
      %v3119 = vpop.permute.xlu0 %3118
      %3120 = vrot.lane.b32.xlu0 %v2930, 8
      %v3121 = vpop.permute.xlu0 %3120
      %3122 = vrot.lane.b32.xlu0 %v2933, 8
      %v3123 = vpop.permute.xlu0 %3122
      %3124 = vrot.lane.b32.xlu0 %v2938, 8
      %v3125 = vpop.permute.xlu0 %3124
      %3126 = vrot.lane.b32.xlu0 %v2941, 8
      %v3127 = vpop.permute.xlu0 %3126
      %3128 = vrot.lane.b32.xlu0 %v2946, 8
      %v3129 = vpop.permute.xlu0 %3128
      %3130 = vrot.lane.b32.xlu0 %v2949, 8
      %v3131 = vpop.permute.xlu0 %3130
      %3132 = vrot.lane.b32.xlu0 %v2954, 8
      %v3133 = vpop.permute.xlu0 %3132
      %3134 = vrot.lane.b32.xlu0 %v2957, 8
      %v3135 = vpop.permute.xlu0 %3134
      %3136 = vrot.lane.b32.xlu0 %v2962, 8
      %v3137 = vpop.permute.xlu0 %3136
      %3138 = vrot.lane.b32.xlu0 %v2965, 8
      %v3139 = vpop.permute.xlu0 %3138
      %3140 = vrot.lane.b32.xlu0 %v2970, 8
      %v3141 = vpop.permute.xlu0 %3140
      %3142 = vrot.lane.b32.xlu0 %v2973, 8
      %v3143 = vpop.permute.xlu0 %3142
      %3144 = vrot.lane.b32.xlu0 %v2978, 8
      %v3145 = vpop.permute.xlu0 %3144
      %3146 = vrot.lane.b32.xlu0 %v2981, 8
      %v3147 = vpop.permute.xlu0 %3146
      %3148 = vrot.lane.b32.xlu0 %v2986, 8
      %v3149 = vpop.permute.xlu0 %3148
      %3150 = vrot.lane.b32.xlu0 %v2989, 8
      %v3151 = vpop.permute.xlu0 %3150
      %3152 = vrot.lane.b32.xlu0 %v2994, 8
      %v3153 = vpop.permute.xlu0 %3152
      %3154 = vrot.lane.b32.xlu0 %v2997, 8
      %v3155 = vpop.permute.xlu0 %3154
      %3156 = vrot.lane.b32.xlu0 %v3002, 8
      %v3157 = vpop.permute.xlu0 %3156
      %3158 = vrot.lane.b32.xlu0 %v3005, 8
      %v3159 = vpop.permute.xlu0 %3158
      %3160 = vrot.lane.b32.xlu0 %v3010, 8
      %v3161 = vpop.permute.xlu0 %3160
      %3162 = vrot.lane.b32.xlu0 %v3013, 8
      %v3163 = vpop.permute.xlu0 %3162
      %3164 = vrot.lane.b32.xlu0 %v3018, 8
      %v3165 = vpop.permute.xlu0 %3164
      %3166 = vrot.lane.b32.xlu0 %v3021, 8
      %v3167 = vpop.permute.xlu0 %3166
      %3168 = vrot.lane.b32.xlu0 %v3026, 8
      %v3169 = vpop.permute.xlu0 %3168
      %3170 = vrot.lane.b32.xlu0 %v3029, 8
      %v3171 = vpop.permute.xlu0 %3170
      %3172 = vrot.lane.b32.xlu0 %v3034, 8
      %v3173 = vpop.permute.xlu0 %3172
      %3174 = vrot.lane.b32.xlu0 %v3037, 8
      %v3175 = vpop.permute.xlu0 %3174
      %3176 = vrot.lane.b32.xlu0 %v3042, 8
      %v3177 = vpop.permute.xlu0 %3176
      %3178 = vrot.lane.b32.xlu0 %v3045, 8
      %v3179 = vpop.permute.xlu0 %3178
      %3180 = vrot.lane.b32.xlu0 %v3050, 8
      %v3181 = vpop.permute.xlu0 %3180
      %3182 = vrot.lane.b32.xlu0 %v3053, 8
      %v3183 = vpop.permute.xlu0 %3182
      %3184 = vrot.lane.b32.xlu0 %v3058, 8
      %v3185 = vpop.permute.xlu0 %3184
      %v3227 = vadd.f32 %v2657, %v3105
      %v3228 = vadd.f32 %v2658, %v3107
      %v3229 = vadd.f32 %v2659, %v3109
      %v3230 = vadd.f32 %v2660, %v3111
      %v3231 = vadd.f32 %v2661, %v3113
      %v3232 = vadd.f32 %v2662, %v3115
      %v3233 = vadd.f32 %v2663, %v3117
      %v3234 = vadd.f32 %v2664, %v3119
      %v3235 = vadd.f32 %v2665, %v3121
      %v3236 = vadd.f32 %v2666, %v3123
      %v3237 = vadd.f32 %v2667, %v3125
      %v3238 = vadd.f32 %v2668, %v3127
      %v3239 = vadd.f32 %v2669, %v3129
      %v3240 = vadd.f32 %v2670, %v3131
      %v3241 = vadd.f32 %v2671, %v3133
      %v3242 = vadd.f32 %v2672, %v3135
      %v3243 = vadd.f32 %v2673, %v3137
      %v3244 = vadd.f32 %v2674, %v3139
      %v3245 = vadd.f32 %v2675, %v3141
      %v3246 = vadd.f32 %v2676, %v3143
      %v3247 = vadd.f32 %v2677, %v3145
      %v3248 = vadd.f32 %v2678, %v3147
      %v3249 = vadd.f32 %v2679, %v3149
      %v3250 = vadd.f32 %v2680, %v3151
      %v3251 = vadd.f32 %v2681, %v3153
      %v3252 = vadd.f32 %v2682, %v3155
      %v3253 = vadd.f32 %v2683, %v3157
      %v3254 = vadd.f32 %v2684, %v3159
      %v3255 = vadd.f32 %v2685, %v3161
      %v3256 = vadd.f32 %v2686, %v3163
      %v3257 = vadd.f32 %v2687, %v3165
      %v3258 = vadd.f32 %v2688, %v3167
      %v3259 = vadd.f32 %v2689, %v3169
      %v3260 = vadd.f32 %v2690, %v3171
      %v3261 = vadd.f32 %v2691, %v3173
      %v3262 = vadd.f32 %v2692, %v3175
      %v3263 = vadd.f32 %v2693, %v3177
      %v3264 = vadd.f32 %v2694, %v3179
      %v3265 = vadd.f32 %v2695, %v3181
      %v3266 = vadd.f32 %v2696, %v3183
      %v3267 = vadd.f32 %v2697, %v3185
      %v3268 = vld [vmem:[#allocation2 + $0xc] sm:$0x8]
      %v3269 = vld [vmem:[#allocation2 + $0x10] sm:$0xf]
      %v3270 = vld [vmem:[#allocation2 + $0x14] sm:$0xf]
      %v3271 = vld [vmem:[#allocation2 + $0x18] sm:$0xf]
      %v3272 = vld [vmem:[#allocation2 + $0x1c] sm:$0xf]
      %v3273 = vld [vmem:[#allocation2 + $0x20] sm:$0xf]
      %v3274 = vld [vmem:[#allocation2 + $0x24] sm:$0xf]
      %v3275 = vld [vmem:[#allocation2 + $0x28] sm:$0xf]
      %v3276 = vld [vmem:[#allocation2 + $0x2c] sm:$0xf]
      %v3277 = vld [vmem:[#allocation2 + $0x30] sm:$0xf]
      %v3278 = vld [vmem:[#allocation2 + $0x34] sm:$0xf]
      %v3279 = vld [vmem:[#allocation2 + $0x38] sm:$0xf]
      %v3280 = vld [vmem:[#allocation2 + $0x3c] sm:$0xf]
      %v3281 = vld [vmem:[#allocation2 + $0x40] sm:$0xf]
      %v3282 = vld [vmem:[#allocation2 + $0x44] sm:$0xf]
      %v3283 = vld [vmem:[#allocation2 + $0x48] sm:$0xf]
      %v3284 = vld [vmem:[#allocation2 + $0x4c] sm:$0xf]
      %v3285 = vld [vmem:[#allocation2 + $0x50] sm:$0xf]
      %v3286 = vld [vmem:[#allocation2 + $0x54] sm:$0xf]
      %v3287 = vld [vmem:[#allocation2 + $0x58] sm:$0xf]
      %v3288 = vld [vmem:[#allocation2 + $0x5c] sm:$0xf]
      %v3289 = vld [vmem:[#allocation2 + $0x60] sm:$0xf]
      %v3290 = vld [vmem:[#allocation2 + $0x64] sm:$0xf]
      %v3291 = vld [vmem:[#allocation2 + $0x68] sm:$0xf]
      %v3292 = vld [vmem:[#allocation2 + $0x6c] sm:$0xf]
      %v3293 = vld [vmem:[#allocation2 + $0x70] sm:$0xf]
      %v3294 = vld [vmem:[#allocation2 + $0x74] sm:$0xf]
      %v3295 = vld [vmem:[#allocation2 + $0x78] sm:$0xf]
      %v3296 = vld [vmem:[#allocation2 + $0x7c] sm:$0xf]
      %v3297 = vld [vmem:[#allocation2 + $0x80] sm:$0xf]
      %v3298 = vld [vmem:[#allocation2 + $0x84] sm:$0xf]
      %v3299 = vld [vmem:[#allocation2 + $0x88] sm:$0xf]
      %v3300 = vld [vmem:[#allocation2 + $0x8c] sm:$0xf]
      %v3301 = vld [vmem:[#allocation2 + $0x90] sm:$0xf]
      %v3302 = vld [vmem:[#allocation2 + $0x94] sm:$0xf]
      %v3303 = vld [vmem:[#allocation2 + $0x98] sm:$0xf]
      %v3304 = vld [vmem:[#allocation2 + $0x9c] sm:$0xf]
      %v3305 = vld [vmem:[#allocation2 + $0xa0] sm:$0xf]
      %v3306 = vld [vmem:[#allocation2 + $0xa4] sm:$0xf]
      %v3307 = vld [vmem:[#allocation2 + $0xa8] sm:$0xf]
      %v3308 = vld [vmem:[#allocation2 + $0xac] sm:$0xf]
      %v3309 = vld [vmem:[#allocation2 + $0xb0] sm:$0x3]
      %v3310 = vld [vmem:[%s4 + $0xc] sm:$0xf]
      %v3353 = vunpack.c.l.b16 %v3268
      %v3354 = vunpack.c.l.b16 %v3269
      %v3355 = vunpack.c.l.b16 %v3270
      %v3356 = vunpack.c.l.b16 %v3271
      %v3357 = vunpack.c.l.b16 %v3272
      %v3358 = vunpack.c.l.b16 %v3273
      %v3359 = vunpack.c.l.b16 %v3274
      %v3360 = vunpack.c.l.b16 %v3275
      %v3361 = vunpack.c.l.b16 %v3276
      %v3362 = vunpack.c.l.b16 %v3277
      %v3363 = vunpack.c.l.b16 %v3278
      %v3364 = vunpack.c.l.b16 %v3279
      %v3365 = vunpack.c.l.b16 %v3280
      %v3366 = vunpack.c.l.b16 %v3281
      %v3367 = vunpack.c.l.b16 %v3282
      %v3368 = vunpack.c.l.b16 %v3283
      %v3369 = vunpack.c.l.b16 %v3284
      %v3370 = vunpack.c.l.b16 %v3285
      %v3371 = vunpack.c.l.b16 %v3286
      %v3372 = vunpack.c.l.b16 %v3287
      %v3373 = vunpack.c.l.b16 %v3288
      %v3374 = vunpack.c.l.b16 %v3289
      %v3375 = vunpack.c.l.b16 %v3290
      %v3376 = vunpack.c.l.b16 %v3291
      %v3377 = vunpack.c.l.b16 %v3292
      %v3378 = vunpack.c.l.b16 %v3293
      %v3379 = vunpack.c.l.b16 %v3294
      %v3380 = vunpack.c.l.b16 %v3295
      %v3381 = vunpack.c.l.b16 %v3296
      %v3382 = vunpack.c.l.b16 %v3297
      %v3383 = vunpack.c.l.b16 %v3298
      %v3384 = vunpack.c.l.b16 %v3299
      %v3385 = vunpack.c.l.b16 %v3300
      %v3386 = vunpack.c.l.b16 %v3301
      %v3387 = vunpack.c.l.b16 %v3302
      %v3388 = vunpack.c.l.b16 %v3303
      %v3389 = vunpack.c.l.b16 %v3304
      %v3390 = vunpack.c.l.b16 %v3305
      %v3391 = vunpack.c.l.b16 %v3306
      %v3392 = vunpack.c.l.b16 %v3307
      %v3393 = vunpack.c.l.b16 %v3308
      %v3394 = vunpack.c.l.b16 %v3309
      %v3395 = vpack.c.b16 %v3354, %v3353
      %v3396 = vpack.c.b16 %v3356, %v3355
      %v3397 = vpack.c.b16 %v3358, %v3357
      %v3398 = vpack.c.b16 %v3360, %v3359
      %v3399 = vpack.c.b16 %v3362, %v3361
      %v3400 = vpack.c.b16 %v3364, %v3363
      %v3401 = vpack.c.b16 %v3366, %v3365
      %v3402 = vpack.c.b16 %v3368, %v3367
      %v3403 = vpack.c.b16 %v3370, %v3369
      %v3404 = vpack.c.b16 %v3372, %v3371
      %v3405 = vpack.c.b16 %v3374, %v3373
      %v3406 = vpack.c.b16 %v3376, %v3375
      %v3407 = vpack.c.b16 %v3378, %v3377
      %v3408 = vpack.c.b16 %v3380, %v3379
      %v3409 = vpack.c.b16 %v3382, %v3381
      %v3410 = vpack.c.b16 %v3384, %v3383
      %v3411 = vpack.c.b16 %v3386, %v3385
      %v3412 = vpack.c.b16 %v3388, %v3387
      %v3413 = vpack.c.b16 %v3390, %v3389
      %v3414 = vpack.c.b16 %v3392, %v3391
      %v3415 = vpack.c.b16 %v3394, %v3393
      %v3417 = vshrl.u32 %v3395, 16
      %v3419 = vrot.slane %v3417, 3
      %v3420 = vshll.u32 %v3395, 16
      %v3422 = vrot.slane %v3420, 4
      %v3423 = vor.u32 %v3419, %v3422
      %v3425 = vshrl.u32 %v3396, 16
      %v3427 = vrot.slane %v3425, 3
      %v3428 = vshll.u32 %v3396, 16
      %v3430 = vrot.slane %v3428, 4
      %v3431 = vor.u32 %v3427, %v3430
      %v3432 = vsel %vm2703, %v3423, %v3431
      %v3434 = vshrl.u32 %v3397, 16
      %v3436 = vrot.slane %v3434, 3
      %v3437 = vshll.u32 %v3397, 16
      %v3439 = vrot.slane %v3437, 4
      %v3440 = vor.u32 %v3436, %v3439
      %v3441 = vsel %vm2703, %v3431, %v3440
      %v3443 = vshrl.u32 %v3398, 16
      %v3445 = vrot.slane %v3443, 3
      %v3446 = vshll.u32 %v3398, 16
      %v3448 = vrot.slane %v3446, 4
      %v3449 = vor.u32 %v3445, %v3448
      %v3450 = vsel %vm2703, %v3440, %v3449
      %v3452 = vshrl.u32 %v3399, 16
      %v3454 = vrot.slane %v3452, 3
      %v3455 = vshll.u32 %v3399, 16
      %v3457 = vrot.slane %v3455, 4
      %v3458 = vor.u32 %v3454, %v3457
      %v3459 = vsel %vm2703, %v3449, %v3458
      %v3461 = vshrl.u32 %v3400, 16
      %v3463 = vrot.slane %v3461, 3
      %v3464 = vshll.u32 %v3400, 16
      %v3466 = vrot.slane %v3464, 4
      %v3467 = vor.u32 %v3463, %v3466
      %v3468 = vsel %vm2703, %v3458, %v3467
      %v3470 = vshrl.u32 %v3401, 16
      %v3472 = vrot.slane %v3470, 3
      %v3473 = vshll.u32 %v3401, 16
      %v3475 = vrot.slane %v3473, 4
      %v3476 = vor.u32 %v3472, %v3475
      %v3477 = vsel %vm2703, %v3467, %v3476
      %v3479 = vshrl.u32 %v3402, 16
      %v3481 = vrot.slane %v3479, 3
      %v3482 = vshll.u32 %v3402, 16
      %v3484 = vrot.slane %v3482, 4
      %v3485 = vor.u32 %v3481, %v3484
      %v3486 = vsel %vm2703, %v3476, %v3485
      %v3488 = vshrl.u32 %v3403, 16
      %v3490 = vrot.slane %v3488, 3
      %v3491 = vshll.u32 %v3403, 16
      %v3493 = vrot.slane %v3491, 4
      %v3494 = vor.u32 %v3490, %v3493
      %v3495 = vsel %vm2703, %v3485, %v3494
      %v3497 = vshrl.u32 %v3404, 16
      %v3499 = vrot.slane %v3497, 3
      %v3500 = vshll.u32 %v3404, 16
      %v3502 = vrot.slane %v3500, 4
      %v3503 = vor.u32 %v3499, %v3502
      %v3504 = vsel %vm2703, %v3494, %v3503
      %v3506 = vshrl.u32 %v3405, 16
      %v3508 = vrot.slane %v3506, 3
      %v3509 = vshll.u32 %v3405, 16
      %v3511 = vrot.slane %v3509, 4
      %v3512 = vor.u32 %v3508, %v3511
      %v3513 = vsel %vm2703, %v3503, %v3512
      %v3515 = vshrl.u32 %v3406, 16
      %v3517 = vrot.slane %v3515, 3
      %v3518 = vshll.u32 %v3406, 16
      %v3520 = vrot.slane %v3518, 4
      %v3521 = vor.u32 %v3517, %v3520
      %v3522 = vsel %vm2703, %v3512, %v3521
      %v3524 = vshrl.u32 %v3407, 16
      %v3526 = vrot.slane %v3524, 3
      %v3527 = vshll.u32 %v3407, 16
      %v3529 = vrot.slane %v3527, 4
      %v3530 = vor.u32 %v3526, %v3529
      %v3531 = vsel %vm2703, %v3521, %v3530
      %v3533 = vshrl.u32 %v3408, 16
      %v3535 = vrot.slane %v3533, 3
      %v3536 = vshll.u32 %v3408, 16
      %v3538 = vrot.slane %v3536, 4
      %v3539 = vor.u32 %v3535, %v3538
      %v3540 = vsel %vm2703, %v3530, %v3539
      %v3542 = vshrl.u32 %v3409, 16
      %v3544 = vrot.slane %v3542, 3
      %v3545 = vshll.u32 %v3409, 16
      %v3547 = vrot.slane %v3545, 4
      %v3548 = vor.u32 %v3544, %v3547
      %v3549 = vsel %vm2703, %v3539, %v3548
      %v3551 = vshrl.u32 %v3410, 16
      %v3553 = vrot.slane %v3551, 3
      %v3554 = vshll.u32 %v3410, 16
      %v3556 = vrot.slane %v3554, 4
      %v3557 = vor.u32 %v3553, %v3556
      %v3558 = vsel %vm2703, %v3548, %v3557
      %v3560 = vshrl.u32 %v3411, 16
      %v3562 = vrot.slane %v3560, 3
      %v3563 = vshll.u32 %v3411, 16
      %v3565 = vrot.slane %v3563, 4
      %v3566 = vor.u32 %v3562, %v3565
      %v3567 = vsel %vm2703, %v3557, %v3566
      %v3569 = vshrl.u32 %v3412, 16
      %v3571 = vrot.slane %v3569, 3
      %v3572 = vshll.u32 %v3412, 16
      %v3574 = vrot.slane %v3572, 4
      %v3575 = vor.u32 %v3571, %v3574
      %v3576 = vsel %vm2703, %v3566, %v3575
      %v3578 = vshrl.u32 %v3413, 16
      %v3580 = vrot.slane %v3578, 3
      %v3581 = vshll.u32 %v3413, 16
      %v3583 = vrot.slane %v3581, 4
      %v3584 = vor.u32 %v3580, %v3583
      %v3585 = vsel %vm2703, %v3575, %v3584
      %v3587 = vshrl.u32 %v3414, 16
      %v3589 = vrot.slane %v3587, 3
      %v3590 = vshll.u32 %v3414, 16
      %v3592 = vrot.slane %v3590, 4
      %v3593 = vor.u32 %v3589, %v3592
      %v3594 = vsel %vm2703, %v3584, %v3593
      %v3596 = vshrl.u32 %v3415, 16
      %v3598 = vrot.slane %v3596, 3
      %v3599 = vshll.u32 %v3415, 16
      %v3601 = vrot.slane %v3599, 4
      %v3602 = vor.u32 %v3598, %v3601
      %v3603 = vsel %vm2703, %v3593, %v3602
      %v3605 = vsel %vm1707, %v3432, 0
      %v3608 = vsel %vm1707, %v3441, 0
      %v3611 = vsel %vm1707, %v3450, 0
      %v3614 = vsel %vm1707, %v3459, 0
      %v3617 = vsel %vm1707, %v3468, 0
      %v3620 = vsel %vm1707, %v3477, 0
      %v3623 = vsel %vm1707, %v3486, 0
      %v3626 = vsel %vm1707, %v3495, 0
      %v3629 = vsel %vm1707, %v3504, 0
      %v3632 = vsel %vm1707, %v3513, 0
      %v3635 = vsel %vm1707, %v3522, 0
      %v3638 = vsel %vm1707, %v3531, 0
      %v3641 = vsel %vm1707, %v3540, 0
      %v3644 = vsel %vm1707, %v3549, 0
      %v3647 = vsel %vm1707, %v3558, 0
      %v3650 = vsel %vm1707, %v3567, 0
      %v3653 = vsel %vm1707, %v3576, 0
      %v3656 = vsel %vm1707, %v3585, 0
      %v3659 = vsel %vm1707, %v3594, 0
      %v3662 = vsel %vm1707, %v3603, 0
      %v3665 = vsel %vm1707, %v3602, 0
      %v3668 = vsel %vm1771, %v3310, 0
      %3670 = vmatprep.subr.bf16.mxu0 0
      %3671 = vmatpush1.bf16.msra.mxu0 %v3668
      %3672 = vmatprep.subr.bf16.mxu0 0
      %3673 = vmatpush1.bf16.msra.mxu0 0
      %3674 = vmatprep.subr.bf16.mxu0 0
      %3675 = vmatpush1.bf16.msra.mxu0 0
      %3676 = vmatprep.subr.bf16.mxu0 0
      %3677 = vmatpush1.bf16.msra.mxu0 0
      %3678 = vmatprep.subr.bf16.mxu0 0
      %3679 = vmatpush1.bf16.msra.mxu0 0
      %3680 = vmatprep.subr.bf16.mxu0 0
      %3681 = vmatpush1.bf16.msra.mxu0 0
      %3682 = vmatprep.subr.bf16.mxu0 0
      %3683 = vmatpush1.bf16.msra.mxu0 0
      %3684 = vmatprep.subr.bf16.mxu0 0
      %3685 = vmatpush1.bf16.msra.mxu0 0
      %3686 = vmatprep.subr.bf16.mxu0 0
      %3687 = vmatpush1.bf16.msra.mxu0 0
      %3688 = vmatprep.subr.bf16.mxu0 0
      %3689 = vmatpush1.bf16.msra.mxu0 0
      %3690 = vmatprep.subr.bf16.mxu0 0
      %3691 = vmatpush1.bf16.msra.mxu0 0
      %3692 = vmatprep.subr.bf16.mxu0 0
      %3693 = vmatpush1.bf16.msra.mxu0 0
      %3694 = vmatprep.subr.bf16.mxu0 0
      %3695 = vmatpush1.bf16.msra.mxu0 0
      %3696 = vmatprep.subr.bf16.mxu0 0
      %3697 = vmatpush1.bf16.msra.mxu0 0
      %3698 = vmatprep.subr.bf16.mxu0 0
      %3699 = vmatpush1.bf16.msra.mxu0 0
      %3700 = vmatprep.subr.bf16.mxu0 0
      %3701 = vmatpush1.bf16.msra.mxu0 0
      %3702 = vmatprep.mubr.bf16.mxu0 0
      %3703 = vmatmul.mubr.bf16.gmra.mrb[0].mxu0 %v3605
      %v3704 = vpop.f32.mrb[0].mxu0
      %v3705 = vadd.f32 0.0, %v3704
      %v3706 = vpop.f32.mrb[0].mxu0
      %v3707 = vpop.f32.mrb[0].mxu0
      %v3708 = vadd.f32 0.0, %v3707
      %v3709 = vpop.f32.mrb[0].mxu0
      %3710 = vmatprep.mubr.bf16.mxu0 0
      %3711 = vmatmul.mubr.bf16.gmra.mrb[0].mxu0 %v3608
      %v3712 = vpop.f32.mrb[0].mxu0
      %v3713 = vadd.f32 0.0, %v3712
      %v3714 = vpop.f32.mrb[0].mxu0
      %v3715 = vpop.f32.mrb[0].mxu0
      %v3716 = vadd.f32 0.0, %v3715
      %v3717 = vpop.f32.mrb[0].mxu0
      %3718 = vmatprep.mubr.bf16.mxu0 0
      %3719 = vmatmul.mubr.bf16.gmra.mrb[0].mxu0 %v3611
      %v3720 = vpop.f32.mrb[0].mxu0
      %v3721 = vadd.f32 0.0, %v3720
      %v3722 = vpop.f32.mrb[0].mxu0
      %v3723 = vpop.f32.mrb[0].mxu0
      %v3724 = vadd.f32 0.0, %v3723
      %v3725 = vpop.f32.mrb[0].mxu0
      %3726 = vmatprep.mubr.bf16.mxu0 0
      %3727 = vmatmul.mubr.bf16.gmra.mrb[0].mxu0 %v3614
      %v3728 = vpop.f32.mrb[0].mxu0
      %v3729 = vadd.f32 0.0, %v3728
      %v3730 = vpop.f32.mrb[0].mxu0
      %v3731 = vpop.f32.mrb[0].mxu0
      %v3732 = vadd.f32 0.0, %v3731
      %v3733 = vpop.f32.mrb[0].mxu0
      %3734 = vmatprep.mubr.bf16.mxu0 0
      %3735 = vmatmul.mubr.bf16.gmra.mrb[0].mxu0 %v3617
      %v3736 = vpop.f32.mrb[0].mxu0
      %v3737 = vadd.f32 0.0, %v3736
      %v3738 = vpop.f32.mrb[0].mxu0
      %v3739 = vpop.f32.mrb[0].mxu0
      %v3740 = vadd.f32 0.0, %v3739
      %v3741 = vpop.f32.mrb[0].mxu0
      %3742 = vmatprep.mubr.bf16.mxu0 0
      %3743 = vmatmul.mubr.bf16.gmra.mrb[0].mxu0 %v3620
      %v3744 = vpop.f32.mrb[0].mxu0
      %v3745 = vadd.f32 0.0, %v3744
      %v3746 = vpop.f32.mrb[0].mxu0
      %v3747 = vpop.f32.mrb[0].mxu0
      %v3748 = vadd.f32 0.0, %v3747
      %v3749 = vpop.f32.mrb[0].mxu0
      %3750 = vmatprep.mubr.bf16.mxu0 0
      %3751 = vmatmul.mubr.bf16.gmra.mrb[0].mxu0 %v3623
      %v3752 = vpop.f32.mrb[0].mxu0
      %v3753 = vadd.f32 0.0, %v3752
      %v3754 = vpop.f32.mrb[0].mxu0
      %v3755 = vpop.f32.mrb[0].mxu0
      %v3756 = vadd.f32 0.0, %v3755
      %v3757 = vpop.f32.mrb[0].mxu0
      %3758 = vmatprep.mubr.bf16.mxu0 0
      %3759 = vmatmul.mubr.bf16.gmra.mrb[0].mxu0 %v3626
      %v3760 = vpop.f32.mrb[0].mxu0
      %v3761 = vadd.f32 0.0, %v3760
      %v3762 = vpop.f32.mrb[0].mxu0
      %v3763 = vpop.f32.mrb[0].mxu0
      %v3764 = vadd.f32 0.0, %v3763
      %v3765 = vpop.f32.mrb[0].mxu0
      %3766 = vmatprep.mubr.bf16.mxu0 0
      %3767 = vmatmul.mubr.bf16.gmra.mrb[0].mxu0 %v3629
      %v3768 = vpop.f32.mrb[0].mxu0
      %v3769 = vadd.f32 0.0, %v3768
      %v3770 = vpop.f32.mrb[0].mxu0
      %v3771 = vpop.f32.mrb[0].mxu0
      %v3772 = vadd.f32 0.0, %v3771
      %v3773 = vpop.f32.mrb[0].mxu0
      %3774 = vmatprep.mubr.bf16.mxu0 0
      %3775 = vmatmul.mubr.bf16.gmra.mrb[0].mxu0 %v3632
      %v3776 = vpop.f32.mrb[0].mxu0
      %v3777 = vadd.f32 0.0, %v3776
      %v3778 = vpop.f32.mrb[0].mxu0
      %v3779 = vpop.f32.mrb[0].mxu0
      %v3780 = vadd.f32 0.0, %v3779
      %v3781 = vpop.f32.mrb[0].mxu0
      %3782 = vmatprep.mubr.bf16.mxu0 0
      %3783 = vmatmul.mubr.bf16.gmra.mrb[0].mxu0 %v3635
      %v3784 = vpop.f32.mrb[0].mxu0
      %v3785 = vadd.f32 0.0, %v3784
      %v3786 = vpop.f32.mrb[0].mxu0
      %v3787 = vpop.f32.mrb[0].mxu0
      %v3788 = vadd.f32 0.0, %v3787
      %v3789 = vpop.f32.mrb[0].mxu0
      %3790 = vmatprep.mubr.bf16.mxu0 0
      %3791 = vmatmul.mubr.bf16.gmra.mrb[0].mxu0 %v3638
      %v3792 = vpop.f32.mrb[0].mxu0
      %v3793 = vadd.f32 0.0, %v3792
      %v3794 = vpop.f32.mrb[0].mxu0
      %v3795 = vpop.f32.mrb[0].mxu0
      %v3796 = vadd.f32 0.0, %v3795
      %v3797 = vpop.f32.mrb[0].mxu0
      %3798 = vmatprep.mubr.bf16.mxu0 0
      %3799 = vmatmul.mubr.bf16.gmra.mrb[0].mxu0 %v3641
      %v3800 = vpop.f32.mrb[0].mxu0
      %v3801 = vadd.f32 0.0, %v3800
      %v3802 = vpop.f32.mrb[0].mxu0
      %v3803 = vpop.f32.mrb[0].mxu0
      %v3804 = vadd.f32 0.0, %v3803
      %v3805 = vpop.f32.mrb[0].mxu0
      %3806 = vmatprep.mubr.bf16.mxu0 0
      %3807 = vmatmul.mubr.bf16.gmra.mrb[0].mxu0 %v3644
      %v3808 = vpop.f32.mrb[0].mxu0
      %v3809 = vadd.f32 0.0, %v3808
      %v3810 = vpop.f32.mrb[0].mxu0
      %v3811 = vpop.f32.mrb[0].mxu0
      %v3812 = vadd.f32 0.0, %v3811
      %v3813 = vpop.f32.mrb[0].mxu0
      %3814 = vmatprep.mubr.bf16.mxu0 0
      %3815 = vmatmul.mubr.bf16.gmra.mrb[0].mxu0 %v3647
      %v3816 = vpop.f32.mrb[0].mxu0
      %v3817 = vadd.f32 0.0, %v3816
      %v3818 = vpop.f32.mrb[0].mxu0
      %v3819 = vpop.f32.mrb[0].mxu0
      %v3820 = vadd.f32 0.0, %v3819
      %v3821 = vpop.f32.mrb[0].mxu0
      %3822 = vmatprep.mubr.bf16.mxu0 0
      %3823 = vmatmul.mubr.bf16.gmra.mrb[0].mxu0 %v3650
      %v3824 = vpop.f32.mrb[0].mxu0
      %v3825 = vadd.f32 0.0, %v3824
      %v3826 = vpop.f32.mrb[0].mxu0
      %v3827 = vpop.f32.mrb[0].mxu0
      %v3828 = vadd.f32 0.0, %v3827
      %v3829 = vpop.f32.mrb[0].mxu0
      %3830 = vmatprep.mubr.bf16.mxu0 0
      %3831 = vmatmul.mubr.bf16.gmra.mrb[0].mxu0 %v3653
      %v3832 = vpop.f32.mrb[0].mxu0
      %v3833 = vadd.f32 0.0, %v3832
      %v3834 = vpop.f32.mrb[0].mxu0
      %v3835 = vpop.f32.mrb[0].mxu0
      %v3836 = vadd.f32 0.0, %v3835
      %v3837 = vpop.f32.mrb[0].mxu0
      %3838 = vmatprep.mubr.bf16.mxu0 0
      %3839 = vmatmul.mubr.bf16.gmra.mrb[0].mxu0 %v3656
      %v3840 = vpop.f32.mrb[0].mxu0
      %v3841 = vadd.f32 0.0, %v3840
      %v3842 = vpop.f32.mrb[0].mxu0
      %v3843 = vpop.f32.mrb[0].mxu0
      %v3844 = vadd.f32 0.0, %v3843
      %v3845 = vpop.f32.mrb[0].mxu0
      %3846 = vmatprep.mubr.bf16.mxu0 0
      %3847 = vmatmul.mubr.bf16.gmra.mrb[0].mxu0 %v3659
      %v3848 = vpop.f32.mrb[0].mxu0
      %v3849 = vadd.f32 0.0, %v3848
      %v3850 = vpop.f32.mrb[0].mxu0
      %v3851 = vpop.f32.mrb[0].mxu0
      %v3852 = vadd.f32 0.0, %v3851
      %v3853 = vpop.f32.mrb[0].mxu0
      %3854 = vmatprep.mubr.bf16.mxu0 0
      %3855 = vmatmul.mubr.bf16.gmra.mrb[0].mxu0 %v3662
      %v3856 = vpop.f32.mrb[0].mxu0
      %v3857 = vadd.f32 0.0, %v3856
      %v3858 = vpop.f32.mrb[0].mxu0
      %v3859 = vpop.f32.mrb[0].mxu0
      %v3860 = vadd.f32 0.0, %v3859
      %v3861 = vpop.f32.mrb[0].mxu0
      %3862 = vmatprep.mubr.bf16.mxu0 0
      %3863 = vmatmul.mubr.bf16.gmra.mrb[0].mxu0 %v3665
      %v3864 = vpop.f32.mrb[0].mxu0
      %v3865 = vadd.f32 0.0, %v3864
      %v3866 = vpop.f32.mrb[0].mxu0
      %v3867 = vpop.f32.mrb[0].mxu0
      %v3868 = vpop.f32.mrb[0].mxu0
      %3869 = vdwg.mxu0
      %3911 = vrot.lane.b32.xlu0 %v3705, 8
      %v3912 = vpop.permute.xlu0 %3911
      %3913 = vrot.lane.b32.xlu0 %v3708, 8
      %v3914 = vpop.permute.xlu0 %3913
      %3915 = vrot.lane.b32.xlu0 %v3713, 8
      %v3916 = vpop.permute.xlu0 %3915
      %3917 = vrot.lane.b32.xlu0 %v3716, 8
      %v3918 = vpop.permute.xlu0 %3917
      %3919 = vrot.lane.b32.xlu0 %v3721, 8
      %v3920 = vpop.permute.xlu0 %3919
      %3921 = vrot.lane.b32.xlu0 %v3724, 8
      %v3922 = vpop.permute.xlu0 %3921
      %3923 = vrot.lane.b32.xlu0 %v3729, 8
      %v3924 = vpop.permute.xlu0 %3923
      %3925 = vrot.lane.b32.xlu0 %v3732, 8
      %v3926 = vpop.permute.xlu0 %3925
      %3927 = vrot.lane.b32.xlu0 %v3737, 8
      %v3928 = vpop.permute.xlu0 %3927
      %3929 = vrot.lane.b32.xlu0 %v3740, 8
      %v3930 = vpop.permute.xlu0 %3929
      %3931 = vrot.lane.b32.xlu0 %v3745, 8
      %v3932 = vpop.permute.xlu0 %3931
      %3933 = vrot.lane.b32.xlu0 %v3748, 8
      %v3934 = vpop.permute.xlu0 %3933
      %3935 = vrot.lane.b32.xlu0 %v3753, 8
      %v3936 = vpop.permute.xlu0 %3935
      %3937 = vrot.lane.b32.xlu0 %v3756, 8
      %v3938 = vpop.permute.xlu0 %3937
      %3939 = vrot.lane.b32.xlu0 %v3761, 8
      %v3940 = vpop.permute.xlu0 %3939
      %3941 = vrot.lane.b32.xlu0 %v3764, 8
      %v3942 = vpop.permute.xlu0 %3941
      %3943 = vrot.lane.b32.xlu0 %v3769, 8
      %v3944 = vpop.permute.xlu0 %3943
      %3945 = vrot.lane.b32.xlu0 %v3772, 8
      %v3946 = vpop.permute.xlu0 %3945
      %3947 = vrot.lane.b32.xlu0 %v3777, 8
      %v3948 = vpop.permute.xlu0 %3947
      %3949 = vrot.lane.b32.xlu0 %v3780, 8
      %v3950 = vpop.permute.xlu0 %3949
      %3951 = vrot.lane.b32.xlu0 %v3785, 8
      %v3952 = vpop.permute.xlu0 %3951
      %3953 = vrot.lane.b32.xlu0 %v3788, 8
      %v3954 = vpop.permute.xlu0 %3953
      %3955 = vrot.lane.b32.xlu0 %v3793, 8
      %v3956 = vpop.permute.xlu0 %3955
      %3957 = vrot.lane.b32.xlu0 %v3796, 8
      %v3958 = vpop.permute.xlu0 %3957
      %3959 = vrot.lane.b32.xlu0 %v3801, 8
      %v3960 = vpop.permute.xlu0 %3959
      %3961 = vrot.lane.b32.xlu0 %v3804, 8
      %v3962 = vpop.permute.xlu0 %3961
      %3963 = vrot.lane.b32.xlu0 %v3809, 8
      %v3964 = vpop.permute.xlu0 %3963
      %3965 = vrot.lane.b32.xlu0 %v3812, 8
      %v3966 = vpop.permute.xlu0 %3965
      %3967 = vrot.lane.b32.xlu0 %v3817, 8
      %v3968 = vpop.permute.xlu0 %3967
      %3969 = vrot.lane.b32.xlu0 %v3820, 8
      %v3970 = vpop.permute.xlu0 %3969
      %3971 = vrot.lane.b32.xlu0 %v3825, 8
      %v3972 = vpop.permute.xlu0 %3971
      %3973 = vrot.lane.b32.xlu0 %v3828, 8
      %v3974 = vpop.permute.xlu0 %3973
      %3975 = vrot.lane.b32.xlu0 %v3833, 8
      %v3976 = vpop.permute.xlu0 %3975
      %3977 = vrot.lane.b32.xlu0 %v3836, 8
      %v3978 = vpop.permute.xlu0 %3977
      %3979 = vrot.lane.b32.xlu0 %v3841, 8
      %v3980 = vpop.permute.xlu0 %3979
      %3981 = vrot.lane.b32.xlu0 %v3844, 8
      %v3982 = vpop.permute.xlu0 %3981
      %3983 = vrot.lane.b32.xlu0 %v3849, 8
      %v3984 = vpop.permute.xlu0 %3983
      %3985 = vrot.lane.b32.xlu0 %v3852, 8
      %v3986 = vpop.permute.xlu0 %3985
      %3987 = vrot.lane.b32.xlu0 %v3857, 8
      %v3988 = vpop.permute.xlu0 %3987
      %3989 = vrot.lane.b32.xlu0 %v3860, 8
      %v3990 = vpop.permute.xlu0 %3989
      %3991 = vrot.lane.b32.xlu0 %v3865, 8
      %v3992 = vpop.permute.xlu0 %3991
      %v4034 = vadd.f32 %v3227, %v3912
      %v4035 = vadd.f32 %v3228, %v3914
      %v4036 = vadd.f32 %v3229, %v3916
      %v4037 = vadd.f32 %v3230, %v3918
      %v4038 = vadd.f32 %v3231, %v3920
      %v4039 = vadd.f32 %v3232, %v3922
      %v4040 = vadd.f32 %v3233, %v3924
      %v4041 = vadd.f32 %v3234, %v3926
      %v4042 = vadd.f32 %v3235, %v3928
      %v4043 = vadd.f32 %v3236, %v3930
      %v4044 = vadd.f32 %v3237, %v3932
      %v4045 = vadd.f32 %v3238, %v3934
      %v4046 = vadd.f32 %v3239, %v3936
      %v4047 = vadd.f32 %v3240, %v3938
      %v4048 = vadd.f32 %v3241, %v3940
      %v4049 = vadd.f32 %v3242, %v3942
      %v4050 = vadd.f32 %v3243, %v3944
      %v4051 = vadd.f32 %v3244, %v3946
      %v4052 = vadd.f32 %v3245, %v3948
      %v4053 = vadd.f32 %v3246, %v3950
      %v4054 = vadd.f32 %v3247, %v3952
      %v4055 = vadd.f32 %v3248, %v3954
      %v4056 = vadd.f32 %v3249, %v3956
      %v4057 = vadd.f32 %v3250, %v3958
      %v4058 = vadd.f32 %v3251, %v3960
      %v4059 = vadd.f32 %v3252, %v3962
      %v4060 = vadd.f32 %v3253, %v3964
      %v4061 = vadd.f32 %v3254, %v3966
      %v4062 = vadd.f32 %v3255, %v3968
      %v4063 = vadd.f32 %v3256, %v3970
      %v4064 = vadd.f32 %v3257, %v3972
      %v4065 = vadd.f32 %v3258, %v3974
      %v4066 = vadd.f32 %v3259, %v3976
      %v4067 = vadd.f32 %v3260, %v3978
      %v4068 = vadd.f32 %v3261, %v3980
      %v4069 = vadd.f32 %v3262, %v3982
      %v4070 = vadd.f32 %v3263, %v3984
      %v4071 = vadd.f32 %v3264, %v3986
      %v4072 = vadd.f32 %v3265, %v3988
      %v4073 = vadd.f32 %v3266, %v3990
      %v4074 = vadd.f32 %v3267, %v3992
      %v4075 = vld [vmem:[%s4 + $0x10] sm:$0xf]
      %v4076 = vpack.c.b16 %v3355, %v3354
      %v4077 = vpack.c.b16 %v3357, %v3356
      %v4078 = vpack.c.b16 %v3359, %v3358
      %v4079 = vpack.c.b16 %v3361, %v3360
      %v4080 = vpack.c.b16 %v3363, %v3362
      %v4081 = vpack.c.b16 %v3365, %v3364
      %v4082 = vpack.c.b16 %v3367, %v3366
      %v4083 = vpack.c.b16 %v3369, %v3368
      %v4084 = vpack.c.b16 %v3371, %v3370
      %v4085 = vpack.c.b16 %v3373, %v3372
      %v4086 = vpack.c.b16 %v3375, %v3374
      %v4087 = vpack.c.b16 %v3377, %v3376
      %v4088 = vpack.c.b16 %v3379, %v3378
      %v4089 = vpack.c.b16 %v3381, %v3380
      %v4090 = vpack.c.b16 %v3383, %v3382
      %v4091 = vpack.c.b16 %v3385, %v3384
      %v4092 = vpack.c.b16 %v3387, %v3386
      %v4093 = vpack.c.b16 %v3389, %v3388
      %v4094 = vpack.c.b16 %v3391, %v3390
      %v4095 = vpack.c.b16 %v3393, %v3392
      %v4096 = vpack.c.b16 %v3394, %v3394
      %v4098 = vsel %vm1707, %v4076, 0
      %v4101 = vsel %vm1707, %v4077, 0
      %v4104 = vsel %vm1707, %v4078, 0
      %v4107 = vsel %vm1707, %v4079, 0
      %v4110 = vsel %vm1707, %v4080, 0
      %v4113 = vsel %vm1707, %v4081, 0
      %v4116 = vsel %vm1707, %v4082, 0
      %v4119 = vsel %vm1707, %v4083, 0
      %v4122 = vsel %vm1707, %v4084, 0
      %v4125 = vsel %vm1707, %v4085, 0
      %v4128 = vsel %vm1707, %v4086, 0
      %v4131 = vsel %vm1707, %v4087, 0
      %v4134 = vsel %vm1707, %v4088, 0
      %v4137 = vsel %vm1707, %v4089, 0
      %v4140 = vsel %vm1707, %v4090, 0
      %v4143 = vsel %vm1707, %v4091, 0
      %v4146 = vsel %vm1707, %v4092, 0
      %v4149 = vsel %vm1707, %v4093, 0
      %v4152 = vsel %vm1707, %v4094, 0
      %v4155 = vsel %vm1707, %v4095, 0
      %v4158 = vsel %vm1707, %v4096, 0
      %v4161 = vsel %vm1771, %v4075, 0
      %4163 = vmatprep.subr.bf16.mxu0 0
      %4164 = vmatpush1.bf16.msra.mxu0 %v4161
      %4165 = vmatprep.subr.bf16.mxu0 0
      %4166 = vmatpush1.bf16.msra.mxu0 0
      %4167 = vmatprep.subr.bf16.mxu0 0
      %4168 = vmatpush1.bf16.msra.mxu0 0
      %4169 = vmatprep.subr.bf16.mxu0 0
      %4170 = vmatpush1.bf16.msra.mxu0 0
      %4171 = vmatprep.subr.bf16.mxu0 0
      %4172 = vmatpush1.bf16.msra.mxu0 0
      %4173 = vmatprep.subr.bf16.mxu0 0
      %4174 = vmatpush1.bf16.msra.mxu0 0
      %4175 = vmatprep.subr.bf16.mxu0 0
      %4176 = vmatpush1.bf16.msra.mxu0 0
      %4177 = vmatprep.subr.bf16.mxu0 0
      %4178 = vmatpush1.bf16.msra.mxu0 0
      %4179 = vmatprep.subr.bf16.mxu0 0
      %4180 = vmatpush1.bf16.msra.mxu0 0
      %4181 = vmatprep.subr.bf16.mxu0 0
      %4182 = vmatpush1.bf16.msra.mxu0 0
      %4183 = vmatprep.subr.bf16.mxu0 0
      %4184 = vmatpush1.bf16.msra.mxu0 0
      %4185 = vmatprep.subr.bf16.mxu0 0
      %4186 = vmatpush1.bf16.msra.mxu0 0
      %4187 = vmatprep.subr.bf16.mxu0 0
      %4188 = vmatpush1.bf16.msra.mxu0 0
      %4189 = vmatprep.subr.bf16.mxu0 0
      %4190 = vmatpush1.bf16.msra.mxu0 0
      %4191 = vmatprep.subr.bf16.mxu0 0
      %4192 = vmatpush1.bf16.msra.mxu0 0
      %4193 = vmatprep.subr.bf16.mxu0 0
      %4194 = vmatpush1.bf16.msra.mxu0 0
      %4195 = vmatprep.mubr.bf16.mxu0 0
      %4196 = vmatmul.mubr.bf16.gmra.mrb[0].mxu0 %v4098
      %v4197 = vpop.f32.mrb[0].mxu0
      %v4198 = vadd.f32 0.0, %v4197
      %v4199 = vpop.f32.mrb[0].mxu0
      %v4200 = vpop.f32.mrb[0].mxu0
      %v4201 = vadd.f32 0.0, %v4200
      %v4202 = vpop.f32.mrb[0].mxu0
      %4203 = vmatprep.mubr.bf16.mxu0 0
      %4204 = vmatmul.mubr.bf16.gmra.mrb[0].mxu0 %v4101
      %v4205 = vpop.f32.mrb[0].mxu0
      %v4206 = vadd.f32 0.0, %v4205
      %v4207 = vpop.f32.mrb[0].mxu0
      %v4208 = vpop.f32.mrb[0].mxu0
      %v4209 = vadd.f32 0.0, %v4208
      %v4210 = vpop.f32.mrb[0].mxu0
      %4211 = vmatprep.mubr.bf16.mxu0 0
      %4212 = vmatmul.mubr.bf16.gmra.mrb[0].mxu0 %v4104
      %v4213 = vpop.f32.mrb[0].mxu0
      %v4214 = vadd.f32 0.0, %v4213
      %v4215 = vpop.f32.mrb[0].mxu0
      %v4216 = vpop.f32.mrb[0].mxu0
      %v4217 = vadd.f32 0.0, %v4216
      %v4218 = vpop.f32.mrb[0].mxu0
      %4219 = vmatprep.mubr.bf16.mxu0 0
      %4220 = vmatmul.mubr.bf16.gmra.mrb[0].mxu0 %v4107
      %v4221 = vpop.f32.mrb[0].mxu0
      %v4222 = vadd.f32 0.0, %v4221
      %v4223 = vpop.f32.mrb[0].mxu0
      %v4224 = vpop.f32.mrb[0].mxu0
      %v4225 = vadd.f32 0.0, %v4224
      %v4226 = vpop.f32.mrb[0].mxu0
      %4227 = vmatprep.mubr.bf16.mxu0 0
      %4228 = vmatmul.mubr.bf16.gmra.mrb[0].mxu0 %v4110
      %v4229 = vpop.f32.mrb[0].mxu0
      %v4230 = vadd.f32 0.0, %v4229
      %v4231 = vpop.f32.mrb[0].mxu0
      %v4232 = vpop.f32.mrb[0].mxu0
      %v4233 = vadd.f32 0.0, %v4232
      %v4234 = vpop.f32.mrb[0].mxu0
      %4235 = vmatprep.mubr.bf16.mxu0 0
      %4236 = vmatmul.mubr.bf16.gmra.mrb[0].mxu0 %v4113
      %v4237 = vpop.f32.mrb[0].mxu0
      %v4238 = vadd.f32 0.0, %v4237
      %v4239 = vpop.f32.mrb[0].mxu0
      %v4240 = vpop.f32.mrb[0].mxu0
      %v4241 = vadd.f32 0.0, %v4240
      %v4242 = vpop.f32.mrb[0].mxu0
      %4243 = vmatprep.mubr.bf16.mxu0 0
      %4244 = vmatmul.mubr.bf16.gmra.mrb[0].mxu0 %v4116
      %v4245 = vpop.f32.mrb[0].mxu0
      %v4246 = vadd.f32 0.0, %v4245
      %v4247 = vpop.f32.mrb[0].mxu0
      %v4248 = vpop.f32.mrb[0].mxu0
      %v4249 = vadd.f32 0.0, %v4248
      %v4250 = vpop.f32.mrb[0].mxu0
      %4251 = vmatprep.mubr.bf16.mxu0 0
      %4252 = vmatmul.mubr.bf16.gmra.mrb[0].mxu0 %v4119
      %v4253 = vpop.f32.mrb[0].mxu0
      %v4254 = vadd.f32 0.0, %v4253
      %v4255 = vpop.f32.mrb[0].mxu0
      %v4256 = vpop.f32.mrb[0].mxu0
      %v4257 = vadd.f32 0.0, %v4256
      %v4258 = vpop.f32.mrb[0].mxu0
      %4259 = vmatprep.mubr.bf16.mxu0 0
      %4260 = vmatmul.mubr.bf16.gmra.mrb[0].mxu0 %v4122
      %v4261 = vpop.f32.mrb[0].mxu0
      %v4262 = vadd.f32 0.0, %v4261
      %v4263 = vpop.f32.mrb[0].mxu0
      %v4264 = vpop.f32.mrb[0].mxu0
      %v4265 = vadd.f32 0.0, %v4264
      %v4266 = vpop.f32.mrb[0].mxu0
      %4267 = vmatprep.mubr.bf16.mxu0 0
      %4268 = vmatmul.mubr.bf16.gmra.mrb[0].mxu0 %v4125
      %v4269 = vpop.f32.mrb[0].mxu0
      %v4270 = vadd.f32 0.0, %v4269
      %v4271 = vpop.f32.mrb[0].mxu0
      %v4272 = vpop.f32.mrb[0].mxu0
      %v4273 = vadd.f32 0.0, %v4272
      %v4274 = vpop.f32.mrb[0].mxu0
      %4275 = vmatprep.mubr.bf16.mxu0 0
      %4276 = vmatmul.mubr.bf16.gmra.mrb[0].mxu0 %v4128
      %v4277 = vpop.f32.mrb[0].mxu0
      %v4278 = vadd.f32 0.0, %v4277
      %v4279 = vpop.f32.mrb[0].mxu0
      %v4280 = vpop.f32.mrb[0].mxu0
      %v4281 = vadd.f32 0.0, %v4280
      %v4282 = vpop.f32.mrb[0].mxu0
      %4283 = vmatprep.mubr.bf16.mxu0 0
      %4284 = vmatmul.mubr.bf16.gmra.mrb[0].mxu0 %v4131
      %v4285 = vpop.f32.mrb[0].mxu0
      %v4286 = vadd.f32 0.0, %v4285
      %v4287 = vpop.f32.mrb[0].mxu0
      %v4288 = vpop.f32.mrb[0].mxu0
      %v4289 = vadd.f32 0.0, %v4288
      %v4290 = vpop.f32.mrb[0].mxu0
      %4291 = vmatprep.mubr.bf16.mxu0 0
      %4292 = vmatmul.mubr.bf16.gmra.mrb[0].mxu0 %v4134
      %v4293 = vpop.f32.mrb[0].mxu0
      %v4294 = vadd.f32 0.0, %v4293
      %v4295 = vpop.f32.mrb[0].mxu0
      %v4296 = vpop.f32.mrb[0].mxu0
      %v4297 = vadd.f32 0.0, %v4296
      %v4298 = vpop.f32.mrb[0].mxu0
      %4299 = vmatprep.mubr.bf16.mxu0 0
      %4300 = vmatmul.mubr.bf16.gmra.mrb[0].mxu0 %v4137
      %v4301 = vpop.f32.mrb[0].mxu0
      %v4302 = vadd.f32 0.0, %v4301
      %v4303 = vpop.f32.mrb[0].mxu0
      %v4304 = vpop.f32.mrb[0].mxu0
      %v4305 = vadd.f32 0.0, %v4304
      %v4306 = vpop.f32.mrb[0].mxu0
      %4307 = vmatprep.mubr.bf16.mxu0 0
      %4308 = vmatmul.mubr.bf16.gmra.mrb[0].mxu0 %v4140
      %v4309 = vpop.f32.mrb[0].mxu0
      %v4310 = vadd.f32 0.0, %v4309
      %v4311 = vpop.f32.mrb[0].mxu0
      %v4312 = vpop.f32.mrb[0].mxu0
      %v4313 = vadd.f32 0.0, %v4312
      %v4314 = vpop.f32.mrb[0].mxu0
      %4315 = vmatprep.mubr.bf16.mxu0 0
      %4316 = vmatmul.mubr.bf16.gmra.mrb[0].mxu0 %v4143
      %v4317 = vpop.f32.mrb[0].mxu0
      %v4318 = vadd.f32 0.0, %v4317
      %v4319 = vpop.f32.mrb[0].mxu0
      %v4320 = vpop.f32.mrb[0].mxu0
      %v4321 = vadd.f32 0.0, %v4320
      %v4322 = vpop.f32.mrb[0].mxu0
      %4323 = vmatprep.mubr.bf16.mxu0 0
      %4324 = vmatmul.mubr.bf16.gmra.mrb[0].mxu0 %v4146
      %v4325 = vpop.f32.mrb[0].mxu0
      %v4326 = vadd.f32 0.0, %v4325
      %v4327 = vpop.f32.mrb[0].mxu0
      %v4328 = vpop.f32.mrb[0].mxu0
      %v4329 = vadd.f32 0.0, %v4328
      %v4330 = vpop.f32.mrb[0].mxu0
      %4331 = vmatprep.mubr.bf16.mxu0 0
      %4332 = vmatmul.mubr.bf16.gmra.mrb[0].mxu0 %v4149
      %v4333 = vpop.f32.mrb[0].mxu0
      %v4334 = vadd.f32 0.0, %v4333
      %v4335 = vpop.f32.mrb[0].mxu0
      %v4336 = vpop.f32.mrb[0].mxu0
      %v4337 = vadd.f32 0.0, %v4336
      %v4338 = vpop.f32.mrb[0].mxu0
      %4339 = vmatprep.mubr.bf16.mxu0 0
      %4340 = vmatmul.mubr.bf16.gmra.mrb[0].mxu0 %v4152
      %v4341 = vpop.f32.mrb[0].mxu0
      %v4342 = vadd.f32 0.0, %v4341
      %v4343 = vpop.f32.mrb[0].mxu0
      %v4344 = vpop.f32.mrb[0].mxu0
      %v4345 = vadd.f32 0.0, %v4344
      %v4346 = vpop.f32.mrb[0].mxu0
      %4347 = vmatprep.mubr.bf16.mxu0 0
      %4348 = vmatmul.mubr.bf16.gmra.mrb[0].mxu0 %v4155
      %v4349 = vpop.f32.mrb[0].mxu0
      %v4350 = vadd.f32 0.0, %v4349
      %v4351 = vpop.f32.mrb[0].mxu0
      %v4352 = vpop.f32.mrb[0].mxu0
      %v4353 = vadd.f32 0.0, %v4352
      %v4354 = vpop.f32.mrb[0].mxu0
      %4355 = vmatprep.mubr.bf16.mxu0 0
      %4356 = vmatmul.mubr.bf16.gmra.mrb[0].mxu0 %v4158
      %v4357 = vpop.f32.mrb[0].mxu0
      %v4358 = vadd.f32 0.0, %v4357
      %v4359 = vpop.f32.mrb[0].mxu0
      %v4360 = vpop.f32.mrb[0].mxu0
      %v4361 = vpop.f32.mrb[0].mxu0
      %4362 = vdwg.mxu0
      %4404 = vrot.lane.b32.xlu0 %v4198, 8
      %v4405 = vpop.permute.xlu0 %4404
      %4406 = vrot.lane.b32.xlu0 %v4201, 8
      %v4407 = vpop.permute.xlu0 %4406
      %4408 = vrot.lane.b32.xlu0 %v4206, 8
      %v4409 = vpop.permute.xlu0 %4408
      %4410 = vrot.lane.b32.xlu0 %v4209, 8
      %v4411 = vpop.permute.xlu0 %4410
      %4412 = vrot.lane.b32.xlu0 %v4214, 8
      %v4413 = vpop.permute.xlu0 %4412
      %4414 = vrot.lane.b32.xlu0 %v4217, 8
      %v4415 = vpop.permute.xlu0 %4414
      %4416 = vrot.lane.b32.xlu0 %v4222, 8
      %v4417 = vpop.permute.xlu0 %4416
      %4418 = vrot.lane.b32.xlu0 %v4225, 8
      %v4419 = vpop.permute.xlu0 %4418
      %4420 = vrot.lane.b32.xlu0 %v4230, 8
      %v4421 = vpop.permute.xlu0 %4420
      %4422 = vrot.lane.b32.xlu0 %v4233, 8
      %v4423 = vpop.permute.xlu0 %4422
      %4424 = vrot.lane.b32.xlu0 %v4238, 8
      %v4425 = vpop.permute.xlu0 %4424
      %4426 = vrot.lane.b32.xlu0 %v4241, 8
      %v4427 = vpop.permute.xlu0 %4426
      %4428 = vrot.lane.b32.xlu0 %v4246, 8
      %v4429 = vpop.permute.xlu0 %4428
      %4430 = vrot.lane.b32.xlu0 %v4249, 8
      %v4431 = vpop.permute.xlu0 %4430
      %4432 = vrot.lane.b32.xlu0 %v4254, 8
      %v4433 = vpop.permute.xlu0 %4432
      %4434 = vrot.lane.b32.xlu0 %v4257, 8
      %v4435 = vpop.permute.xlu0 %4434
      %4436 = vrot.lane.b32.xlu0 %v4262, 8
      %v4437 = vpop.permute.xlu0 %4436
      %4438 = vrot.lane.b32.xlu0 %v4265, 8
      %v4439 = vpop.permute.xlu0 %4438
      %4440 = vrot.lane.b32.xlu0 %v4270, 8
      %v4441 = vpop.permute.xlu0 %4440
      %4442 = vrot.lane.b32.xlu0 %v4273, 8
      %v4443 = vpop.permute.xlu0 %4442
      %4444 = vrot.lane.b32.xlu0 %v4278, 8
      %v4445 = vpop.permute.xlu0 %4444
      %4446 = vrot.lane.b32.xlu0 %v4281, 8
      %v4447 = vpop.permute.xlu0 %4446
      %4448 = vrot.lane.b32.xlu0 %v4286, 8
      %v4449 = vpop.permute.xlu0 %4448
      %4450 = vrot.lane.b32.xlu0 %v4289, 8
      %v4451 = vpop.permute.xlu0 %4450
      %4452 = vrot.lane.b32.xlu0 %v4294, 8
      %v4453 = vpop.permute.xlu0 %4452
      %4454 = vrot.lane.b32.xlu0 %v4297, 8
      %v4455 = vpop.permute.xlu0 %4454
      %4456 = vrot.lane.b32.xlu0 %v4302, 8
      %v4457 = vpop.permute.xlu0 %4456
      %4458 = vrot.lane.b32.xlu0 %v4305, 8
      %v4459 = vpop.permute.xlu0 %4458
      %4460 = vrot.lane.b32.xlu0 %v4310, 8
      %v4461 = vpop.permute.xlu0 %4460
      %4462 = vrot.lane.b32.xlu0 %v4313, 8
      %v4463 = vpop.permute.xlu0 %4462
      %4464 = vrot.lane.b32.xlu0 %v4318, 8
      %v4465 = vpop.permute.xlu0 %4464
      %4466 = vrot.lane.b32.xlu0 %v4321, 8
      %v4467 = vpop.permute.xlu0 %4466
      %4468 = vrot.lane.b32.xlu0 %v4326, 8
      %v4469 = vpop.permute.xlu0 %4468
      %4470 = vrot.lane.b32.xlu0 %v4329, 8
      %v4471 = vpop.permute.xlu0 %4470
      %4472 = vrot.lane.b32.xlu0 %v4334, 8
      %v4473 = vpop.permute.xlu0 %4472
      %4474 = vrot.lane.b32.xlu0 %v4337, 8
      %v4475 = vpop.permute.xlu0 %4474
      %4476 = vrot.lane.b32.xlu0 %v4342, 8
      %v4477 = vpop.permute.xlu0 %4476
      %4478 = vrot.lane.b32.xlu0 %v4345, 8
      %v4479 = vpop.permute.xlu0 %4478
      %4480 = vrot.lane.b32.xlu0 %v4350, 8
      %v4481 = vpop.permute.xlu0 %4480
      %4482 = vrot.lane.b32.xlu0 %v4353, 8
      %v4483 = vpop.permute.xlu0 %4482
      %4484 = vrot.lane.b32.xlu0 %v4358, 8
      %v4485 = vpop.permute.xlu0 %4484
      %v4527 = vadd.f32 %v4034, %v4405
      %v4528 = vadd.f32 %v4035, %v4407
      %v4529 = vadd.f32 %v4036, %v4409
      %v4530 = vadd.f32 %v4037, %v4411
      %v4531 = vadd.f32 %v4038, %v4413
      %v4532 = vadd.f32 %v4039, %v4415
      %v4533 = vadd.f32 %v4040, %v4417
      %v4534 = vadd.f32 %v4041, %v4419
      %v4535 = vadd.f32 %v4042, %v4421
      %v4536 = vadd.f32 %v4043, %v4423
      %v4537 = vadd.f32 %v4044, %v4425
      %v4538 = vadd.f32 %v4045, %v4427
      %v4539 = vadd.f32 %v4046, %v4429
      %v4540 = vadd.f32 %v4047, %v4431
      %v4541 = vadd.f32 %v4048, %v4433
      %v4542 = vadd.f32 %v4049, %v4435
      %v4543 = vadd.f32 %v4050, %v4437
      %v4544 = vadd.f32 %v4051, %v4439
      %v4545 = vadd.f32 %v4052, %v4441
      %v4546 = vadd.f32 %v4053, %v4443
      %v4547 = vadd.f32 %v4054, %v4445
      %v4548 = vadd.f32 %v4055, %v4447
      %v4549 = vadd.f32 %v4056, %v4449
      %v4550 = vadd.f32 %v4057, %v4451
      %v4551 = vadd.f32 %v4058, %v4453
      %v4552 = vadd.f32 %v4059, %v4455
      %v4553 = vadd.f32 %v4060, %v4457
      %v4554 = vadd.f32 %v4061, %v4459
      %v4555 = vadd.f32 %v4062, %v4461
      %v4556 = vadd.f32 %v4063, %v4463
      %v4557 = vadd.f32 %v4064, %v4465
      %v4558 = vadd.f32 %v4065, %v4467
      %v4559 = vadd.f32 %v4066, %v4469
      %v4560 = vadd.f32 %v4067, %v4471
      %v4561 = vadd.f32 %v4068, %v4473
      %v4562 = vadd.f32 %v4069, %v4475
      %v4563 = vadd.f32 %v4070, %v4477
      %v4564 = vadd.f32 %v4071, %v4479
      %v4565 = vadd.f32 %v4072, %v4481
      %v4566 = vadd.f32 %v4073, %v4483
      %v4567 = vadd.f32 %v4074, %v4485
      %v4568 = vld [vmem:[#allocation2 + $0xb0] sm:$0x7]
      %v4569 = vld [vmem:[%s4 + $0x14] sm:$0xf]
      %v4571 = vunpack.c.l.b16 %v4568
      %v4572 = vpack.c.b16 %v4571, %v4571
      %vm4573 = vsmask.f32 7424
      %v4574 = vshrl.u32 %v4076, 16
      %v4576 = vshll.u32 %v4076, 16
      %v4578 = vrot.slane %v4576, 1
      %v4579 = vor.u32 %v4574, %v4578
      %v4580 = vshll.u32 %v4077, 16
      %v4582 = vrot.slane %v4580, 1
      %v4583 = vsel %vm4573, %v4579, %v4582
      %v4584 = vshrl.u32 %v4077, 16
      %v4586 = vor.u32 %v4584, %v4582
      %v4587 = vshll.u32 %v4078, 16
      %v4589 = vrot.slane %v4587, 1
      %v4590 = vsel %vm4573, %v4586, %v4589
      %v4591 = vshrl.u32 %v4078, 16
      %v4593 = vor.u32 %v4591, %v4589
      %v4594 = vshll.u32 %v4079, 16
      %v4596 = vrot.slane %v4594, 1
      %v4597 = vsel %vm4573, %v4593, %v4596
      %v4598 = vshrl.u32 %v4079, 16
      %v4600 = vor.u32 %v4598, %v4596
      %v4601 = vshll.u32 %v4080, 16
      %v4603 = vrot.slane %v4601, 1
      %v4604 = vsel %vm4573, %v4600, %v4603
      %v4605 = vshrl.u32 %v4080, 16
      %v4607 = vor.u32 %v4605, %v4603
      %v4608 = vshll.u32 %v4081, 16
      %v4610 = vrot.slane %v4608, 1
      %v4611 = vsel %vm4573, %v4607, %v4610
      %v4612 = vshrl.u32 %v4081, 16
      %v4614 = vor.u32 %v4612, %v4610
      %v4615 = vshll.u32 %v4082, 16
      %v4617 = vrot.slane %v4615, 1
      %v4618 = vsel %vm4573, %v4614, %v4617
      %v4619 = vshrl.u32 %v4082, 16
      %v4621 = vor.u32 %v4619, %v4617
      %v4622 = vshll.u32 %v4083, 16
      %v4624 = vrot.slane %v4622, 1
      %v4625 = vsel %vm4573, %v4621, %v4624
      %v4626 = vshrl.u32 %v4083, 16
      %v4628 = vor.u32 %v4626, %v4624
      %v4629 = vshll.u32 %v4084, 16
      %v4631 = vrot.slane %v4629, 1
      %v4632 = vsel %vm4573, %v4628, %v4631
      %v4633 = vshrl.u32 %v4084, 16
      %v4635 = vor.u32 %v4633, %v4631
      %v4636 = vshll.u32 %v4085, 16
      %v4638 = vrot.slane %v4636, 1
      %v4639 = vsel %vm4573, %v4635, %v4638
      %v4640 = vshrl.u32 %v4085, 16
      %v4642 = vor.u32 %v4640, %v4638
      %v4643 = vshll.u32 %v4086, 16
      %v4645 = vrot.slane %v4643, 1
      %v4646 = vsel %vm4573, %v4642, %v4645
      %v4647 = vshrl.u32 %v4086, 16
      %v4649 = vor.u32 %v4647, %v4645
      %v4650 = vshll.u32 %v4087, 16
      %v4652 = vrot.slane %v4650, 1
      %v4653 = vsel %vm4573, %v4649, %v4652
      %v4654 = vshrl.u32 %v4087, 16
      %v4656 = vor.u32 %v4654, %v4652
      %v4657 = vshll.u32 %v4088, 16
      %v4659 = vrot.slane %v4657, 1
      %v4660 = vsel %vm4573, %v4656, %v4659
      %v4661 = vshrl.u32 %v4088, 16
      %v4663 = vor.u32 %v4661, %v4659
      %v4664 = vshll.u32 %v4089, 16
      %v4666 = vrot.slane %v4664, 1
      %v4667 = vsel %vm4573, %v4663, %v4666
      %v4668 = vshrl.u32 %v4089, 16
      %v4670 = vor.u32 %v4668, %v4666
      %v4671 = vshll.u32 %v4090, 16
      %v4673 = vrot.slane %v4671, 1
      %v4674 = vsel %vm4573, %v4670, %v4673
      %v4675 = vshrl.u32 %v4090, 16
      %v4677 = vor.u32 %v4675, %v4673
      %v4678 = vshll.u32 %v4091, 16
      %v4680 = vrot.slane %v4678, 1
      %v4681 = vsel %vm4573, %v4677, %v4680
      %v4682 = vshrl.u32 %v4091, 16
      %v4684 = vor.u32 %v4682, %v4680
      %v4685 = vshll.u32 %v4092, 16
      %v4687 = vrot.slane %v4685, 1
      %v4688 = vsel %vm4573, %v4684, %v4687
      %v4689 = vshrl.u32 %v4092, 16
      %v4691 = vor.u32 %v4689, %v4687
      %v4692 = vshll.u32 %v4093, 16
      %v4694 = vrot.slane %v4692, 1
      %v4695 = vsel %vm4573, %v4691, %v4694
      %v4696 = vshrl.u32 %v4093, 16
      %v4698 = vor.u32 %v4696, %v4694
      %v4699 = vshll.u32 %v4094, 16
      %v4701 = vrot.slane %v4699, 1
      %v4702 = vsel %vm4573, %v4698, %v4701
      %v4703 = vshrl.u32 %v4094, 16
      %v4705 = vor.u32 %v4703, %v4701
      %v4706 = vshll.u32 %v4095, 16
      %v4708 = vrot.slane %v4706, 1
      %v4709 = vsel %vm4573, %v4705, %v4708
      %v4710 = vshrl.u32 %v4095, 16
      %v4712 = vor.u32 %v4710, %v4708
      %v4714 = vshll.u32 %v4572, 16
      %v4716 = vrot.slane %v4714, 1
      %v4717 = vsel %vm4573, %v4712, %v4716
      %v4718 = vshrl.u32 %v4572, 16
      %v4720 = vor.u32 %v4718, %v4716
      %v4722 = vsel %vm1707, %v4583, 0
      %v4725 = vsel %vm1707, %v4590, 0
      %v4728 = vsel %vm1707, %v4597, 0
      %v4731 = vsel %vm1707, %v4604, 0
      %v4734 = vsel %vm1707, %v4611, 0
      %v4737 = vsel %vm1707, %v4618, 0
      %v4740 = vsel %vm1707, %v4625, 0
      %v4743 = vsel %vm1707, %v4632, 0
      %v4746 = vsel %vm1707, %v4639, 0
      %v4749 = vsel %vm1707, %v4646, 0
      %v4752 = vsel %vm1707, %v4653, 0
      %v4755 = vsel %vm1707, %v4660, 0
      %v4758 = vsel %vm1707, %v4667, 0
      %v4761 = vsel %vm1707, %v4674, 0
      %v4764 = vsel %vm1707, %v4681, 0
      %v4767 = vsel %vm1707, %v4688, 0
      %v4770 = vsel %vm1707, %v4695, 0
      %v4773 = vsel %vm1707, %v4702, 0
      %v4776 = vsel %vm1707, %v4709, 0
      %v4779 = vsel %vm1707, %v4717, 0
      %v4782 = vsel %vm1707, %v4720, 0
      %v4785 = vsel %vm1771, %v4569, 0
      %4787 = vmatprep.subr.bf16.mxu0 0
      %4788 = vmatpush1.bf16.msra.mxu0 %v4785
      %4789 = vmatprep.subr.bf16.mxu0 0
      %4790 = vmatpush1.bf16.msra.mxu0 0
      %4791 = vmatprep.subr.bf16.mxu0 0
      %4792 = vmatpush1.bf16.msra.mxu0 0
      %4793 = vmatprep.subr.bf16.mxu0 0
      %4794 = vmatpush1.bf16.msra.mxu0 0
      %4795 = vmatprep.subr.bf16.mxu0 0
      %4796 = vmatpush1.bf16.msra.mxu0 0
      %4797 = vmatprep.subr.bf16.mxu0 0
      %4798 = vmatpush1.bf16.msra.mxu0 0
      %4799 = vmatprep.subr.bf16.mxu0 0
      %4800 = vmatpush1.bf16.msra.mxu0 0
      %4801 = vmatprep.subr.bf16.mxu0 0
      %4802 = vmatpush1.bf16.msra.mxu0 0
      %4803 = vmatprep.subr.bf16.mxu0 0
      %4804 = vmatpush1.bf16.msra.mxu0 0
      %4805 = vmatprep.subr.bf16.mxu0 0
      %4806 = vmatpush1.bf16.msra.mxu0 0
      %4807 = vmatprep.subr.bf16.mxu0 0
      %4808 = vmatpush1.bf16.msra.mxu0 0
      %4809 = vmatprep.subr.bf16.mxu0 0
      %4810 = vmatpush1.bf16.msra.mxu0 0
      %4811 = vmatprep.subr.bf16.mxu0 0
      %4812 = vmatpush1.bf16.msra.mxu0 0
      %4813 = vmatprep.subr.bf16.mxu0 0
      %4814 = vmatpush1.bf16.msra.mxu0 0
      %4815 = vmatprep.subr.bf16.mxu0 0
      %4816 = vmatpush1.bf16.msra.mxu0 0
      %4817 = vmatprep.subr.bf16.mxu0 0
      %4818 = vmatpush1.bf16.msra.mxu0 0
      %4819 = vmatprep.mubr.bf16.mxu0 0
      %4820 = vmatmul.mubr.bf16.gmra.mrb[0].mxu0 %v4722
      %v4821 = vpop.f32.mrb[0].mxu0
      %v4822 = vadd.f32 0.0, %v4821
      %v4823 = vpop.f32.mrb[0].mxu0
      %v4824 = vpop.f32.mrb[0].mxu0
      %v4825 = vadd.f32 0.0, %v4824
      %v4826 = vpop.f32.mrb[0].mxu0
      %4827 = vmatprep.mubr.bf16.mxu0 0
      %4828 = vmatmul.mubr.bf16.gmra.mrb[0].mxu0 %v4725
      %v4829 = vpop.f32.mrb[0].mxu0
      %v4830 = vadd.f32 0.0, %v4829
      %v4831 = vpop.f32.mrb[0].mxu0
      %v4832 = vpop.f32.mrb[0].mxu0
      %v4833 = vadd.f32 0.0, %v4832
      %v4834 = vpop.f32.mrb[0].mxu0
      %4835 = vmatprep.mubr.bf16.mxu0 0
      %4836 = vmatmul.mubr.bf16.gmra.mrb[0].mxu0 %v4728
      %v4837 = vpop.f32.mrb[0].mxu0
      %v4838 = vadd.f32 0.0, %v4837
      %v4839 = vpop.f32.mrb[0].mxu0
      %v4840 = vpop.f32.mrb[0].mxu0
      %v4841 = vadd.f32 0.0, %v4840
      %v4842 = vpop.f32.mrb[0].mxu0
      %4843 = vmatprep.mubr.bf16.mxu0 0
      %4844 = vmatmul.mubr.bf16.gmra.mrb[0].mxu0 %v4731
      %v4845 = vpop.f32.mrb[0].mxu0
      %v4846 = vadd.f32 0.0, %v4845
      %v4847 = vpop.f32.mrb[0].mxu0
      %v4848 = vpop.f32.mrb[0].mxu0
      %v4849 = vadd.f32 0.0, %v4848
      %v4850 = vpop.f32.mrb[0].mxu0
      %4851 = vmatprep.mubr.bf16.mxu0 0
      %4852 = vmatmul.mubr.bf16.gmra.mrb[0].mxu0 %v4734
      %v4853 = vpop.f32.mrb[0].mxu0
      %v4854 = vadd.f32 0.0, %v4853
      %v4855 = vpop.f32.mrb[0].mxu0
      %v4856 = vpop.f32.mrb[0].mxu0
      %v4857 = vadd.f32 0.0, %v4856
      %v4858 = vpop.f32.mrb[0].mxu0
      %4859 = vmatprep.mubr.bf16.mxu0 0
      %4860 = vmatmul.mubr.bf16.gmra.mrb[0].mxu0 %v4737
      %v4861 = vpop.f32.mrb[0].mxu0
      %v4862 = vadd.f32 0.0, %v4861
      %v4863 = vpop.f32.mrb[0].mxu0
      %v4864 = vpop.f32.mrb[0].mxu0
      %v4865 = vadd.f32 0.0, %v4864
      %v4866 = vpop.f32.mrb[0].mxu0
      %4867 = vmatprep.mubr.bf16.mxu0 0
      %4868 = vmatmul.mubr.bf16.gmra.mrb[0].mxu0 %v4740
      %v4869 = vpop.f32.mrb[0].mxu0
      %v4870 = vadd.f32 0.0, %v4869
      %v4871 = vpop.f32.mrb[0].mxu0
      %v4872 = vpop.f32.mrb[0].mxu0
      %v4873 = vadd.f32 0.0, %v4872
      %v4874 = vpop.f32.mrb[0].mxu0
      %4875 = vmatprep.mubr.bf16.mxu0 0
      %4876 = vmatmul.mubr.bf16.gmra.mrb[0].mxu0 %v4743
      %v4877 = vpop.f32.mrb[0].mxu0
      %v4878 = vadd.f32 0.0, %v4877
      %v4879 = vpop.f32.mrb[0].mxu0
      %v4880 = vpop.f32.mrb[0].mxu0
      %v4881 = vadd.f32 0.0, %v4880
      %v4882 = vpop.f32.mrb[0].mxu0
      %4883 = vmatprep.mubr.bf16.mxu0 0
      %4884 = vmatmul.mubr.bf16.gmra.mrb[0].mxu0 %v4746
      %v4885 = vpop.f32.mrb[0].mxu0
      %v4886 = vadd.f32 0.0, %v4885
      %v4887 = vpop.f32.mrb[0].mxu0
      %v4888 = vpop.f32.mrb[0].mxu0
      %v4889 = vadd.f32 0.0, %v4888
      %v4890 = vpop.f32.mrb[0].mxu0
      %4891 = vmatprep.mubr.bf16.mxu0 0
      %4892 = vmatmul.mubr.bf16.gmra.mrb[0].mxu0 %v4749
      %v4893 = vpop.f32.mrb[0].mxu0
      %v4894 = vadd.f32 0.0, %v4893
      %v4895 = vpop.f32.mrb[0].mxu0
      %v4896 = vpop.f32.mrb[0].mxu0
      %v4897 = vadd.f32 0.0, %v4896
      %v4898 = vpop.f32.mrb[0].mxu0
      %4899 = vmatprep.mubr.bf16.mxu0 0
      %4900 = vmatmul.mubr.bf16.gmra.mrb[0].mxu0 %v4752
      %v4901 = vpop.f32.mrb[0].mxu0
      %v4902 = vadd.f32 0.0, %v4901
      %v4903 = vpop.f32.mrb[0].mxu0
      %v4904 = vpop.f32.mrb[0].mxu0
      %v4905 = vadd.f32 0.0, %v4904
      %v4906 = vpop.f32.mrb[0].mxu0
      %4907 = vmatprep.mubr.bf16.mxu0 0
      %4908 = vmatmul.mubr.bf16.gmra.mrb[0].mxu0 %v4755
      %v4909 = vpop.f32.mrb[0].mxu0
      %v4910 = vadd.f32 0.0, %v4909
      %v4911 = vpop.f32.mrb[0].mxu0
      %v4912 = vpop.f32.mrb[0].mxu0
      %v4913 = vadd.f32 0.0, %v4912
      %v4914 = vpop.f32.mrb[0].mxu0
      %4915 = vmatprep.mubr.bf16.mxu0 0
      %4916 = vmatmul.mubr.bf16.gmra.mrb[0].mxu0 %v4758
      %v4917 = vpop.f32.mrb[0].mxu0
      %v4918 = vadd.f32 0.0, %v4917
      %v4919 = vpop.f32.mrb[0].mxu0
      %v4920 = vpop.f32.mrb[0].mxu0
      %v4921 = vadd.f32 0.0, %v4920
      %v4922 = vpop.f32.mrb[0].mxu0
      %4923 = vmatprep.mubr.bf16.mxu0 0
      %4924 = vmatmul.mubr.bf16.gmra.mrb[0].mxu0 %v4761
      %v4925 = vpop.f32.mrb[0].mxu0
      %v4926 = vadd.f32 0.0, %v4925
      %v4927 = vpop.f32.mrb[0].mxu0
      %v4928 = vpop.f32.mrb[0].mxu0
      %v4929 = vadd.f32 0.0, %v4928
      %v4930 = vpop.f32.mrb[0].mxu0
      %4931 = vmatprep.mubr.bf16.mxu0 0
      %4932 = vmatmul.mubr.bf16.gmra.mrb[0].mxu0 %v4764
      %v4933 = vpop.f32.mrb[0].mxu0
      %v4934 = vadd.f32 0.0, %v4933
      %v4935 = vpop.f32.mrb[0].mxu0
      %v4936 = vpop.f32.mrb[0].mxu0
      %v4937 = vadd.f32 0.0, %v4936
      %v4938 = vpop.f32.mrb[0].mxu0
      %4939 = vmatprep.mubr.bf16.mxu0 0
      %4940 = vmatmul.mubr.bf16.gmra.mrb[0].mxu0 %v4767
      %v4941 = vpop.f32.mrb[0].mxu0
      %v4942 = vadd.f32 0.0, %v4941
      %v4943 = vpop.f32.mrb[0].mxu0
      %v4944 = vpop.f32.mrb[0].mxu0
      %v4945 = vadd.f32 0.0, %v4944
      %v4946 = vpop.f32.mrb[0].mxu0
      %4947 = vmatprep.mubr.bf16.mxu0 0
      %4948 = vmatmul.mubr.bf16.gmra.mrb[0].mxu0 %v4770
      %v4949 = vpop.f32.mrb[0].mxu0
      %v4950 = vadd.f32 0.0, %v4949
      %v4951 = vpop.f32.mrb[0].mxu0
      %v4952 = vpop.f32.mrb[0].mxu0
      %v4953 = vadd.f32 0.0, %v4952
      %v4954 = vpop.f32.mrb[0].mxu0
      %4955 = vmatprep.mubr.bf16.mxu0 0
      %4956 = vmatmul.mubr.bf16.gmra.mrb[0].mxu0 %v4773
      %v4957 = vpop.f32.mrb[0].mxu0
      %v4958 = vadd.f32 0.0, %v4957
      %v4959 = vpop.f32.mrb[0].mxu0
      %v4960 = vpop.f32.mrb[0].mxu0
      %v4961 = vadd.f32 0.0, %v4960
      %v4962 = vpop.f32.mrb[0].mxu0
      %4963 = vmatprep.mubr.bf16.mxu0 0
      %4964 = vmatmul.mubr.bf16.gmra.mrb[0].mxu0 %v4776
      %v4965 = vpop.f32.mrb[0].mxu0
      %v4966 = vadd.f32 0.0, %v4965
      %v4967 = vpop.f32.mrb[0].mxu0
      %v4968 = vpop.f32.mrb[0].mxu0
      %v4969 = vadd.f32 0.0, %v4968
      %v4970 = vpop.f32.mrb[0].mxu0
      %4971 = vmatprep.mubr.bf16.mxu0 0
      %4972 = vmatmul.mubr.bf16.gmra.mrb[0].mxu0 %v4779
      %v4973 = vpop.f32.mrb[0].mxu0
      %v4974 = vadd.f32 0.0, %v4973
      %v4975 = vpop.f32.mrb[0].mxu0
      %v4976 = vpop.f32.mrb[0].mxu0
      %v4977 = vadd.f32 0.0, %v4976
      %v4978 = vpop.f32.mrb[0].mxu0
      %4979 = vmatprep.mubr.bf16.mxu0 0
      %4980 = vmatmul.mubr.bf16.gmra.mrb[0].mxu0 %v4782
      %v4981 = vpop.f32.mrb[0].mxu0
      %v4982 = vadd.f32 0.0, %v4981
      %v4983 = vpop.f32.mrb[0].mxu0
      %v4984 = vpop.f32.mrb[0].mxu0
      %v4985 = vpop.f32.mrb[0].mxu0
      %4986 = vdwg.mxu0
      %5028 = vrot.lane.b32.xlu0 %v4822, 8
      %v5029 = vpop.permute.xlu0 %5028
      %5030 = vrot.lane.b32.xlu0 %v4825, 8
      %v5031 = vpop.permute.xlu0 %5030
      %5032 = vrot.lane.b32.xlu0 %v4830, 8
      %v5033 = vpop.permute.xlu0 %5032
      %5034 = vrot.lane.b32.xlu0 %v4833, 8
      %v5035 = vpop.permute.xlu0 %5034
      %5036 = vrot.lane.b32.xlu0 %v4838, 8
      %v5037 = vpop.permute.xlu0 %5036
      %5038 = vrot.lane.b32.xlu0 %v4841, 8
      %v5039 = vpop.permute.xlu0 %5038
      %5040 = vrot.lane.b32.xlu0 %v4846, 8
      %v5041 = vpop.permute.xlu0 %5040
      %5042 = vrot.lane.b32.xlu0 %v4849, 8
      %v5043 = vpop.permute.xlu0 %5042
      %5044 = vrot.lane.b32.xlu0 %v4854, 8
      %v5045 = vpop.permute.xlu0 %5044
      %5046 = vrot.lane.b32.xlu0 %v4857, 8
      %v5047 = vpop.permute.xlu0 %5046
      %5048 = vrot.lane.b32.xlu0 %v4862, 8
      %v5049 = vpop.permute.xlu0 %5048
      %5050 = vrot.lane.b32.xlu0 %v4865, 8
      %v5051 = vpop.permute.xlu0 %5050
      %5052 = vrot.lane.b32.xlu0 %v4870, 8
      %v5053 = vpop.permute.xlu0 %5052
      %5054 = vrot.lane.b32.xlu0 %v4873, 8
      %v5055 = vpop.permute.xlu0 %5054
      %5056 = vrot.lane.b32.xlu0 %v4878, 8
      %v5057 = vpop.permute.xlu0 %5056
      %5058 = vrot.lane.b32.xlu0 %v4881, 8
      %v5059 = vpop.permute.xlu0 %5058
      %5060 = vrot.lane.b32.xlu0 %v4886, 8
      %v5061 = vpop.permute.xlu0 %5060
      %5062 = vrot.lane.b32.xlu0 %v4889, 8
      %v5063 = vpop.permute.xlu0 %5062
      %5064 = vrot.lane.b32.xlu0 %v4894, 8
      %v5065 = vpop.permute.xlu0 %5064
      %5066 = vrot.lane.b32.xlu0 %v4897, 8
      %v5067 = vpop.permute.xlu0 %5066
      %5068 = vrot.lane.b32.xlu0 %v4902, 8
      %v5069 = vpop.permute.xlu0 %5068
      %5070 = vrot.lane.b32.xlu0 %v4905, 8
      %v5071 = vpop.permute.xlu0 %5070
      %5072 = vrot.lane.b32.xlu0 %v4910, 8
      %v5073 = vpop.permute.xlu0 %5072
      %5074 = vrot.lane.b32.xlu0 %v4913, 8
      %v5075 = vpop.permute.xlu0 %5074
      %5076 = vrot.lane.b32.xlu0 %v4918, 8
      %v5077 = vpop.permute.xlu0 %5076
      %5078 = vrot.lane.b32.xlu0 %v4921, 8
      %v5079 = vpop.permute.xlu0 %5078
      %5080 = vrot.lane.b32.xlu0 %v4926, 8
      %v5081 = vpop.permute.xlu0 %5080
      %5082 = vrot.lane.b32.xlu0 %v4929, 8
      %v5083 = vpop.permute.xlu0 %5082
      %5084 = vrot.lane.b32.xlu0 %v4934, 8
      %v5085 = vpop.permute.xlu0 %5084
      %5086 = vrot.lane.b32.xlu0 %v4937, 8
      %v5087 = vpop.permute.xlu0 %5086
      %5088 = vrot.lane.b32.xlu0 %v4942, 8
      %v5089 = vpop.permute.xlu0 %5088
      %5090 = vrot.lane.b32.xlu0 %v4945, 8
      %v5091 = vpop.permute.xlu0 %5090
      %5092 = vrot.lane.b32.xlu0 %v4950, 8
      %v5093 = vpop.permute.xlu0 %5092
      %5094 = vrot.lane.b32.xlu0 %v4953, 8
      %v5095 = vpop.permute.xlu0 %5094
      %5096 = vrot.lane.b32.xlu0 %v4958, 8
      %v5097 = vpop.permute.xlu0 %5096
      %5098 = vrot.lane.b32.xlu0 %v4961, 8
      %v5099 = vpop.permute.xlu0 %5098
      %5100 = vrot.lane.b32.xlu0 %v4966, 8
      %v5101 = vpop.permute.xlu0 %5100
      %5102 = vrot.lane.b32.xlu0 %v4969, 8
      %v5103 = vpop.permute.xlu0 %5102
      %5104 = vrot.lane.b32.xlu0 %v4974, 8
      %v5105 = vpop.permute.xlu0 %5104
      %5106 = vrot.lane.b32.xlu0 %v4977, 8
      %v5107 = vpop.permute.xlu0 %5106
      %5108 = vrot.lane.b32.xlu0 %v4982, 8
      %v5109 = vpop.permute.xlu0 %5108
      %v5151 = vadd.f32 %v4527, %v5029
      %v5152 = vadd.f32 %v4528, %v5031
      %v5153 = vadd.f32 %v4529, %v5033
      %v5154 = vadd.f32 %v4530, %v5035
      %v5155 = vadd.f32 %v4531, %v5037
      %v5156 = vadd.f32 %v4532, %v5039
      %v5157 = vadd.f32 %v4533, %v5041
      %v5158 = vadd.f32 %v4534, %v5043
      %v5159 = vadd.f32 %v4535, %v5045
      %v5160 = vadd.f32 %v4536, %v5047
      %v5161 = vadd.f32 %v4537, %v5049
      %v5162 = vadd.f32 %v4538, %v5051
      %v5163 = vadd.f32 %v4539, %v5053
      %v5164 = vadd.f32 %v4540, %v5055
      %v5165 = vadd.f32 %v4541, %v5057
      %v5166 = vadd.f32 %v4542, %v5059
      %v5167 = vadd.f32 %v4543, %v5061
      %v5168 = vadd.f32 %v4544, %v5063
      %v5169 = vadd.f32 %v4545, %v5065
      %v5170 = vadd.f32 %v4546, %v5067
      %v5171 = vadd.f32 %v4547, %v5069
      %v5172 = vadd.f32 %v4548, %v5071
      %v5173 = vadd.f32 %v4549, %v5073
      %v5174 = vadd.f32 %v4550, %v5075
      %v5175 = vadd.f32 %v4551, %v5077
      %v5176 = vadd.f32 %v4552, %v5079
      %v5177 = vadd.f32 %v4553, %v5081
      %v5178 = vadd.f32 %v4554, %v5083
      %v5179 = vadd.f32 %v4555, %v5085
      %v5180 = vadd.f32 %v4556, %v5087
      %v5181 = vadd.f32 %v4557, %v5089
      %v5182 = vadd.f32 %v4558, %v5091
      %v5183 = vadd.f32 %v4559, %v5093
      %v5184 = vadd.f32 %v4560, %v5095
      %v5185 = vadd.f32 %v4561, %v5097
      %v5186 = vadd.f32 %v4562, %v5099
      %v5187 = vadd.f32 %v4563, %v5101
      %v5188 = vadd.f32 %v4564, %v5103
      %v5189 = vadd.f32 %v4565, %v5105
      %v5190 = vadd.f32 %v4566, %v5107
      %v5191 = vadd.f32 %v4567, %v5109
      %v5192 = vld [vmem:[#allocation2 + $0x18] sm:$0xf]
      %v5193 = vld [vmem:[#allocation2 + $0x1c] sm:$0xf]
      %v5194 = vld [vmem:[#allocation2 + $0x20] sm:$0xf]
      %v5195 = vld [vmem:[#allocation2 + $0x24] sm:$0xf]
      %v5196 = vld [vmem:[#allocation2 + $0x28] sm:$0xf]
      %v5197 = vld [vmem:[#allocation2 + $0x2c] sm:$0xf]
      %v5198 = vld [vmem:[#allocation2 + $0x30] sm:$0xf]
      %v5199 = vld [vmem:[#allocation2 + $0x34] sm:$0xf]
      %v5200 = vld [vmem:[#allocation2 + $0x38] sm:$0xf]
      %v5201 = vld [vmem:[#allocation2 + $0x3c] sm:$0xf]
      %v5202 = vld [vmem:[#allocation2 + $0x40] sm:$0xf]
      %v5203 = vld [vmem:[#allocation2 + $0x44] sm:$0xf]
      %v5204 = vld [vmem:[#allocation2 + $0x48] sm:$0xf]
      %v5205 = vld [vmem:[#allocation2 + $0x4c] sm:$0xf]
      %v5206 = vld [vmem:[#allocation2 + $0x50] sm:$0xf]
      %v5207 = vld [vmem:[#allocation2 + $0x54] sm:$0xf]
      %v5208 = vld [vmem:[#allocation2 + $0x58] sm:$0xf]
      %v5209 = vld [vmem:[#allocation2 + $0x5c] sm:$0xf]
      %v5210 = vld [vmem:[#allocation2 + $0x60] sm:$0xf]
      %v5211 = vld [vmem:[#allocation2 + $0x64] sm:$0xf]
      %v5212 = vld [vmem:[#allocation2 + $0x68] sm:$0xf]
      %v5213 = vld [vmem:[#allocation2 + $0x6c] sm:$0xf]
      %v5214 = vld [vmem:[#allocation2 + $0x70] sm:$0xf]
      %v5215 = vld [vmem:[#allocation2 + $0x74] sm:$0xf]
      %v5216 = vld [vmem:[#allocation2 + $0x78] sm:$0xf]
      %v5217 = vld [vmem:[#allocation2 + $0x7c] sm:$0xf]
      %v5218 = vld [vmem:[#allocation2 + $0x80] sm:$0xf]
      %v5219 = vld [vmem:[#allocation2 + $0x84] sm:$0xf]
      %v5220 = vld [vmem:[#allocation2 + $0x88] sm:$0xf]
      %v5221 = vld [vmem:[#allocation2 + $0x8c] sm:$0xf]
      %v5222 = vld [vmem:[#allocation2 + $0x90] sm:$0xf]
      %v5223 = vld [vmem:[#allocation2 + $0x94] sm:$0xf]
      %v5224 = vld [vmem:[#allocation2 + $0x98] sm:$0xf]
      %v5225 = vld [vmem:[#allocation2 + $0x9c] sm:$0xf]
      %v5226 = vld [vmem:[#allocation2 + $0xa0] sm:$0xf]
      %v5227 = vld [vmem:[#allocation2 + $0xa4] sm:$0xf]
      %v5228 = vld [vmem:[#allocation2 + $0xa8] sm:$0xf]
      %v5229 = vld [vmem:[#allocation2 + $0xac] sm:$0xf]
      %v5230 = vld [vmem:[#allocation2 + $0xb0] sm:$0xf]
      %v5231 = vld [vmem:[#allocation2 + $0xb4] sm:$0xf]
      %v5232 = vld [vmem:[#allocation2 + $0xb8] sm:$0x7]
      %v5233 = vld [vmem:[%s4 + $0x18] sm:$0xf]
      %v5275 = vunpack.c.l.b16 %v5192
      %v5276 = vunpack.c.l.b16 %v5193
      %v5277 = vunpack.c.l.b16 %v5194
      %v5278 = vunpack.c.l.b16 %v5195
      %v5279 = vunpack.c.l.b16 %v5196
      %v5280 = vunpack.c.l.b16 %v5197
      %v5281 = vunpack.c.l.b16 %v5198
      %v5282 = vunpack.c.l.b16 %v5199
      %v5283 = vunpack.c.l.b16 %v5200
      %v5284 = vunpack.c.l.b16 %v5201
      %v5285 = vunpack.c.l.b16 %v5202
      %v5286 = vunpack.c.l.b16 %v5203
      %v5287 = vunpack.c.l.b16 %v5204
      %v5288 = vunpack.c.l.b16 %v5205
      %v5289 = vunpack.c.l.b16 %v5206
      %v5290 = vunpack.c.l.b16 %v5207
      %v5291 = vunpack.c.l.b16 %v5208
      %v5292 = vunpack.c.l.b16 %v5209
      %v5293 = vunpack.c.l.b16 %v5210
      %v5294 = vunpack.c.l.b16 %v5211
      %v5295 = vunpack.c.l.b16 %v5212
      %v5296 = vunpack.c.l.b16 %v5213
      %v5297 = vunpack.c.l.b16 %v5214
      %v5298 = vunpack.c.l.b16 %v5215
      %v5299 = vunpack.c.l.b16 %v5216
      %v5300 = vunpack.c.l.b16 %v5217
      %v5301 = vunpack.c.l.b16 %v5218
      %v5302 = vunpack.c.l.b16 %v5219
      %v5303 = vunpack.c.l.b16 %v5220
      %v5304 = vunpack.c.l.b16 %v5221
      %v5305 = vunpack.c.l.b16 %v5222
      %v5306 = vunpack.c.l.b16 %v5223
      %v5307 = vunpack.c.l.b16 %v5224
      %v5308 = vunpack.c.l.b16 %v5225
      %v5309 = vunpack.c.l.b16 %v5226
      %v5310 = vunpack.c.l.b16 %v5227
      %v5311 = vunpack.c.l.b16 %v5228
      %v5312 = vunpack.c.l.b16 %v5229
      %v5313 = vunpack.c.l.b16 %v5230
      %v5314 = vunpack.c.l.b16 %v5231
      %v5315 = vunpack.c.l.b16 %v5232
      %v5316 = vpack.c.b16 %v5276, %v5275
      %v5317 = vpack.c.b16 %v5278, %v5277
      %v5318 = vpack.c.b16 %v5280, %v5279
      %v5319 = vpack.c.b16 %v5282, %v5281
      %v5320 = vpack.c.b16 %v5284, %v5283
      %v5321 = vpack.c.b16 %v5286, %v5285
      %v5322 = vpack.c.b16 %v5288, %v5287
      %v5323 = vpack.c.b16 %v5290, %v5289
      %v5324 = vpack.c.b16 %v5292, %v5291
      %v5325 = vpack.c.b16 %v5294, %v5293
      %v5326 = vpack.c.b16 %v5296, %v5295
      %v5327 = vpack.c.b16 %v5298, %v5297
      %v5328 = vpack.c.b16 %v5300, %v5299
      %v5329 = vpack.c.b16 %v5302, %v5301
      %v5330 = vpack.c.b16 %v5304, %v5303
      %v5331 = vpack.c.b16 %v5306, %v5305
      %v5332 = vpack.c.b16 %v5308, %v5307
      %v5333 = vpack.c.b16 %v5310, %v5309
      %v5334 = vpack.c.b16 %v5312, %v5311
      %v5335 = vpack.c.b16 %v5314, %v5313
      %v5336 = vpack.c.b16 %v5315, %v5315
      %v5338 = vshrl.u32 %v5316, 16
      %v5340 = vshll.u32 %v5316, 16
      %v5342 = vrot.slane %v5340, 1
      %v5343 = vor.u32 %v5338, %v5342
      %v5345 = vshll.u32 %v5317, 16
      %v5347 = vrot.slane %v5345, 1
      %v5348 = vsel %vm4573, %v5343, %v5347
      %v5349 = vshrl.u32 %v5317, 16
      %v5351 = vor.u32 %v5349, %v5347
      %v5353 = vshll.u32 %v5318, 16
      %v5355 = vrot.slane %v5353, 1
      %v5356 = vsel %vm4573, %v5351, %v5355
      %v5357 = vshrl.u32 %v5318, 16
      %v5359 = vor.u32 %v5357, %v5355
      %v5361 = vshll.u32 %v5319, 16
      %v5363 = vrot.slane %v5361, 1
      %v5364 = vsel %vm4573, %v5359, %v5363
      %v5365 = vshrl.u32 %v5319, 16
      %v5367 = vor.u32 %v5365, %v5363
      %v5369 = vshll.u32 %v5320, 16
      %v5371 = vrot.slane %v5369, 1
      %v5372 = vsel %vm4573, %v5367, %v5371
      %v5373 = vshrl.u32 %v5320, 16
      %v5375 = vor.u32 %v5373, %v5371
      %v5377 = vshll.u32 %v5321, 16
      %v5379 = vrot.slane %v5377, 1
      %v5380 = vsel %vm4573, %v5375, %v5379
      %v5381 = vshrl.u32 %v5321, 16
      %v5383 = vor.u32 %v5381, %v5379
      %v5385 = vshll.u32 %v5322, 16
      %v5387 = vrot.slane %v5385, 1
      %v5388 = vsel %vm4573, %v5383, %v5387
      %v5389 = vshrl.u32 %v5322, 16
      %v5391 = vor.u32 %v5389, %v5387
      %v5393 = vshll.u32 %v5323, 16
      %v5395 = vrot.slane %v5393, 1
      %v5396 = vsel %vm4573, %v5391, %v5395
      %v5397 = vshrl.u32 %v5323, 16
      %v5399 = vor.u32 %v5397, %v5395
      %v5401 = vshll.u32 %v5324, 16
      %v5403 = vrot.slane %v5401, 1
      %v5404 = vsel %vm4573, %v5399, %v5403
      %v5405 = vshrl.u32 %v5324, 16
      %v5407 = vor.u32 %v5405, %v5403
      %v5409 = vshll.u32 %v5325, 16
      %v5411 = vrot.slane %v5409, 1
      %v5412 = vsel %vm4573, %v5407, %v5411
      %v5413 = vshrl.u32 %v5325, 16
      %v5415 = vor.u32 %v5413, %v5411
      %v5417 = vshll.u32 %v5326, 16
      %v5419 = vrot.slane %v5417, 1
      %v5420 = vsel %vm4573, %v5415, %v5419
      %v5421 = vshrl.u32 %v5326, 16
      %v5423 = vor.u32 %v5421, %v5419
      %v5425 = vshll.u32 %v5327, 16
      %v5427 = vrot.slane %v5425, 1
      %v5428 = vsel %vm4573, %v5423, %v5427
      %v5429 = vshrl.u32 %v5327, 16
      %v5431 = vor.u32 %v5429, %v5427
      %v5433 = vshll.u32 %v5328, 16
      %v5435 = vrot.slane %v5433, 1
      %v5436 = vsel %vm4573, %v5431, %v5435
      %v5437 = vshrl.u32 %v5328, 16
      %v5439 = vor.u32 %v5437, %v5435
      %v5441 = vshll.u32 %v5329, 16
      %v5443 = vrot.slane %v5441, 1
      %v5444 = vsel %vm4573, %v5439, %v5443
      %v5445 = vshrl.u32 %v5329, 16
      %v5447 = vor.u32 %v5445, %v5443
      %v5449 = vshll.u32 %v5330, 16
      %v5451 = vrot.slane %v5449, 1
      %v5452 = vsel %vm4573, %v5447, %v5451
      %v5453 = vshrl.u32 %v5330, 16
      %v5455 = vor.u32 %v5453, %v5451
      %v5457 = vshll.u32 %v5331, 16
      %v5459 = vrot.slane %v5457, 1
      %v5460 = vsel %vm4573, %v5455, %v5459
      %v5461 = vshrl.u32 %v5331, 16
      %v5463 = vor.u32 %v5461, %v5459
      %v5465 = vshll.u32 %v5332, 16
      %v5467 = vrot.slane %v5465, 1
      %v5468 = vsel %vm4573, %v5463, %v5467
      %v5469 = vshrl.u32 %v5332, 16
      %v5471 = vor.u32 %v5469, %v5467
      %v5473 = vshll.u32 %v5333, 16
      %v5475 = vrot.slane %v5473, 1
      %v5476 = vsel %vm4573, %v5471, %v5475
      %v5477 = vshrl.u32 %v5333, 16
      %v5479 = vor.u32 %v5477, %v5475
      %v5481 = vshll.u32 %v5334, 16
      %v5483 = vrot.slane %v5481, 1
      %v5484 = vsel %vm4573, %v5479, %v5483
      %v5485 = vshrl.u32 %v5334, 16
      %v5487 = vor.u32 %v5485, %v5483
      %v5489 = vshll.u32 %v5335, 16
      %v5491 = vrot.slane %v5489, 1
      %v5492 = vsel %vm4573, %v5487, %v5491
      %v5493 = vshrl.u32 %v5335, 16
      %v5495 = vor.u32 %v5493, %v5491
      %v5497 = vshll.u32 %v5336, 16
      %v5499 = vrot.slane %v5497, 1
      %v5500 = vsel %vm4573, %v5495, %v5499
      %v5501 = vshrl.u32 %v5336, 16
      %v5503 = vor.u32 %v5501, %v5499
      %v5505 = vsel %vm1707, %v5348, 0
      %v5508 = vsel %vm1707, %v5356, 0
      %v5511 = vsel %vm1707, %v5364, 0
      %v5514 = vsel %vm1707, %v5372, 0
      %v5517 = vsel %vm1707, %v5380, 0
      %v5520 = vsel %vm1707, %v5388, 0
      %v5523 = vsel %vm1707, %v5396, 0
      %v5526 = vsel %vm1707, %v5404, 0
      %v5529 = vsel %vm1707, %v5412, 0
      %v5532 = vsel %vm1707, %v5420, 0
      %v5535 = vsel %vm1707, %v5428, 0
      %v5538 = vsel %vm1707, %v5436, 0
      %v5541 = vsel %vm1707, %v5444, 0
      %v5544 = vsel %vm1707, %v5452, 0
      %v5547 = vsel %vm1707, %v5460, 0
      %v5550 = vsel %vm1707, %v5468, 0
      %v5553 = vsel %vm1707, %v5476, 0
      %v5556 = vsel %vm1707, %v5484, 0
      %v5559 = vsel %vm1707, %v5492, 0
      %v5562 = vsel %vm1707, %v5500, 0
      %v5565 = vsel %vm1707, %v5503, 0
      %v5568 = vsel %vm1771, %v5233, 0
      %5570 = vmatprep.subr.bf16.mxu0 0
      %5571 = vmatpush1.bf16.msra.mxu0 %v5568
      %5572 = vmatprep.subr.bf16.mxu0 0
      %5573 = vmatpush1.bf16.msra.mxu0 0
      %5574 = vmatprep.subr.bf16.mxu0 0
      %5575 = vmatpush1.bf16.msra.mxu0 0
      %5576 = vmatprep.subr.bf16.mxu0 0
      %5577 = vmatpush1.bf16.msra.mxu0 0
      %5578 = vmatprep.subr.bf16.mxu0 0
      %5579 = vmatpush1.bf16.msra.mxu0 0
      %5580 = vmatprep.subr.bf16.mxu0 0
      %5581 = vmatpush1.bf16.msra.mxu0 0
      %5582 = vmatprep.subr.bf16.mxu0 0
      %5583 = vmatpush1.bf16.msra.mxu0 0
      %5584 = vmatprep.subr.bf16.mxu0 0
      %5585 = vmatpush1.bf16.msra.mxu0 0
      %5586 = vmatprep.subr.bf16.mxu0 0
      %5587 = vmatpush1.bf16.msra.mxu0 0
      %5588 = vmatprep.subr.bf16.mxu0 0
      %5589 = vmatpush1.bf16.msra.mxu0 0
      %5590 = vmatprep.subr.bf16.mxu0 0
      %5591 = vmatpush1.bf16.msra.mxu0 0
      %5592 = vmatprep.subr.bf16.mxu0 0
      %5593 = vmatpush1.bf16.msra.mxu0 0
      %5594 = vmatprep.subr.bf16.mxu0 0
      %5595 = vmatpush1.bf16.msra.mxu0 0
      %5596 = vmatprep.subr.bf16.mxu0 0
      %5597 = vmatpush1.bf16.msra.mxu0 0
      %5598 = vmatprep.subr.bf16.mxu0 0
      %5599 = vmatpush1.bf16.msra.mxu0 0
      %5600 = vmatprep.subr.bf16.mxu0 0
      %5601 = vmatpush1.bf16.msra.mxu0 0
      %5602 = vmatprep.mubr.bf16.mxu0 0
      %5603 = vmatmul.mubr.bf16.gmra.mrb[0].mxu0 %v5505
      %v5604 = vpop.f32.mrb[0].mxu0
      %v5605 = vadd.f32 0.0, %v5604
      %v5606 = vpop.f32.mrb[0].mxu0
      %v5607 = vpop.f32.mrb[0].mxu0
      %v5608 = vadd.f32 0.0, %v5607
      %v5609 = vpop.f32.mrb[0].mxu0
      %5610 = vmatprep.mubr.bf16.mxu0 0
      %5611 = vmatmul.mubr.bf16.gmra.mrb[0].mxu0 %v5508
      %v5612 = vpop.f32.mrb[0].mxu0
      %v5613 = vadd.f32 0.0, %v5612
      %v5614 = vpop.f32.mrb[0].mxu0
      %v5615 = vpop.f32.mrb[0].mxu0
      %v5616 = vadd.f32 0.0, %v5615
      %v5617 = vpop.f32.mrb[0].mxu0
      %5618 = vmatprep.mubr.bf16.mxu0 0
      %5619 = vmatmul.mubr.bf16.gmra.mrb[0].mxu0 %v5511
      %v5620 = vpop.f32.mrb[0].mxu0
      %v5621 = vadd.f32 0.0, %v5620
      %v5622 = vpop.f32.mrb[0].mxu0
      %v5623 = vpop.f32.mrb[0].mxu0
      %v5624 = vadd.f32 0.0, %v5623
      %v5625 = vpop.f32.mrb[0].mxu0
      %5626 = vmatprep.mubr.bf16.mxu0 0
      %5627 = vmatmul.mubr.bf16.gmra.mrb[0].mxu0 %v5514
      %v5628 = vpop.f32.mrb[0].mxu0
      %v5629 = vadd.f32 0.0, %v5628
      %v5630 = vpop.f32.mrb[0].mxu0
      %v5631 = vpop.f32.mrb[0].mxu0
      %v5632 = vadd.f32 0.0, %v5631
      %v5633 = vpop.f32.mrb[0].mxu0
      %5634 = vmatprep.mubr.bf16.mxu0 0
      %5635 = vmatmul.mubr.bf16.gmra.mrb[0].mxu0 %v5517
      %v5636 = vpop.f32.mrb[0].mxu0
      %v5637 = vadd.f32 0.0, %v5636
      %v5638 = vpop.f32.mrb[0].mxu0
      %v5639 = vpop.f32.mrb[0].mxu0
      %v5640 = vadd.f32 0.0, %v5639
      %v5641 = vpop.f32.mrb[0].mxu0
      %5642 = vmatprep.mubr.bf16.mxu0 0
      %5643 = vmatmul.mubr.bf16.gmra.mrb[0].mxu0 %v5520
      %v5644 = vpop.f32.mrb[0].mxu0
      %v5645 = vadd.f32 0.0, %v5644
      %v5646 = vpop.f32.mrb[0].mxu0
      %v5647 = vpop.f32.mrb[0].mxu0
      %v5648 = vadd.f32 0.0, %v5647
      %v5649 = vpop.f32.mrb[0].mxu0
      %5650 = vmatprep.mubr.bf16.mxu0 0
      %5651 = vmatmul.mubr.bf16.gmra.mrb[0].mxu0 %v5523
      %v5652 = vpop.f32.mrb[0].mxu0
      %v5653 = vadd.f32 0.0, %v5652
      %v5654 = vpop.f32.mrb[0].mxu0
      %v5655 = vpop.f32.mrb[0].mxu0
      %v5656 = vadd.f32 0.0, %v5655
      %v5657 = vpop.f32.mrb[0].mxu0
      %5658 = vmatprep.mubr.bf16.mxu0 0
      %5659 = vmatmul.mubr.bf16.gmra.mrb[0].mxu0 %v5526
      %v5660 = vpop.f32.mrb[0].mxu0
      %v5661 = vadd.f32 0.0, %v5660
      %v5662 = vpop.f32.mrb[0].mxu0
      %v5663 = vpop.f32.mrb[0].mxu0
      %v5664 = vadd.f32 0.0, %v5663
      %v5665 = vpop.f32.mrb[0].mxu0
      %5666 = vmatprep.mubr.bf16.mxu0 0
      %5667 = vmatmul.mubr.bf16.gmra.mrb[0].mxu0 %v5529
      %v5668 = vpop.f32.mrb[0].mxu0
      %v5669 = vadd.f32 0.0, %v5668
      %v5670 = vpop.f32.mrb[0].mxu0
      %v5671 = vpop.f32.mrb[0].mxu0
      %v5672 = vadd.f32 0.0, %v5671
      %v5673 = vpop.f32.mrb[0].mxu0
      %5674 = vmatprep.mubr.bf16.mxu0 0
      %5675 = vmatmul.mubr.bf16.gmra.mrb[0].mxu0 %v5532
      %v5676 = vpop.f32.mrb[0].mxu0
      %v5677 = vadd.f32 0.0, %v5676
      %v5678 = vpop.f32.mrb[0].mxu0
      %v5679 = vpop.f32.mrb[0].mxu0
      %v5680 = vadd.f32 0.0, %v5679
      %v5681 = vpop.f32.mrb[0].mxu0
      %5682 = vmatprep.mubr.bf16.mxu0 0
      %5683 = vmatmul.mubr.bf16.gmra.mrb[0].mxu0 %v5535
      %v5684 = vpop.f32.mrb[0].mxu0
      %v5685 = vadd.f32 0.0, %v5684
      %v5686 = vpop.f32.mrb[0].mxu0
      %v5687 = vpop.f32.mrb[0].mxu0
      %v5688 = vadd.f32 0.0, %v5687
      %v5689 = vpop.f32.mrb[0].mxu0
      %5690 = vmatprep.mubr.bf16.mxu0 0
      %5691 = vmatmul.mubr.bf16.gmra.mrb[0].mxu0 %v5538
      %v5692 = vpop.f32.mrb[0].mxu0
      %v5693 = vadd.f32 0.0, %v5692
      %v5694 = vpop.f32.mrb[0].mxu0
      %v5695 = vpop.f32.mrb[0].mxu0
      %v5696 = vadd.f32 0.0, %v5695
      %v5697 = vpop.f32.mrb[0].mxu0
      %5698 = vmatprep.mubr.bf16.mxu0 0
      %5699 = vmatmul.mubr.bf16.gmra.mrb[0].mxu0 %v5541
      %v5700 = vpop.f32.mrb[0].mxu0
      %v5701 = vadd.f32 0.0, %v5700
      %v5702 = vpop.f32.mrb[0].mxu0
      %v5703 = vpop.f32.mrb[0].mxu0
      %v5704 = vadd.f32 0.0, %v5703
      %v5705 = vpop.f32.mrb[0].mxu0
      %5706 = vmatprep.mubr.bf16.mxu0 0
      %5707 = vmatmul.mubr.bf16.gmra.mrb[0].mxu0 %v5544
      %v5708 = vpop.f32.mrb[0].mxu0
      %v5709 = vadd.f32 0.0, %v5708
      %v5710 = vpop.f32.mrb[0].mxu0
      %v5711 = vpop.f32.mrb[0].mxu0
      %v5712 = vadd.f32 0.0, %v5711
      %v5713 = vpop.f32.mrb[0].mxu0
      %5714 = vmatprep.mubr.bf16.mxu0 0
      %5715 = vmatmul.mubr.bf16.gmra.mrb[0].mxu0 %v5547
      %v5716 = vpop.f32.mrb[0].mxu0
      %v5717 = vadd.f32 0.0, %v5716
      %v5718 = vpop.f32.mrb[0].mxu0
      %v5719 = vpop.f32.mrb[0].mxu0
      %v5720 = vadd.f32 0.0, %v5719
      %v5721 = vpop.f32.mrb[0].mxu0
      %5722 = vmatprep.mubr.bf16.mxu0 0
      %5723 = vmatmul.mubr.bf16.gmra.mrb[0].mxu0 %v5550
      %v5724 = vpop.f32.mrb[0].mxu0
      %v5725 = vadd.f32 0.0, %v5724
      %v5726 = vpop.f32.mrb[0].mxu0
      %v5727 = vpop.f32.mrb[0].mxu0
      %v5728 = vadd.f32 0.0, %v5727
      %v5729 = vpop.f32.mrb[0].mxu0
      %5730 = vmatprep.mubr.bf16.mxu0 0
      %5731 = vmatmul.mubr.bf16.gmra.mrb[0].mxu0 %v5553
      %v5732 = vpop.f32.mrb[0].mxu0
      %v5733 = vadd.f32 0.0, %v5732
      %v5734 = vpop.f32.mrb[0].mxu0
      %v5735 = vpop.f32.mrb[0].mxu0
      %v5736 = vadd.f32 0.0, %v5735
      %v5737 = vpop.f32.mrb[0].mxu0
      %5738 = vmatprep.mubr.bf16.mxu0 0
      %5739 = vmatmul.mubr.bf16.gmra.mrb[0].mxu0 %v5556
      %v5740 = vpop.f32.mrb[0].mxu0
      %v5741 = vadd.f32 0.0, %v5740
      %v5742 = vpop.f32.mrb[0].mxu0
      %v5743 = vpop.f32.mrb[0].mxu0
      %v5744 = vadd.f32 0.0, %v5743
      %v5745 = vpop.f32.mrb[0].mxu0
      %5746 = vmatprep.mubr.bf16.mxu0 0
      %5747 = vmatmul.mubr.bf16.gmra.mrb[0].mxu0 %v5559
      %v5748 = vpop.f32.mrb[0].mxu0
      %v5749 = vadd.f32 0.0, %v5748
      %v5750 = vpop.f32.mrb[0].mxu0
      %v5751 = vpop.f32.mrb[0].mxu0
      %v5752 = vadd.f32 0.0, %v5751
      %v5753 = vpop.f32.mrb[0].mxu0
      %5754 = vmatprep.mubr.bf16.mxu0 0
      %5755 = vmatmul.mubr.bf16.gmra.mrb[0].mxu0 %v5562
      %v5756 = vpop.f32.mrb[0].mxu0
      %v5757 = vadd.f32 0.0, %v5756
      %v5758 = vpop.f32.mrb[0].mxu0
      %v5759 = vpop.f32.mrb[0].mxu0
      %v5760 = vadd.f32 0.0, %v5759
      %v5761 = vpop.f32.mrb[0].mxu0
      %5762 = vmatprep.mubr.bf16.mxu0 0
      %5763 = vmatmul.mubr.bf16.gmra.mrb[0].mxu0 %v5565
      %v5764 = vpop.f32.mrb[0].mxu0
      %v5765 = vadd.f32 0.0, %v5764
      %v5766 = vpop.f32.mrb[0].mxu0
      %v5767 = vpop.f32.mrb[0].mxu0
      %v5768 = vpop.f32.mrb[0].mxu0
      %5769 = vdwg.mxu0
      %5811 = vrot.lane.b32.xlu0 %v5605, 8
      %v5812 = vpop.permute.xlu0 %5811
      %5813 = vrot.lane.b32.xlu0 %v5608, 8
      %v5814 = vpop.permute.xlu0 %5813
      %5815 = vrot.lane.b32.xlu0 %v5613, 8
      %v5816 = vpop.permute.xlu0 %5815
      %5817 = vrot.lane.b32.xlu0 %v5616, 8
      %v5818 = vpop.permute.xlu0 %5817
      %5819 = vrot.lane.b32.xlu0 %v5621, 8
      %v5820 = vpop.permute.xlu0 %5819
      %5821 = vrot.lane.b32.xlu0 %v5624, 8
      %v5822 = vpop.permute.xlu0 %5821
      %5823 = vrot.lane.b32.xlu0 %v5629, 8
      %v5824 = vpop.permute.xlu0 %5823
      %5825 = vrot.lane.b32.xlu0 %v5632, 8
      %v5826 = vpop.permute.xlu0 %5825
      %5827 = vrot.lane.b32.xlu0 %v5637, 8
      %v5828 = vpop.permute.xlu0 %5827
      %5829 = vrot.lane.b32.xlu0 %v5640, 8
      %v5830 = vpop.permute.xlu0 %5829
      %5831 = vrot.lane.b32.xlu0 %v5645, 8
      %v5832 = vpop.permute.xlu0 %5831
      %5833 = vrot.lane.b32.xlu0 %v5648, 8
      %v5834 = vpop.permute.xlu0 %5833
      %5835 = vrot.lane.b32.xlu0 %v5653, 8
      %v5836 = vpop.permute.xlu0 %5835
      %5837 = vrot.lane.b32.xlu0 %v5656, 8
      %v5838 = vpop.permute.xlu0 %5837
      %5839 = vrot.lane.b32.xlu0 %v5661, 8
      %v5840 = vpop.permute.xlu0 %5839
      %5841 = vrot.lane.b32.xlu0 %v5664, 8
      %v5842 = vpop.permute.xlu0 %5841
      %5843 = vrot.lane.b32.xlu0 %v5669, 8
      %v5844 = vpop.permute.xlu0 %5843
      %5845 = vrot.lane.b32.xlu0 %v5672, 8
      %v5846 = vpop.permute.xlu0 %5845
      %5847 = vrot.lane.b32.xlu0 %v5677, 8
      %v5848 = vpop.permute.xlu0 %5847
      %5849 = vrot.lane.b32.xlu0 %v5680, 8
      %v5850 = vpop.permute.xlu0 %5849
      %5851 = vrot.lane.b32.xlu0 %v5685, 8
      %v5852 = vpop.permute.xlu0 %5851
      %5853 = vrot.lane.b32.xlu0 %v5688, 8
      %v5854 = vpop.permute.xlu0 %5853
      %5855 = vrot.lane.b32.xlu0 %v5693, 8
      %v5856 = vpop.permute.xlu0 %5855
      %5857 = vrot.lane.b32.xlu0 %v5696, 8
      %v5858 = vpop.permute.xlu0 %5857
      %5859 = vrot.lane.b32.xlu0 %v5701, 8
      %v5860 = vpop.permute.xlu0 %5859
      %5861 = vrot.lane.b32.xlu0 %v5704, 8
      %v5862 = vpop.permute.xlu0 %5861
      %5863 = vrot.lane.b32.xlu0 %v5709, 8
      %v5864 = vpop.permute.xlu0 %5863
      %5865 = vrot.lane.b32.xlu0 %v5712, 8
      %v5866 = vpop.permute.xlu0 %5865
      %5867 = vrot.lane.b32.xlu0 %v5717, 8
      %v5868 = vpop.permute.xlu0 %5867
      %5869 = vrot.lane.b32.xlu0 %v5720, 8
      %v5870 = vpop.permute.xlu0 %5869
      %5871 = vrot.lane.b32.xlu0 %v5725, 8
      %v5872 = vpop.permute.xlu0 %5871
      %5873 = vrot.lane.b32.xlu0 %v5728, 8
      %v5874 = vpop.permute.xlu0 %5873
      %5875 = vrot.lane.b32.xlu0 %v5733, 8
      %v5876 = vpop.permute.xlu0 %5875
      %5877 = vrot.lane.b32.xlu0 %v5736, 8
      %v5878 = vpop.permute.xlu0 %5877
      %5879 = vrot.lane.b32.xlu0 %v5741, 8
      %v5880 = vpop.permute.xlu0 %5879
      %5881 = vrot.lane.b32.xlu0 %v5744, 8
      %v5882 = vpop.permute.xlu0 %5881
      %5883 = vrot.lane.b32.xlu0 %v5749, 8
      %v5884 = vpop.permute.xlu0 %5883
      %5885 = vrot.lane.b32.xlu0 %v5752, 8
      %v5886 = vpop.permute.xlu0 %5885
      %5887 = vrot.lane.b32.xlu0 %v5757, 8
      %v5888 = vpop.permute.xlu0 %5887
      %5889 = vrot.lane.b32.xlu0 %v5760, 8
      %v5890 = vpop.permute.xlu0 %5889
      %5891 = vrot.lane.b32.xlu0 %v5765, 8
      %v5892 = vpop.permute.xlu0 %5891
      %v5934 = vadd.f32 %v5151, %v5812
      %v5935 = vadd.f32 %v5152, %v5814
      %v5936 = vadd.f32 %v5153, %v5816
      %v5937 = vadd.f32 %v5154, %v5818
      %v5938 = vadd.f32 %v5155, %v5820
      %v5939 = vadd.f32 %v5156, %v5822
      %v5940 = vadd.f32 %v5157, %v5824
      %v5941 = vadd.f32 %v5158, %v5826
      %v5942 = vadd.f32 %v5159, %v5828
      %v5943 = vadd.f32 %v5160, %v5830
      %v5944 = vadd.f32 %v5161, %v5832
      %v5945 = vadd.f32 %v5162, %v5834
      %v5946 = vadd.f32 %v5163, %v5836
      %v5947 = vadd.f32 %v5164, %v5838
      %v5948 = vadd.f32 %v5165, %v5840
      %v5949 = vadd.f32 %v5166, %v5842
      %v5950 = vadd.f32 %v5167, %v5844
      %v5951 = vadd.f32 %v5168, %v5846
      %v5952 = vadd.f32 %v5169, %v5848
      %v5953 = vadd.f32 %v5170, %v5850
      %v5954 = vadd.f32 %v5171, %v5852
      %v5955 = vadd.f32 %v5172, %v5854
      %v5956 = vadd.f32 %v5173, %v5856
      %v5957 = vadd.f32 %v5174, %v5858
      %v5958 = vadd.f32 %v5175, %v5860
      %v5959 = vadd.f32 %v5176, %v5862
      %v5960 = vadd.f32 %v5177, %v5864
      %v5961 = vadd.f32 %v5178, %v5866
      %v5962 = vadd.f32 %v5179, %v5868
      %v5963 = vadd.f32 %v5180, %v5870
      %v5964 = vadd.f32 %v5181, %v5872
      %v5965 = vadd.f32 %v5182, %v5874
      %v5966 = vadd.f32 %v5183, %v5876
      %v5967 = vadd.f32 %v5184, %v5878
      %v5968 = vadd.f32 %v5185, %v5880
      %v5969 = vadd.f32 %v5186, %v5882
      %v5970 = vadd.f32 %v5187, %v5884
      %v5971 = vadd.f32 %v5188, %v5886
      %v5972 = vadd.f32 %v5189, %v5888
      %v5973 = vadd.f32 %v5190, %v5890
      %v5974 = vadd.f32 %v5191, %v5892
      %v5975 = vld [vmem:[#allocation2 + $0x18] sm:$0xe]
      %v5976 = vld [vmem:[%s4 + $0x1c] sm:$0xf]
      %v5978 = vunpack.c.l.b16 %v5975
      %v5979 = vpack.c.b16 %v5276, %v5978
      %vm5980 = vcmask 1046528
      %v5981 = vrot.slane %v5979, 1
      %v5982 = vrot.slane %v5317, 1
      %v5983 = vsel %vm5980, %v5981, %v5982
      %v5984 = vrot.slane %v5318, 1
      %v5985 = vsel %vm5980, %v5982, %v5984
      %v5986 = vrot.slane %v5319, 1
      %v5987 = vsel %vm5980, %v5984, %v5986
      %v5988 = vrot.slane %v5320, 1
      %v5989 = vsel %vm5980, %v5986, %v5988
      %v5990 = vrot.slane %v5321, 1
      %v5991 = vsel %vm5980, %v5988, %v5990
      %v5992 = vrot.slane %v5322, 1
      %v5993 = vsel %vm5980, %v5990, %v5992
      %v5994 = vrot.slane %v5323, 1
      %v5995 = vsel %vm5980, %v5992, %v5994
      %v5996 = vrot.slane %v5324, 1
      %v5997 = vsel %vm5980, %v5994, %v5996
      %v5998 = vrot.slane %v5325, 1
      %v5999 = vsel %vm5980, %v5996, %v5998
      %v6000 = vrot.slane %v5326, 1
      %v6001 = vsel %vm5980, %v5998, %v6000
      %v6002 = vrot.slane %v5327, 1
      %v6003 = vsel %vm5980, %v6000, %v6002
      %v6004 = vrot.slane %v5328, 1
      %v6005 = vsel %vm5980, %v6002, %v6004
      %v6006 = vrot.slane %v5329, 1
      %v6007 = vsel %vm5980, %v6004, %v6006
      %v6008 = vrot.slane %v5330, 1
      %v6009 = vsel %vm5980, %v6006, %v6008
      %v6010 = vrot.slane %v5331, 1
      %v6011 = vsel %vm5980, %v6008, %v6010
      %v6012 = vrot.slane %v5332, 1
      %v6013 = vsel %vm5980, %v6010, %v6012
      %v6014 = vrot.slane %v5333, 1
      %v6015 = vsel %vm5980, %v6012, %v6014
      %v6016 = vrot.slane %v5334, 1
      %v6017 = vsel %vm5980, %v6014, %v6016
      %v6018 = vrot.slane %v5335, 1
      %v6019 = vsel %vm5980, %v6016, %v6018
      %v6020 = vrot.slane %v5336, 1
      %v6021 = vsel %vm5980, %v6018, %v6020
      %v6023 = vsel %vm1707, %v5983, 0
      %v6026 = vsel %vm1707, %v5985, 0
      %v6029 = vsel %vm1707, %v5987, 0
      %v6032 = vsel %vm1707, %v5989, 0
      %v6035 = vsel %vm1707, %v5991, 0
      %v6038 = vsel %vm1707, %v5993, 0
      %v6041 = vsel %vm1707, %v5995, 0
      %v6044 = vsel %vm1707, %v5997, 0
      %v6047 = vsel %vm1707, %v5999, 0
      %v6050 = vsel %vm1707, %v6001, 0
      %v6053 = vsel %vm1707, %v6003, 0
      %v6056 = vsel %vm1707, %v6005, 0
      %v6059 = vsel %vm1707, %v6007, 0
      %v6062 = vsel %vm1707, %v6009, 0
      %v6065 = vsel %vm1707, %v6011, 0
      %v6068 = vsel %vm1707, %v6013, 0
      %v6071 = vsel %vm1707, %v6015, 0
      %v6074 = vsel %vm1707, %v6017, 0
      %v6077 = vsel %vm1707, %v6019, 0
      %v6080 = vsel %vm1707, %v6021, 0
      %v6083 = vsel %vm1707, %v6020, 0
      %v6086 = vsel %vm1771, %v5976, 0
      %6088 = vmatprep.subr.bf16.mxu0 0
      %6089 = vmatpush1.bf16.msra.mxu0 %v6086
      %6090 = vmatprep.subr.bf16.mxu0 0
      %6091 = vmatpush1.bf16.msra.mxu0 0
      %6092 = vmatprep.subr.bf16.mxu0 0
      %6093 = vmatpush1.bf16.msra.mxu0 0
      %6094 = vmatprep.subr.bf16.mxu0 0
      %6095 = vmatpush1.bf16.msra.mxu0 0
      %6096 = vmatprep.subr.bf16.mxu0 0
      %6097 = vmatpush1.bf16.msra.mxu0 0
      %6098 = vmatprep.subr.bf16.mxu0 0
      %6099 = vmatpush1.bf16.msra.mxu0 0
      %6100 = vmatprep.subr.bf16.mxu0 0
      %6101 = vmatpush1.bf16.msra.mxu0 0
      %6102 = vmatprep.subr.bf16.mxu0 0
      %6103 = vmatpush1.bf16.msra.mxu0 0
      %6104 = vmatprep.subr.bf16.mxu0 0
      %6105 = vmatpush1.bf16.msra.mxu0 0
      %6106 = vmatprep.subr.bf16.mxu0 0
      %6107 = vmatpush1.bf16.msra.mxu0 0
      %6108 = vmatprep.subr.bf16.mxu0 0
      %6109 = vmatpush1.bf16.msra.mxu0 0
      %6110 = vmatprep.subr.bf16.mxu0 0
      %6111 = vmatpush1.bf16.msra.mxu0 0
      %6112 = vmatprep.subr.bf16.mxu0 0
      %6113 = vmatpush1.bf16.msra.mxu0 0
      %6114 = vmatprep.subr.bf16.mxu0 0
      %6115 = vmatpush1.bf16.msra.mxu0 0
      %6116 = vmatprep.subr.bf16.mxu0 0
      %6117 = vmatpush1.bf16.msra.mxu0 0
      %6118 = vmatprep.subr.bf16.mxu0 0
      %6119 = vmatpush1.bf16.msra.mxu0 0
      %6120 = vmatprep.mubr.bf16.mxu0 0
      %6121 = vmatmul.mubr.bf16.gmra.mrb[0].mxu0 %v6023
      %v6122 = vpop.f32.mrb[0].mxu0
      %v6123 = vadd.f32 0.0, %v6122
      %v6124 = vpop.f32.mrb[0].mxu0
      %v6125 = vpop.f32.mrb[0].mxu0
      %v6126 = vadd.f32 0.0, %v6125
      %v6127 = vpop.f32.mrb[0].mxu0
      %6128 = vmatprep.mubr.bf16.mxu0 0
      %6129 = vmatmul.mubr.bf16.gmra.mrb[0].mxu0 %v6026
      %v6130 = vpop.f32.mrb[0].mxu0
      %v6131 = vadd.f32 0.0, %v6130
      %v6132 = vpop.f32.mrb[0].mxu0
      %v6133 = vpop.f32.mrb[0].mxu0
      %v6134 = vadd.f32 0.0, %v6133
      %v6135 = vpop.f32.mrb[0].mxu0
      %6136 = vmatprep.mubr.bf16.mxu0 0
      %6137 = vmatmul.mubr.bf16.gmra.mrb[0].mxu0 %v6029
      %v6138 = vpop.f32.mrb[0].mxu0
      %v6139 = vadd.f32 0.0, %v6138
      %v6140 = vpop.f32.mrb[0].mxu0
      %v6141 = vpop.f32.mrb[0].mxu0
      %v6142 = vadd.f32 0.0, %v6141
      %v6143 = vpop.f32.mrb[0].mxu0
      %6144 = vmatprep.mubr.bf16.mxu0 0
      %6145 = vmatmul.mubr.bf16.gmra.mrb[0].mxu0 %v6032
      %v6146 = vpop.f32.mrb[0].mxu0
      %v6147 = vadd.f32 0.0, %v6146
      %v6148 = vpop.f32.mrb[0].mxu0
      %v6149 = vpop.f32.mrb[0].mxu0
      %v6150 = vadd.f32 0.0, %v6149
      %v6151 = vpop.f32.mrb[0].mxu0
      %6152 = vmatprep.mubr.bf16.mxu0 0
      %6153 = vmatmul.mubr.bf16.gmra.mrb[0].mxu0 %v6035
      %v6154 = vpop.f32.mrb[0].mxu0
      %v6155 = vadd.f32 0.0, %v6154
      %v6156 = vpop.f32.mrb[0].mxu0
      %v6157 = vpop.f32.mrb[0].mxu0
      %v6158 = vadd.f32 0.0, %v6157
      %v6159 = vpop.f32.mrb[0].mxu0
      %6160 = vmatprep.mubr.bf16.mxu0 0
      %6161 = vmatmul.mubr.bf16.gmra.mrb[0].mxu0 %v6038
      %v6162 = vpop.f32.mrb[0].mxu0
      %v6163 = vadd.f32 0.0, %v6162
      %v6164 = vpop.f32.mrb[0].mxu0
      %v6165 = vpop.f32.mrb[0].mxu0
      %v6166 = vadd.f32 0.0, %v6165
      %v6167 = vpop.f32.mrb[0].mxu0
      %6168 = vmatprep.mubr.bf16.mxu0 0
      %6169 = vmatmul.mubr.bf16.gmra.mrb[0].mxu0 %v6041
      %v6170 = vpop.f32.mrb[0].mxu0
      %v6171 = vadd.f32 0.0, %v6170
      %v6172 = vpop.f32.mrb[0].mxu0
      %v6173 = vpop.f32.mrb[0].mxu0
      %v6174 = vadd.f32 0.0, %v6173
      %v6175 = vpop.f32.mrb[0].mxu0
      %6176 = vmatprep.mubr.bf16.mxu0 0
      %6177 = vmatmul.mubr.bf16.gmra.mrb[0].mxu0 %v6044
      %v6178 = vpop.f32.mrb[0].mxu0
      %v6179 = vadd.f32 0.0, %v6178
      %v6180 = vpop.f32.mrb[0].mxu0
      %v6181 = vpop.f32.mrb[0].mxu0
      %v6182 = vadd.f32 0.0, %v6181
      %v6183 = vpop.f32.mrb[0].mxu0
      %6184 = vmatprep.mubr.bf16.mxu0 0
      %6185 = vmatmul.mubr.bf16.gmra.mrb[0].mxu0 %v6047
      %v6186 = vpop.f32.mrb[0].mxu0
      %v6187 = vadd.f32 0.0, %v6186
      %v6188 = vpop.f32.mrb[0].mxu0
      %v6189 = vpop.f32.mrb[0].mxu0
      %v6190 = vadd.f32 0.0, %v6189
      %v6191 = vpop.f32.mrb[0].mxu0
      %6192 = vmatprep.mubr.bf16.mxu0 0
      %6193 = vmatmul.mubr.bf16.gmra.mrb[0].mxu0 %v6050
      %v6194 = vpop.f32.mrb[0].mxu0
      %v6195 = vadd.f32 0.0, %v6194
      %v6196 = vpop.f32.mrb[0].mxu0
      %v6197 = vpop.f32.mrb[0].mxu0
      %v6198 = vadd.f32 0.0, %v6197
      %v6199 = vpop.f32.mrb[0].mxu0
      %6200 = vmatprep.mubr.bf16.mxu0 0
      %6201 = vmatmul.mubr.bf16.gmra.mrb[0].mxu0 %v6053
      %v6202 = vpop.f32.mrb[0].mxu0
      %v6203 = vadd.f32 0.0, %v6202
      %v6204 = vpop.f32.mrb[0].mxu0
      %v6205 = vpop.f32.mrb[0].mxu0
      %v6206 = vadd.f32 0.0, %v6205
      %v6207 = vpop.f32.mrb[0].mxu0
      %6208 = vmatprep.mubr.bf16.mxu0 0
      %6209 = vmatmul.mubr.bf16.gmra.mrb[0].mxu0 %v6056
      %v6210 = vpop.f32.mrb[0].mxu0
      %v6211 = vadd.f32 0.0, %v6210
      %v6212 = vpop.f32.mrb[0].mxu0
      %v6213 = vpop.f32.mrb[0].mxu0
      %v6214 = vadd.f32 0.0, %v6213
      %v6215 = vpop.f32.mrb[0].mxu0
      %6216 = vmatprep.mubr.bf16.mxu0 0
      %6217 = vmatmul.mubr.bf16.gmra.mrb[0].mxu0 %v6059
      %v6218 = vpop.f32.mrb[0].mxu0
      %v6219 = vadd.f32 0.0, %v6218
      %v6220 = vpop.f32.mrb[0].mxu0
      %v6221 = vpop.f32.mrb[0].mxu0
      %v6222 = vadd.f32 0.0, %v6221
      %v6223 = vpop.f32.mrb[0].mxu0
      %6224 = vmatprep.mubr.bf16.mxu0 0
      %6225 = vmatmul.mubr.bf16.gmra.mrb[0].mxu0 %v6062
      %v6226 = vpop.f32.mrb[0].mxu0
      %v6227 = vadd.f32 0.0, %v6226
      %v6228 = vpop.f32.mrb[0].mxu0
      %v6229 = vpop.f32.mrb[0].mxu0
      %v6230 = vadd.f32 0.0, %v6229
      %v6231 = vpop.f32.mrb[0].mxu0
      %6232 = vmatprep.mubr.bf16.mxu0 0
      %6233 = vmatmul.mubr.bf16.gmra.mrb[0].mxu0 %v6065
      %v6234 = vpop.f32.mrb[0].mxu0
      %v6235 = vadd.f32 0.0, %v6234
      %v6236 = vpop.f32.mrb[0].mxu0
      %v6237 = vpop.f32.mrb[0].mxu0
      %v6238 = vadd.f32 0.0, %v6237
      %v6239 = vpop.f32.mrb[0].mxu0
      %6240 = vmatprep.mubr.bf16.mxu0 0
      %6241 = vmatmul.mubr.bf16.gmra.mrb[0].mxu0 %v6068
      %v6242 = vpop.f32.mrb[0].mxu0
      %v6243 = vadd.f32 0.0, %v6242
      %v6244 = vpop.f32.mrb[0].mxu0
      %v6245 = vpop.f32.mrb[0].mxu0
      %v6246 = vadd.f32 0.0, %v6245
      %v6247 = vpop.f32.mrb[0].mxu0
      %6248 = vmatprep.mubr.bf16.mxu0 0
      %6249 = vmatmul.mubr.bf16.gmra.mrb[0].mxu0 %v6071
      %v6250 = vpop.f32.mrb[0].mxu0
      %v6251 = vadd.f32 0.0, %v6250
      %v6252 = vpop.f32.mrb[0].mxu0
      %v6253 = vpop.f32.mrb[0].mxu0
      %v6254 = vadd.f32 0.0, %v6253
      %v6255 = vpop.f32.mrb[0].mxu0
      %6256 = vmatprep.mubr.bf16.mxu0 0
      %6257 = vmatmul.mubr.bf16.gmra.mrb[0].mxu0 %v6074
      %v6258 = vpop.f32.mrb[0].mxu0
      %v6259 = vadd.f32 0.0, %v6258
      %v6260 = vpop.f32.mrb[0].mxu0
      %v6261 = vpop.f32.mrb[0].mxu0
      %v6262 = vadd.f32 0.0, %v6261
      %v6263 = vpop.f32.mrb[0].mxu0
      %6264 = vmatprep.mubr.bf16.mxu0 0
      %6265 = vmatmul.mubr.bf16.gmra.mrb[0].mxu0 %v6077
      %v6266 = vpop.f32.mrb[0].mxu0
      %v6267 = vadd.f32 0.0, %v6266
      %v6268 = vpop.f32.mrb[0].mxu0
      %v6269 = vpop.f32.mrb[0].mxu0
      %v6270 = vadd.f32 0.0, %v6269
      %v6271 = vpop.f32.mrb[0].mxu0
      %6272 = vmatprep.mubr.bf16.mxu0 0
      %6273 = vmatmul.mubr.bf16.gmra.mrb[0].mxu0 %v6080
      %v6274 = vpop.f32.mrb[0].mxu0
      %v6275 = vadd.f32 0.0, %v6274
      %v6276 = vpop.f32.mrb[0].mxu0
      %v6277 = vpop.f32.mrb[0].mxu0
      %v6278 = vadd.f32 0.0, %v6277
      %v6279 = vpop.f32.mrb[0].mxu0
      %6280 = vmatprep.mubr.bf16.mxu0 0
      %6281 = vmatmul.mubr.bf16.gmra.mrb[0].mxu0 %v6083
      %v6282 = vpop.f32.mrb[0].mxu0
      %v6283 = vadd.f32 0.0, %v6282
      %v6284 = vpop.f32.mrb[0].mxu0
      %v6285 = vpop.f32.mrb[0].mxu0
      %v6286 = vpop.f32.mrb[0].mxu0
      %6287 = vdwg.mxu0
      %6329 = vrot.lane.b32.xlu0 %v6123, 8
      %v6330 = vpop.permute.xlu0 %6329
      %6331 = vrot.lane.b32.xlu0 %v6126, 8
      %v6332 = vpop.permute.xlu0 %6331
      %6333 = vrot.lane.b32.xlu0 %v6131, 8
      %v6334 = vpop.permute.xlu0 %6333
      %6335 = vrot.lane.b32.xlu0 %v6134, 8
      %v6336 = vpop.permute.xlu0 %6335
      %6337 = vrot.lane.b32.xlu0 %v6139, 8
      %v6338 = vpop.permute.xlu0 %6337
      %6339 = vrot.lane.b32.xlu0 %v6142, 8
      %v6340 = vpop.permute.xlu0 %6339
      %6341 = vrot.lane.b32.xlu0 %v6147, 8
      %v6342 = vpop.permute.xlu0 %6341
      %6343 = vrot.lane.b32.xlu0 %v6150, 8
      %v6344 = vpop.permute.xlu0 %6343
      %6345 = vrot.lane.b32.xlu0 %v6155, 8
      %v6346 = vpop.permute.xlu0 %6345
      %6347 = vrot.lane.b32.xlu0 %v6158, 8
      %v6348 = vpop.permute.xlu0 %6347
      %6349 = vrot.lane.b32.xlu0 %v6163, 8
      %v6350 = vpop.permute.xlu0 %6349
      %6351 = vrot.lane.b32.xlu0 %v6166, 8
      %v6352 = vpop.permute.xlu0 %6351
      %6353 = vrot.lane.b32.xlu0 %v6171, 8
      %v6354 = vpop.permute.xlu0 %6353
      %6355 = vrot.lane.b32.xlu0 %v6174, 8
      %v6356 = vpop.permute.xlu0 %6355
      %6357 = vrot.lane.b32.xlu0 %v6179, 8
      %v6358 = vpop.permute.xlu0 %6357
      %6359 = vrot.lane.b32.xlu0 %v6182, 8
      %v6360 = vpop.permute.xlu0 %6359
      %6361 = vrot.lane.b32.xlu0 %v6187, 8
      %v6362 = vpop.permute.xlu0 %6361
      %6363 = vrot.lane.b32.xlu0 %v6190, 8
      %v6364 = vpop.permute.xlu0 %6363
      %6365 = vrot.lane.b32.xlu0 %v6195, 8
      %v6366 = vpop.permute.xlu0 %6365
      %6367 = vrot.lane.b32.xlu0 %v6198, 8
      %v6368 = vpop.permute.xlu0 %6367
      %6369 = vrot.lane.b32.xlu0 %v6203, 8
      %v6370 = vpop.permute.xlu0 %6369
      %6371 = vrot.lane.b32.xlu0 %v6206, 8
      %v6372 = vpop.permute.xlu0 %6371
      %6373 = vrot.lane.b32.xlu0 %v6211, 8
      %v6374 = vpop.permute.xlu0 %6373
      %6375 = vrot.lane.b32.xlu0 %v6214, 8
      %v6376 = vpop.permute.xlu0 %6375
      %6377 = vrot.lane.b32.xlu0 %v6219, 8
      %v6378 = vpop.permute.xlu0 %6377
      %6379 = vrot.lane.b32.xlu0 %v6222, 8
      %v6380 = vpop.permute.xlu0 %6379
      %6381 = vrot.lane.b32.xlu0 %v6227, 8
      %v6382 = vpop.permute.xlu0 %6381
      %6383 = vrot.lane.b32.xlu0 %v6230, 8
      %v6384 = vpop.permute.xlu0 %6383
      %6385 = vrot.lane.b32.xlu0 %v6235, 8
      %v6386 = vpop.permute.xlu0 %6385
      %6387 = vrot.lane.b32.xlu0 %v6238, 8
      %v6388 = vpop.permute.xlu0 %6387
      %6389 = vrot.lane.b32.xlu0 %v6243, 8
      %v6390 = vpop.permute.xlu0 %6389
      %6391 = vrot.lane.b32.xlu0 %v6246, 8
      %v6392 = vpop.permute.xlu0 %6391
      %6393 = vrot.lane.b32.xlu0 %v6251, 8
      %v6394 = vpop.permute.xlu0 %6393
      %6395 = vrot.lane.b32.xlu0 %v6254, 8
      %v6396 = vpop.permute.xlu0 %6395
      %6397 = vrot.lane.b32.xlu0 %v6259, 8
      %v6398 = vpop.permute.xlu0 %6397
      %6399 = vrot.lane.b32.xlu0 %v6262, 8
      %v6400 = vpop.permute.xlu0 %6399
      %6401 = vrot.lane.b32.xlu0 %v6267, 8
      %v6402 = vpop.permute.xlu0 %6401
      %6403 = vrot.lane.b32.xlu0 %v6270, 8
      %v6404 = vpop.permute.xlu0 %6403
      %6405 = vrot.lane.b32.xlu0 %v6275, 8
      %v6406 = vpop.permute.xlu0 %6405
      %6407 = vrot.lane.b32.xlu0 %v6278, 8
      %v6408 = vpop.permute.xlu0 %6407
      %6409 = vrot.lane.b32.xlu0 %v6283, 8
      %v6410 = vpop.permute.xlu0 %6409
      %v6452 = vadd.f32 %v5934, %v6330
      %v6453 = vadd.f32 %v5935, %v6332
      %v6454 = vadd.f32 %v5936, %v6334
      %v6455 = vadd.f32 %v5937, %v6336
      %v6456 = vadd.f32 %v5938, %v6338
      %v6457 = vadd.f32 %v5939, %v6340
      %v6458 = vadd.f32 %v5940, %v6342
      %v6459 = vadd.f32 %v5941, %v6344
      %v6460 = vadd.f32 %v5942, %v6346
      %v6461 = vadd.f32 %v5943, %v6348
      %v6462 = vadd.f32 %v5944, %v6350
      %v6463 = vadd.f32 %v5945, %v6352
      %v6464 = vadd.f32 %v5946, %v6354
      %v6465 = vadd.f32 %v5947, %v6356
      %v6466 = vadd.f32 %v5948, %v6358
      %v6467 = vadd.f32 %v5949, %v6360
      %v6468 = vadd.f32 %v5950, %v6362
      %v6469 = vadd.f32 %v5951, %v6364
      %v6470 = vadd.f32 %v5952, %v6366
      %v6471 = vadd.f32 %v5953, %v6368
      %v6472 = vadd.f32 %v5954, %v6370
      %v6473 = vadd.f32 %v5955, %v6372
      %v6474 = vadd.f32 %v5956, %v6374
      %v6475 = vadd.f32 %v5957, %v6376
      %v6476 = vadd.f32 %v5958, %v6378
      %v6477 = vadd.f32 %v5959, %v6380
      %v6478 = vadd.f32 %v5960, %v6382
      %v6479 = vadd.f32 %v5961, %v6384
      %v6480 = vadd.f32 %v5962, %v6386
      %v6481 = vadd.f32 %v5963, %v6388
      %v6482 = vadd.f32 %v5964, %v6390
      %v6483 = vadd.f32 %v5965, %v6392
      %v6484 = vadd.f32 %v5966, %v6394
      %v6485 = vadd.f32 %v5967, %v6396
      %v6486 = vadd.f32 %v5968, %v6398
      %v6487 = vadd.f32 %v5969, %v6400
      %v6488 = vadd.f32 %v5970, %v6402
      %v6489 = vadd.f32 %v5971, %v6404
      %v6490 = vadd.f32 %v5972, %v6406
      %v6491 = vadd.f32 %v5973, %v6408
      %v6492 = vadd.f32 %v5974, %v6410
      %v6493 = vld [vmem:[#allocation2 + $0xb8] sm:$0xf]
      %v6494 = vld [vmem:[%s4 + $0x20] sm:$0xf]
      %v6496 = vunpack.c.l.b16 %v6493
      %v6497 = vpack.c.b16 %v6496, %v6496
      %vm6498 = vsmask.f32 6400
      %v6500 = vshrl.u32 %v5979, 16
      %v6502 = vrot.slane %v6500, 1
      %v6503 = vshll.u32 %v5979, 16
      %v6505 = vrot.slane %v6503, 2
      %v6506 = vor.u32 %v6502, %v6505
      %v6507 = vrot.slane %v5349, 1
      %v6508 = vrot.slane %v5345, 2
      %v6509 = vor.u32 %v6507, %v6508
      %v6510 = vsel %vm6498, %v6506, %v6509
      %v6511 = vrot.slane %v5357, 1
      %v6512 = vrot.slane %v5353, 2
      %v6513 = vor.u32 %v6511, %v6512
      %v6514 = vsel %vm6498, %v6509, %v6513
      %v6515 = vrot.slane %v5365, 1
      %v6516 = vrot.slane %v5361, 2
      %v6517 = vor.u32 %v6515, %v6516
      %v6518 = vsel %vm6498, %v6513, %v6517
      %v6519 = vrot.slane %v5373, 1
      %v6520 = vrot.slane %v5369, 2
      %v6521 = vor.u32 %v6519, %v6520
      %v6522 = vsel %vm6498, %v6517, %v6521
      %v6523 = vrot.slane %v5381, 1
      %v6524 = vrot.slane %v5377, 2
      %v6525 = vor.u32 %v6523, %v6524
      %v6526 = vsel %vm6498, %v6521, %v6525
      %v6527 = vrot.slane %v5389, 1
      %v6528 = vrot.slane %v5385, 2
      %v6529 = vor.u32 %v6527, %v6528
      %v6530 = vsel %vm6498, %v6525, %v6529
      %v6531 = vrot.slane %v5397, 1
      %v6532 = vrot.slane %v5393, 2
      %v6533 = vor.u32 %v6531, %v6532
      %v6534 = vsel %vm6498, %v6529, %v6533
      %v6535 = vrot.slane %v5405, 1
      %v6536 = vrot.slane %v5401, 2
      %v6537 = vor.u32 %v6535, %v6536
      %v6538 = vsel %vm6498, %v6533, %v6537
      %v6539 = vrot.slane %v5413, 1
      %v6540 = vrot.slane %v5409, 2
      %v6541 = vor.u32 %v6539, %v6540
      %v6542 = vsel %vm6498, %v6537, %v6541
      %v6543 = vrot.slane %v5421, 1
      %v6544 = vrot.slane %v5417, 2
      %v6545 = vor.u32 %v6543, %v6544
      %v6546 = vsel %vm6498, %v6541, %v6545
      %v6547 = vrot.slane %v5429, 1
      %v6548 = vrot.slane %v5425, 2
      %v6549 = vor.u32 %v6547, %v6548
      %v6550 = vsel %vm6498, %v6545, %v6549
      %v6551 = vrot.slane %v5437, 1
      %v6552 = vrot.slane %v5433, 2
      %v6553 = vor.u32 %v6551, %v6552
      %v6554 = vsel %vm6498, %v6549, %v6553
      %v6555 = vrot.slane %v5445, 1
      %v6556 = vrot.slane %v5441, 2
      %v6557 = vor.u32 %v6555, %v6556
      %v6558 = vsel %vm6498, %v6553, %v6557
      %v6559 = vrot.slane %v5453, 1
      %v6560 = vrot.slane %v5449, 2
      %v6561 = vor.u32 %v6559, %v6560
      %v6562 = vsel %vm6498, %v6557, %v6561
      %v6563 = vrot.slane %v5461, 1
      %v6564 = vrot.slane %v5457, 2
      %v6565 = vor.u32 %v6563, %v6564
      %v6566 = vsel %vm6498, %v6561, %v6565
      %v6567 = vrot.slane %v5469, 1
      %v6568 = vrot.slane %v5465, 2
      %v6569 = vor.u32 %v6567, %v6568
      %v6570 = vsel %vm6498, %v6565, %v6569
      %v6571 = vrot.slane %v5477, 1
      %v6572 = vrot.slane %v5473, 2
      %v6573 = vor.u32 %v6571, %v6572
      %v6574 = vsel %vm6498, %v6569, %v6573
      %v6575 = vrot.slane %v5485, 1
      %v6576 = vrot.slane %v5481, 2
      %v6577 = vor.u32 %v6575, %v6576
      %v6578 = vsel %vm6498, %v6573, %v6577
      %v6579 = vrot.slane %v5493, 1
      %v6580 = vrot.slane %v5489, 2
      %v6581 = vor.u32 %v6579, %v6580
      %v6582 = vsel %vm6498, %v6577, %v6581
      %v6584 = vshrl.u32 %v6497, 16
      %v6586 = vrot.slane %v6584, 1
      %v6587 = vshll.u32 %v6497, 16
      %v6589 = vrot.slane %v6587, 2
      %v6590 = vor.u32 %v6586, %v6589
      %v6591 = vsel %vm6498, %v6581, %v6590
      %v6593 = vsel %vm1707, %v6510, 0
      %v6596 = vsel %vm1707, %v6514, 0
      %v6599 = vsel %vm1707, %v6518, 0
      %v6602 = vsel %vm1707, %v6522, 0
      %v6605 = vsel %vm1707, %v6526, 0
      %v6608 = vsel %vm1707, %v6530, 0
      %v6611 = vsel %vm1707, %v6534, 0
      %v6614 = vsel %vm1707, %v6538, 0
      %v6617 = vsel %vm1707, %v6542, 0
      %v6620 = vsel %vm1707, %v6546, 0
      %v6623 = vsel %vm1707, %v6550, 0
      %v6626 = vsel %vm1707, %v6554, 0
      %v6629 = vsel %vm1707, %v6558, 0
      %v6632 = vsel %vm1707, %v6562, 0
      %v6635 = vsel %vm1707, %v6566, 0
      %v6638 = vsel %vm1707, %v6570, 0
      %v6641 = vsel %vm1707, %v6574, 0
      %v6644 = vsel %vm1707, %v6578, 0
      %v6647 = vsel %vm1707, %v6582, 0
      %v6650 = vsel %vm1707, %v6591, 0
      %v6653 = vsel %vm1707, %v6590, 0
      %v6656 = vsel %vm1771, %v6494, 0
      %6658 = vmatprep.subr.bf16.mxu0 0
      %6659 = vmatpush1.bf16.msra.mxu0 %v6656
      %6660 = vmatprep.subr.bf16.mxu0 0
      %6661 = vmatpush1.bf16.msra.mxu0 0
      %6662 = vmatprep.subr.bf16.mxu0 0
      %6663 = vmatpush1.bf16.msra.mxu0 0
      %6664 = vmatprep.subr.bf16.mxu0 0
      %6665 = vmatpush1.bf16.msra.mxu0 0
      %6666 = vmatprep.subr.bf16.mxu0 0
      %6667 = vmatpush1.bf16.msra.mxu0 0
      %6668 = vmatprep.subr.bf16.mxu0 0
      %6669 = vmatpush1.bf16.msra.mxu0 0
      %6670 = vmatprep.subr.bf16.mxu0 0
      %6671 = vmatpush1.bf16.msra.mxu0 0
      %6672 = vmatprep.subr.bf16.mxu0 0
      %6673 = vmatpush1.bf16.msra.mxu0 0
      %6674 = vmatprep.subr.bf16.mxu0 0
      %6675 = vmatpush1.bf16.msra.mxu0 0
      %6676 = vmatprep.subr.bf16.mxu0 0
      %6677 = vmatpush1.bf16.msra.mxu0 0
      %6678 = vmatprep.subr.bf16.mxu0 0
      %6679 = vmatpush1.bf16.msra.mxu0 0
      %6680 = vmatprep.subr.bf16.mxu0 0
      %6681 = vmatpush1.bf16.msra.mxu0 0
      %6682 = vmatprep.subr.bf16.mxu0 0
      %6683 = vmatpush1.bf16.msra.mxu0 0
      %6684 = vmatprep.subr.bf16.mxu0 0
      %6685 = vmatpush1.bf16.msra.mxu0 0
      %6686 = vmatprep.subr.bf16.mxu0 0
      %6687 = vmatpush1.bf16.msra.mxu0 0
      %6688 = vmatprep.subr.bf16.mxu0 0
      %6689 = vmatpush1.bf16.msra.mxu0 0
      %6690 = vmatprep.mubr.bf16.mxu0 0
      %6691 = vmatmul.mubr.bf16.gmra.mrb[0].mxu0 %v6593
      %v6692 = vpop.f32.mrb[0].mxu0
      %v6693 = vadd.f32 0.0, %v6692
      %v6694 = vpop.f32.mrb[0].mxu0
      %v6695 = vpop.f32.mrb[0].mxu0
      %v6696 = vadd.f32 0.0, %v6695
      %v6697 = vpop.f32.mrb[0].mxu0
      %6698 = vmatprep.mubr.bf16.mxu0 0
      %6699 = vmatmul.mubr.bf16.gmra.mrb[0].mxu0 %v6596
      %v6700 = vpop.f32.mrb[0].mxu0
      %v6701 = vadd.f32 0.0, %v6700
      %v6702 = vpop.f32.mrb[0].mxu0
      %v6703 = vpop.f32.mrb[0].mxu0
      %v6704 = vadd.f32 0.0, %v6703
      %v6705 = vpop.f32.mrb[0].mxu0
      %6706 = vmatprep.mubr.bf16.mxu0 0
      %6707 = vmatmul.mubr.bf16.gmra.mrb[0].mxu0 %v6599
      %v6708 = vpop.f32.mrb[0].mxu0
      %v6709 = vadd.f32 0.0, %v6708
      %v6710 = vpop.f32.mrb[0].mxu0
      %v6711 = vpop.f32.mrb[0].mxu0
      %v6712 = vadd.f32 0.0, %v6711
      %v6713 = vpop.f32.mrb[0].mxu0
      %6714 = vmatprep.mubr.bf16.mxu0 0
      %6715 = vmatmul.mubr.bf16.gmra.mrb[0].mxu0 %v6602
      %v6716 = vpop.f32.mrb[0].mxu0
      %v6717 = vadd.f32 0.0, %v6716
      %v6718 = vpop.f32.mrb[0].mxu0
      %v6719 = vpop.f32.mrb[0].mxu0
      %v6720 = vadd.f32 0.0, %v6719
      %v6721 = vpop.f32.mrb[0].mxu0
      %6722 = vmatprep.mubr.bf16.mxu0 0
      %6723 = vmatmul.mubr.bf16.gmra.mrb[0].mxu0 %v6605
      %v6724 = vpop.f32.mrb[0].mxu0
      %v6725 = vadd.f32 0.0, %v6724
      %v6726 = vpop.f32.mrb[0].mxu0
      %v6727 = vpop.f32.mrb[0].mxu0
      %v6728 = vadd.f32 0.0, %v6727
      %v6729 = vpop.f32.mrb[0].mxu0
      %6730 = vmatprep.mubr.bf16.mxu0 0
      %6731 = vmatmul.mubr.bf16.gmra.mrb[0].mxu0 %v6608
      %v6732 = vpop.f32.mrb[0].mxu0
      %v6733 = vadd.f32 0.0, %v6732
      %v6734 = vpop.f32.mrb[0].mxu0
      %v6735 = vpop.f32.mrb[0].mxu0
      %v6736 = vadd.f32 0.0, %v6735
      %v6737 = vpop.f32.mrb[0].mxu0
      %6738 = vmatprep.mubr.bf16.mxu0 0
      %6739 = vmatmul.mubr.bf16.gmra.mrb[0].mxu0 %v6611
      %v6740 = vpop.f32.mrb[0].mxu0
      %v6741 = vadd.f32 0.0, %v6740
      %v6742 = vpop.f32.mrb[0].mxu0
      %v6743 = vpop.f32.mrb[0].mxu0
      %v6744 = vadd.f32 0.0, %v6743
      %v6745 = vpop.f32.mrb[0].mxu0
      %6746 = vmatprep.mubr.bf16.mxu0 0
      %6747 = vmatmul.mubr.bf16.gmra.mrb[0].mxu0 %v6614
      %v6748 = vpop.f32.mrb[0].mxu0
      %v6749 = vadd.f32 0.0, %v6748
      %v6750 = vpop.f32.mrb[0].mxu0
      %v6751 = vpop.f32.mrb[0].mxu0
      %v6752 = vadd.f32 0.0, %v6751
      %v6753 = vpop.f32.mrb[0].mxu0
      %6754 = vmatprep.mubr.bf16.mxu0 0
      %6755 = vmatmul.mubr.bf16.gmra.mrb[0].mxu0 %v6617
      %v6756 = vpop.f32.mrb[0].mxu0
      %v6757 = vadd.f32 0.0, %v6756
      %v6758 = vpop.f32.mrb[0].mxu0
      %v6759 = vpop.f32.mrb[0].mxu0
      %v6760 = vadd.f32 0.0, %v6759
      %v6761 = vpop.f32.mrb[0].mxu0
      %6762 = vmatprep.mubr.bf16.mxu0 0
      %6763 = vmatmul.mubr.bf16.gmra.mrb[0].mxu0 %v6620
      %v6764 = vpop.f32.mrb[0].mxu0
      %v6765 = vadd.f32 0.0, %v6764
      %v6766 = vpop.f32.mrb[0].mxu0
      %v6767 = vpop.f32.mrb[0].mxu0
      %v6768 = vadd.f32 0.0, %v6767
      %v6769 = vpop.f32.mrb[0].mxu0
      %6770 = vmatprep.mubr.bf16.mxu0 0
      %6771 = vmatmul.mubr.bf16.gmra.mrb[0].mxu0 %v6623
      %v6772 = vpop.f32.mrb[0].mxu0
      %v6773 = vadd.f32 0.0, %v6772
      %v6774 = vpop.f32.mrb[0].mxu0
      %v6775 = vpop.f32.mrb[0].mxu0
      %v6776 = vadd.f32 0.0, %v6775
      %v6777 = vpop.f32.mrb[0].mxu0
      %6778 = vmatprep.mubr.bf16.mxu0 0
      %6779 = vmatmul.mubr.bf16.gmra.mrb[0].mxu0 %v6626
      %v6780 = vpop.f32.mrb[0].mxu0
      %v6781 = vadd.f32 0.0, %v6780
      %v6782 = vpop.f32.mrb[0].mxu0
      %v6783 = vpop.f32.mrb[0].mxu0
      %v6784 = vadd.f32 0.0, %v6783
      %v6785 = vpop.f32.mrb[0].mxu0
      %6786 = vmatprep.mubr.bf16.mxu0 0
      %6787 = vmatmul.mubr.bf16.gmra.mrb[0].mxu0 %v6629
      %v6788 = vpop.f32.mrb[0].mxu0
      %v6789 = vadd.f32 0.0, %v6788
      %v6790 = vpop.f32.mrb[0].mxu0
      %v6791 = vpop.f32.mrb[0].mxu0
      %v6792 = vadd.f32 0.0, %v6791
      %v6793 = vpop.f32.mrb[0].mxu0
      %6794 = vmatprep.mubr.bf16.mxu0 0
      %6795 = vmatmul.mubr.bf16.gmra.mrb[0].mxu0 %v6632
      %v6796 = vpop.f32.mrb[0].mxu0
      %v6797 = vadd.f32 0.0, %v6796
      %v6798 = vpop.f32.mrb[0].mxu0
      %v6799 = vpop.f32.mrb[0].mxu0
      %v6800 = vadd.f32 0.0, %v6799
      %v6801 = vpop.f32.mrb[0].mxu0
      %6802 = vmatprep.mubr.bf16.mxu0 0
      %6803 = vmatmul.mubr.bf16.gmra.mrb[0].mxu0 %v6635
      %v6804 = vpop.f32.mrb[0].mxu0
      %v6805 = vadd.f32 0.0, %v6804
      %v6806 = vpop.f32.mrb[0].mxu0
      %v6807 = vpop.f32.mrb[0].mxu0
      %v6808 = vadd.f32 0.0, %v6807
      %v6809 = vpop.f32.mrb[0].mxu0
      %6810 = vmatprep.mubr.bf16.mxu0 0
      %6811 = vmatmul.mubr.bf16.gmra.mrb[0].mxu0 %v6638
      %v6812 = vpop.f32.mrb[0].mxu0
      %v6813 = vadd.f32 0.0, %v6812
      %v6814 = vpop.f32.mrb[0].mxu0
      %v6815 = vpop.f32.mrb[0].mxu0
      %v6816 = vadd.f32 0.0, %v6815
      %v6817 = vpop.f32.mrb[0].mxu0
      %6818 = vmatprep.mubr.bf16.mxu0 0
      %6819 = vmatmul.mubr.bf16.gmra.mrb[0].mxu0 %v6641
      %v6820 = vpop.f32.mrb[0].mxu0
      %v6821 = vadd.f32 0.0, %v6820
      %v6822 = vpop.f32.mrb[0].mxu0
      %v6823 = vpop.f32.mrb[0].mxu0
      %v6824 = vadd.f32 0.0, %v6823
      %v6825 = vpop.f32.mrb[0].mxu0
      %6826 = vmatprep.mubr.bf16.mxu0 0
      %6827 = vmatmul.mubr.bf16.gmra.mrb[0].mxu0 %v6644
      %v6828 = vpop.f32.mrb[0].mxu0
      %v6829 = vadd.f32 0.0, %v6828
      %v6830 = vpop.f32.mrb[0].mxu0
      %v6831 = vpop.f32.mrb[0].mxu0
      %v6832 = vadd.f32 0.0, %v6831
      %v6833 = vpop.f32.mrb[0].mxu0
      %6834 = vmatprep.mubr.bf16.mxu0 0
      %6835 = vmatmul.mubr.bf16.gmra.mrb[0].mxu0 %v6647
      %v6836 = vpop.f32.mrb[0].mxu0
      %v6837 = vadd.f32 0.0, %v6836
      %v6838 = vpop.f32.mrb[0].mxu0
      %v6839 = vpop.f32.mrb[0].mxu0
      %v6840 = vadd.f32 0.0, %v6839
      %v6841 = vpop.f32.mrb[0].mxu0
      %6842 = vmatprep.mubr.bf16.mxu0 0
      %6843 = vmatmul.mubr.bf16.gmra.mrb[0].mxu0 %v6650
      %v6844 = vpop.f32.mrb[0].mxu0
      %v6845 = vadd.f32 0.0, %v6844
      %v6846 = vpop.f32.mrb[0].mxu0
      %v6847 = vpop.f32.mrb[0].mxu0
      %v6848 = vadd.f32 0.0, %v6847
      %v6849 = vpop.f32.mrb[0].mxu0
      %6850 = vmatprep.mubr.bf16.mxu0 0
      %6851 = vmatmul.mubr.bf16.gmra.mrb[0].mxu0 %v6653
      %v6852 = vpop.f32.mrb[0].mxu0
      %v6853 = vadd.f32 0.0, %v6852
      %v6854 = vpop.f32.mrb[0].mxu0
      %v6855 = vpop.f32.mrb[0].mxu0
      %v6856 = vpop.f32.mrb[0].mxu0
      %6857 = vdwg.mxu0
      %6899 = vrot.lane.b32.xlu0 %v6693, 8
      %v6900 = vpop.permute.xlu0 %6899
      %6901 = vrot.lane.b32.xlu0 %v6696, 8
      %v6902 = vpop.permute.xlu0 %6901
      %6903 = vrot.lane.b32.xlu0 %v6701, 8
      %v6904 = vpop.permute.xlu0 %6903
      %6905 = vrot.lane.b32.xlu0 %v6704, 8
      %v6906 = vpop.permute.xlu0 %6905
      %6907 = vrot.lane.b32.xlu0 %v6709, 8
      %v6908 = vpop.permute.xlu0 %6907
      %6909 = vrot.lane.b32.xlu0 %v6712, 8
      %v6910 = vpop.permute.xlu0 %6909
      %6911 = vrot.lane.b32.xlu0 %v6717, 8
      %v6912 = vpop.permute.xlu0 %6911
      %6913 = vrot.lane.b32.xlu0 %v6720, 8
      %v6914 = vpop.permute.xlu0 %6913
      %6915 = vrot.lane.b32.xlu0 %v6725, 8
      %v6916 = vpop.permute.xlu0 %6915
      %6917 = vrot.lane.b32.xlu0 %v6728, 8
      %v6918 = vpop.permute.xlu0 %6917
      %6919 = vrot.lane.b32.xlu0 %v6733, 8
      %v6920 = vpop.permute.xlu0 %6919
      %6921 = vrot.lane.b32.xlu0 %v6736, 8
      %v6922 = vpop.permute.xlu0 %6921
      %6923 = vrot.lane.b32.xlu0 %v6741, 8
      %v6924 = vpop.permute.xlu0 %6923
      %6925 = vrot.lane.b32.xlu0 %v6744, 8
      %v6926 = vpop.permute.xlu0 %6925
      %6927 = vrot.lane.b32.xlu0 %v6749, 8
      %v6928 = vpop.permute.xlu0 %6927
      %6929 = vrot.lane.b32.xlu0 %v6752, 8
      %v6930 = vpop.permute.xlu0 %6929
      %6931 = vrot.lane.b32.xlu0 %v6757, 8
      %v6932 = vpop.permute.xlu0 %6931
      %6933 = vrot.lane.b32.xlu0 %v6760, 8
      %v6934 = vpop.permute.xlu0 %6933
      %6935 = vrot.lane.b32.xlu0 %v6765, 8
      %v6936 = vpop.permute.xlu0 %6935
      %6937 = vrot.lane.b32.xlu0 %v6768, 8
      %v6938 = vpop.permute.xlu0 %6937
      %6939 = vrot.lane.b32.xlu0 %v6773, 8
      %v6940 = vpop.permute.xlu0 %6939
      %6941 = vrot.lane.b32.xlu0 %v6776, 8
      %v6942 = vpop.permute.xlu0 %6941
      %6943 = vrot.lane.b32.xlu0 %v6781, 8
      %v6944 = vpop.permute.xlu0 %6943
      %6945 = vrot.lane.b32.xlu0 %v6784, 8
      %v6946 = vpop.permute.xlu0 %6945
      %6947 = vrot.lane.b32.xlu0 %v6789, 8
      %v6948 = vpop.permute.xlu0 %6947
      %6949 = vrot.lane.b32.xlu0 %v6792, 8
      %v6950 = vpop.permute.xlu0 %6949
      %6951 = vrot.lane.b32.xlu0 %v6797, 8
      %v6952 = vpop.permute.xlu0 %6951
      %6953 = vrot.lane.b32.xlu0 %v6800, 8
      %v6954 = vpop.permute.xlu0 %6953
      %6955 = vrot.lane.b32.xlu0 %v6805, 8
      %v6956 = vpop.permute.xlu0 %6955
      %6957 = vrot.lane.b32.xlu0 %v6808, 8
      %v6958 = vpop.permute.xlu0 %6957
      %6959 = vrot.lane.b32.xlu0 %v6813, 8
      %v6960 = vpop.permute.xlu0 %6959
      %6961 = vrot.lane.b32.xlu0 %v6816, 8
      %v6962 = vpop.permute.xlu0 %6961
      %6963 = vrot.lane.b32.xlu0 %v6821, 8
      %v6964 = vpop.permute.xlu0 %6963
      %6965 = vrot.lane.b32.xlu0 %v6824, 8
      %v6966 = vpop.permute.xlu0 %6965
      %6967 = vrot.lane.b32.xlu0 %v6829, 8
      %v6968 = vpop.permute.xlu0 %6967
      %6969 = vrot.lane.b32.xlu0 %v6832, 8
      %v6970 = vpop.permute.xlu0 %6969
      %6971 = vrot.lane.b32.xlu0 %v6837, 8
      %v6972 = vpop.permute.xlu0 %6971
      %6973 = vrot.lane.b32.xlu0 %v6840, 8
      %v6974 = vpop.permute.xlu0 %6973
      %6975 = vrot.lane.b32.xlu0 %v6845, 8
      %v6976 = vpop.permute.xlu0 %6975
      %6977 = vrot.lane.b32.xlu0 %v6848, 8
      %v6978 = vpop.permute.xlu0 %6977
      %6979 = vrot.lane.b32.xlu0 %v6853, 8
      %v6980 = vpop.permute.xlu0 %6979
      %v7022 = vadd.f32 %v6452, %v6900
      %v7023 = vadd.f32 %v6453, %v6902
      %v7024 = vadd.f32 %v6454, %v6904
      %v7025 = vadd.f32 %v6455, %v6906
      %v7026 = vadd.f32 %v6456, %v6908
      %v7027 = vadd.f32 %v6457, %v6910
      %v7028 = vadd.f32 %v6458, %v6912
      %v7029 = vadd.f32 %v6459, %v6914
      %v7030 = vadd.f32 %v6460, %v6916
      %v7031 = vadd.f32 %v6461, %v6918
      %v7032 = vadd.f32 %v6462, %v6920
      %v7033 = vadd.f32 %v6463, %v6922
      %v7034 = vadd.f32 %v6464, %v6924
      %v7035 = vadd.f32 %v6465, %v6926
      %v7036 = vadd.f32 %v6466, %v6928
      %v7037 = vadd.f32 %v6467, %v6930
      %v7038 = vadd.f32 %v6468, %v6932
      %v7039 = vadd.f32 %v6469, %v6934
      %v7040 = vadd.f32 %v6470, %v6936
      %v7041 = vadd.f32 %v6471, %v6938
      %v7042 = vadd.f32 %v6472, %v6940
      %v7043 = vadd.f32 %v6473, %v6942
      %v7044 = vadd.f32 %v6474, %v6944
      %v7045 = vadd.f32 %v6475, %v6946
      %v7046 = vadd.f32 %v6476, %v6948
      %v7047 = vadd.f32 %v6477, %v6950
      %v7048 = vadd.f32 %v6478, %v6952
      %v7049 = vadd.f32 %v6479, %v6954
      %v7050 = vadd.f32 %v6480, %v6956
      %v7051 = vadd.f32 %v6481, %v6958
      %v7052 = vadd.f32 %v6482, %v6960
      %v7053 = vadd.f32 %v6483, %v6962
      %v7054 = vadd.f32 %v6484, %v6964
      %v7055 = vadd.f32 %v6485, %v6966
      %v7056 = vadd.f32 %v6486, %v6968
      %v7057 = vadd.f32 %v6487, %v6970
      %v7058 = vadd.f32 %v6488, %v6972
      %v7059 = vadd.f32 %v6489, %v6974
      %v7060 = vadd.f32 %v6490, %v6976
      %v7061 = vadd.f32 %v6491, %v6978
      %v7062 = vadd.f32 %v6492, %v6980
      %7104 = vrot.lane.b32.xlu0 %v7022, 120
      %v7105 = vpop.permute.xlu0 %7104
      %7106 = vrot.lane.b32.xlu0 %v7023, 120
      %v7107 = vpop.permute.xlu0 %7106
      %7108 = vrot.lane.b32.xlu0 %v7024, 120
      %v7109 = vpop.permute.xlu0 %7108
      %7110 = vrot.lane.b32.xlu0 %v7025, 120
      %v7111 = vpop.permute.xlu0 %7110
      %7112 = vrot.lane.b32.xlu0 %v7026, 120
      %v7113 = vpop.permute.xlu0 %7112
      %7114 = vrot.lane.b32.xlu0 %v7027, 120
      %v7115 = vpop.permute.xlu0 %7114
      %7116 = vrot.lane.b32.xlu0 %v7028, 120
      %v7117 = vpop.permute.xlu0 %7116
      %7118 = vrot.lane.b32.xlu0 %v7029, 120
      %v7119 = vpop.permute.xlu0 %7118
      %7120 = vrot.lane.b32.xlu0 %v7030, 120
      %v7121 = vpop.permute.xlu0 %7120
      %7122 = vrot.lane.b32.xlu0 %v7031, 120
      %v7123 = vpop.permute.xlu0 %7122
      %7124 = vrot.lane.b32.xlu0 %v7032, 120
      %v7125 = vpop.permute.xlu0 %7124
      %7126 = vrot.lane.b32.xlu0 %v7033, 120
      %v7127 = vpop.permute.xlu0 %7126
      %7128 = vrot.lane.b32.xlu0 %v7034, 120
      %v7129 = vpop.permute.xlu0 %7128
      %7130 = vrot.lane.b32.xlu0 %v7035, 120
      %v7131 = vpop.permute.xlu0 %7130
      %7132 = vrot.lane.b32.xlu0 %v7036, 120
      %v7133 = vpop.permute.xlu0 %7132
      %7134 = vrot.lane.b32.xlu0 %v7037, 120
      %v7135 = vpop.permute.xlu0 %7134
      %7136 = vrot.lane.b32.xlu0 %v7038, 120
      %v7137 = vpop.permute.xlu0 %7136
      %7138 = vrot.lane.b32.xlu0 %v7039, 120
      %v7139 = vpop.permute.xlu0 %7138
      %7140 = vrot.lane.b32.xlu0 %v7040, 120
      %v7141 = vpop.permute.xlu0 %7140
      %7142 = vrot.lane.b32.xlu0 %v7041, 120
      %v7143 = vpop.permute.xlu0 %7142
      %7144 = vrot.lane.b32.xlu0 %v7042, 120
      %v7145 = vpop.permute.xlu0 %7144
      %7146 = vrot.lane.b32.xlu0 %v7043, 120
      %v7147 = vpop.permute.xlu0 %7146
      %7148 = vrot.lane.b32.xlu0 %v7044, 120
      %v7149 = vpop.permute.xlu0 %7148
      %7150 = vrot.lane.b32.xlu0 %v7045, 120
      %v7151 = vpop.permute.xlu0 %7150
      %7152 = vrot.lane.b32.xlu0 %v7046, 120
      %v7153 = vpop.permute.xlu0 %7152
      %7154 = vrot.lane.b32.xlu0 %v7047, 120
      %v7155 = vpop.permute.xlu0 %7154
      %7156 = vrot.lane.b32.xlu0 %v7048, 120
      %v7157 = vpop.permute.xlu0 %7156
      %7158 = vrot.lane.b32.xlu0 %v7049, 120
      %v7159 = vpop.permute.xlu0 %7158
      %7160 = vrot.lane.b32.xlu0 %v7050, 120
      %v7161 = vpop.permute.xlu0 %7160
      %7162 = vrot.lane.b32.xlu0 %v7051, 120
      %v7163 = vpop.permute.xlu0 %7162
      %7164 = vrot.lane.b32.xlu0 %v7052, 120
      %v7165 = vpop.permute.xlu0 %7164
      %7166 = vrot.lane.b32.xlu0 %v7053, 120
      %v7167 = vpop.permute.xlu0 %7166
      %7168 = vrot.lane.b32.xlu0 %v7054, 120
      %v7169 = vpop.permute.xlu0 %7168
      %7170 = vrot.lane.b32.xlu0 %v7055, 120
      %v7171 = vpop.permute.xlu0 %7170
      %7172 = vrot.lane.b32.xlu0 %v7056, 120
      %v7173 = vpop.permute.xlu0 %7172
      %7174 = vrot.lane.b32.xlu0 %v7057, 120
      %v7175 = vpop.permute.xlu0 %7174
      %7176 = vrot.lane.b32.xlu0 %v7058, 120
      %v7177 = vpop.permute.xlu0 %7176
      %7178 = vrot.lane.b32.xlu0 %v7059, 120
      %v7179 = vpop.permute.xlu0 %7178
      %7180 = vrot.lane.b32.xlu0 %v7060, 120
      %v7181 = vpop.permute.xlu0 %7180
      %7182 = vrot.lane.b32.xlu0 %v7061, 120
      %v7183 = vpop.permute.xlu0 %7182
      %7184 = vrot.lane.b32.xlu0 %v7062, 120
      %v7185 = vpop.permute.xlu0 %7184
      %7227 = vst.msk [vmem:[%s251] sm:$0xff] %vm1707, %v7105
      %7228 = vst.msk [vmem:[%s251 + $0x8] sm:$0xff] %vm1707, %v7107
      %7229 = vst.msk [vmem:[%s251 + $0x10] sm:$0xff] %vm1707, %v7109
      %7230 = vst.msk [vmem:[%s251 + $0x18] sm:$0xff] %vm1707, %v7111
      %7231 = vst.msk [vmem:[%s251 + $0x20] sm:$0xff] %vm1707, %v7113
      %7232 = vst.msk [vmem:[%s251 + $0x28] sm:$0xff] %vm1707, %v7115
      %7233 = vst.msk [vmem:[%s251 + $0x30] sm:$0xff] %vm1707, %v7117
      %7234 = vst.msk [vmem:[%s251 + $0x38] sm:$0xff] %vm1707, %v7119
      %7235 = vst.msk [vmem:[%s251 + $0x40] sm:$0xff] %vm1707, %v7121
      %7236 = vst.msk [vmem:[%s251 + $0x48] sm:$0xff] %vm1707, %v7123
      %7237 = vst.msk [vmem:[%s251 + $0x50] sm:$0xff] %vm1707, %v7125
      %7238 = vst.msk [vmem:[%s251 + $0x58] sm:$0xff] %vm1707, %v7127
      %7239 = vst.msk [vmem:[%s251 + $0x60] sm:$0xff] %vm1707, %v7129
      %7240 = vst.msk [vmem:[%s251 + $0x68] sm:$0xff] %vm1707, %v7131
      %7241 = vst.msk [vmem:[%s251 + $0x70] sm:$0xff] %vm1707, %v7133
      %7242 = vst.msk [vmem:[%s251 + $0x78] sm:$0xff] %vm1707, %v7135
      %7243 = vst.msk [vmem:[%s251 + $0x80] sm:$0xff] %vm1707, %v7137
      %7244 = vst.msk [vmem:[%s251 + $0x88] sm:$0xff] %vm1707, %v7139
      %7245 = vst.msk [vmem:[%s251 + $0x90] sm:$0xff] %vm1707, %v7141
      %7246 = vst.msk [vmem:[%s251 + $0x98] sm:$0xff] %vm1707, %v7143
      %7247 = vst.msk [vmem:[%s251 + $0xa0] sm:$0xff] %vm1707, %v7145
      %7248 = vst.msk [vmem:[%s251 + $0xa8] sm:$0xff] %vm1707, %v7147
      %7249 = vst.msk [vmem:[%s251 + $0xb0] sm:$0xff] %vm1707, %v7149
      %7250 = vst.msk [vmem:[%s251 + $0xb8] sm:$0xff] %vm1707, %v7151
      %7251 = vst.msk [vmem:[%s251 + $0xc0] sm:$0xff] %vm1707, %v7153
      %7252 = vst.msk [vmem:[%s251 + $0xc8] sm:$0xff] %vm1707, %v7155
      %7253 = vst.msk [vmem:[%s251 + $0xd0] sm:$0xff] %vm1707, %v7157
      %7254 = vst.msk [vmem:[%s251 + $0xd8] sm:$0xff] %vm1707, %v7159
      %7255 = vst.msk [vmem:[%s251 + $0xe0] sm:$0xff] %vm1707, %v7161
      %7256 = vst.msk [vmem:[%s251 + $0xe8] sm:$0xff] %vm1707, %v7163
      %7257 = vst.msk [vmem:[%s251 + $0xf0] sm:$0xff] %vm1707, %v7165
      %7258 = vst.msk [vmem:[%s251 + $0xf8] sm:$0xff] %vm1707, %v7167
      %7259 = vst.msk [vmem:[%s251 + $0x100] sm:$0xff] %vm1707, %v7169
      %7260 = vst.msk [vmem:[%s251 + $0x108] sm:$0xff] %vm1707, %v7171
      %7261 = vst.msk [vmem:[%s251 + $0x110] sm:$0xff] %vm1707, %v7173
      %7262 = vst.msk [vmem:[%s251 + $0x118] sm:$0xff] %vm1707, %v7175
      %7263 = vst.msk [vmem:[%s251 + $0x120] sm:$0xff] %vm1707, %v7177
      %7264 = vst.msk [vmem:[%s251 + $0x128] sm:$0xff] %vm1707, %v7179
      %7265 = vst.msk [vmem:[%s251 + $0x130] sm:$0xff] %vm1707, %v7181
      %7266 = vst.msk [vmem:[%s251 + $0x138] sm:$0xff] %vm1707, %v7183
      %7267 = vst.msk [vmem:[%s251 + $0x140] sm:$0xf] %vm1123, %v7185
      %p7268 = scmp.lt.s32.totalorder %s17, 1
      %s7269 = scalar_select %p7268, %s17, 1
      %s7270 = smul.addr %s7269, 41
      %s7271 = smul.addr %s7270, 8
      %s7272 = scalar_lea.vmem %s6, %s7271
      // Predicated region
      $region45: #{scaled_block_forward.1} parent=43 // pred_check
        %p7273 = pneg %p166
      $region46: #{scaled_block_forward.1} parent=43 // pred_check_branch
        %7275 = sbr.rel (%p7273) target = $region48
      $region47: #{scaled_block_forward.1} parent=43 // pred_region
        _
      $region48: #{scaled_block_forward.1} parent=43 // pred_fallthru
        _
    $region44: #{scaled_block_forward.1} parent=5 // pred_fallthru
      _
    %p7276 = scmp.le.s32.totalorder 2, %s12
    // Predicated region
    $region49: #{scaled_block_forward.1} parent=5 // pred_check
      %p7277 = pneg %p7276
    $region50: #{scaled_block_forward.1} parent=5 // pred_check_branch
      %7279 = sbr.rel (%p7277) target = $region52
    $region51: #{scaled_block_forward.1} parent=5 // pred_region
      %s7280 = ssub.s32 %s12, 2
      // Predicated region
      $region53: #{scaled_block_forward.1} parent=51 // pred_check
        %p7281 = pneg %p172
      $region54: #{scaled_block_forward.1} parent=51 // pred_check_branch
        %7283 = sbr.rel (%p7281) target = $region56
      $region55: #{scaled_block_forward.1} parent=51 // pred_region
        %p7284 = scmp.lt.s32.totalorder %s18, 1
        %s7285 = scalar_select %p7284, %s18, 1
        %s7286 = smul.addr %s7285, 41
        %s7287 = smul.addr %s7286, 8
        %s7288 = scalar_lea.vmem %s6, %s7287
      $region56: #{scaled_block_forward.1} parent=51 // pred_fallthru
        _
    $region52: #{scaled_block_forward.1} parent=5 // pred_fallthru
      _
  $region6: #{scaled_block_forward.1} parent=0 // loop_footer
    %s16 = sadd.s32 1, %s12
  $region7: #{scaled_block_forward.1} parent=0 // loop_footer_branch
    %11 = sbr.rel target = $region3
  $region8: #{scaled_block_forward.1} parent=0 // loop_exit
    _

</llo_original>
